<compile_context>
chip_gen: v6e
topology: v6e:2x2x1
jax: 0.10.0
libtpu: 0.0.40
codegen_flags: <defaults>
</compile_context>

<pallas_src>
import jax
import jax.numpy as jnp
import numpy as np
from jax import lax
from jax.experimental import pallas as pl
from jax.experimental.pallas import tpu as pltpu

_LANE = 128      # lane width: pad all channel dims to a multiple of this
_PAD_LEFT = 8    # sublane-aligned start column of the pad-buffer interior


def _round_up(x, m):
    return (x + m - 1) // m * m


def _zero_pad_border(pad_ref):
    """Zero only the border cells the 3x3 taps actually read (interior is
    fully overwritten every step, so it never needs clearing)."""
    Hp, Wp, C = pad_ref.shape
    H2 = Hp - 2
    W2 = Wp - _PAD_LEFT - 1
    z_row = jnp.zeros((1, Wp, C), pad_ref.dtype)
    pad_ref[0:1, :, :] = z_row                    # top conv-pad row
    pad_ref[Hp - 1:Hp, :, :] = z_row              # bottom conv-pad row
    z_col = jnp.zeros((H2, 1, C), pad_ref.dtype)
    pad_ref[1:1 + H2, _PAD_LEFT - 1:_PAD_LEFT, :] = z_col          # left conv-pad col
    pad_ref[1:1 + H2, _PAD_LEFT + W2:_PAD_LEFT + W2 + 1, :] = z_col  # right conv-pad col


def _conv3x3_bn_relu(pad_ref, slab_ref, w_ref, s_ref, t_ref):
    """3x3 SAME conv as a single im2col matmul, + folded BN affine + ReLU.

    pad_ref : (H2+2, W2+_PAD_LEFT+1, Cp) bf16, zero borders already in place.
    slab_ref: (H2*W2, 9*Cp) bf16 im2col scratch.
    w_ref   : (9*Cp, Cop) bf16 weight slab.
    s_ref/t_ref: (1, Cop) f32 folded BN scale / shift.
    Returns (H2*W2, Cop) f32.
    """
    Hp, Wp, C = pad_ref.shape
    H2 = Hp - 2
    W2 = Wp - _PAD_LEFT - 1
    M = H2 * W2
    for dy in range(3):
        for dx in range(3):
            t_i = dy * 3 + dx
            c0 = _PAD_LEFT - 1 + dx
            patch = pad_ref[dy:dy + H2, c0:c0 + W2, :]          # (H2, W2, C)
            slab_ref[:, t_i * C:(t_i + 1) * C] = patch.reshape(M, C)
    acc = jnp.dot(slab_ref[...], w_ref[...], preferred_element_type=jnp.float32)
    return jnp.maximum(acc * s_ref[...] + t_ref[...], 0.0)


def _down_kernel(x_ref, w1_ref, s1_ref, t1_ref, w2_ref, s2_ref, t2_ref,
                 out_ref, pad1_ref, pad2_ref, slab1_ref, slab2_ref):
    H2 = x_ref.shape[1] // 4
    W2 = x_ref.shape[2]
    CmidP = w1_ref.shape[1]
    CoutP = w2_ref.shape[1]

    # ---------- MaxPool2d(2) ----------
    # The wrapper packed the four taps of every 2x2 window along axis 1
    # (tap-major, then output row), so pooling is 4 aligned loads + elementwise max.
    pooled = jnp.maximum(
        jnp.maximum(x_ref[0, 0 * H2:1 * H2, :, :], x_ref[0, 1 * H2:2 * H2, :, :]),
        jnp.maximum(x_ref[0, 2 * H2:3 * H2, :, :], x_ref[0, 3 * H2:4 * H2, :, :]))

    # ---------- conv1 (3x3, SAME) + folded BN + ReLU ----------
    _zero_pad_border(pad1_ref)
    pad1_ref[1:1 + H2, _PAD_LEFT:_PAD_LEFT + W2, :] = pooled
    h = _conv3x3_bn_relu(pad1_ref, slab1_ref, w1_ref, s1_ref, t1_ref)

    # ---------- conv2 (3x3, SAME) + folded BN + ReLU ----------
    _zero_pad_border(pad2_ref)
    pad2_ref[1:1 + H2, _PAD_LEFT:_PAD_LEFT + W2, :] = (
        h.astype(pad2_ref.dtype).reshape(H2, W2, CmidP))
    o = _conv3x3_bn_relu(pad2_ref, slab2_ref, w2_ref, s2_ref, t2_ref)

    out_ref[0, :, :, :] = o.reshape(H2, W2, CoutP).astype(out_ref.dtype)


def down_forward(x_nchw, params):
    """x_nchw: (N, Cin, H, W) f32 (PyTorch layout). Returns NHWC (N, H/2, W/2, Cout) f32."""
    w1, s1, t1, w2, s2, t2 = params          # w*: HWIO f32, s*/t*: (C,) f32
    N, Cin, H, W = x_nchw.shape
    assert H % 2 == 0 and W % 2 == 0, "MaxPool2d(2) assumes even H, W"
    H2, W2 = H // 2, W // 2
    assert W2 % 8 == 0, "kernel assumes pooled width is a multiple of 8 (sublane)"
    Cmid, Cout = w1.shape[3], w2.shape[3]
    CinP = _round_up(Cin, _LANE)
    CmidP = _round_up(Cmid, _LANE)
    CoutP = _round_up(Cout, _LANE)

    # NCHW -> NHWC, bf16, then space-to-depth pack the four 2x2-window taps along H.
    x = jnp.transpose(x_nchw, (0, 2, 3, 1)).astype(jnp.bfloat16)       # (N,H,W,Cin)
    x = x.reshape(N, H2, 2, W2, 2, Cin)
    x = jnp.transpose(x, (0, 2, 4, 1, 3, 5)).reshape(N, 4 * H2, W2, Cin)
    x = jnp.pad(x, ((0, 0), (0, 0), (0, 0), (0, CinP - Cin)))          # lane-dense

    def pack_w(w_hwio, cin, cinp, cout, coutp):
        wp = jnp.pad(w_hwio, ((0, 0), (0, 0), (0, cinp - cin), (0, coutp - cout)))
        return wp.reshape(9 * cinp, coutp).astype(jnp.bfloat16)        # im2col layout

    def pack_v(v, c, cp):
        return jnp.pad(v.reshape(1, c), ((0, 0), (0, cp - c))).astype(jnp.float32)

    w1p = pack_w(w1, Cin, CinP, Cmid, CmidP)
    w2p = pack_w(w2, Cmid, CmidP, Cout, CoutP)
    s1p, t1p = pack_v(s1, Cmid, CmidP), pack_v(t1, Cmid, CmidP)
    s2p, t2p = pack_v(s2, Cout, CoutP), pack_v(t2, Cout, CoutP)

    Wpad = W2 + _PAD_LEFT + 1   # interior at sublane-aligned offset + 1 right pad col

    grid_spec = pltpu.PrefetchScalarGridSpec(
        num_scalar_prefetch=0,
        grid=(N,),
        in_specs=[
            pl.BlockSpec((1, 4 * H2, W2, CinP), lambda b: (b, 0, 0, 0)),
            pl.BlockSpec((9 * CinP, CmidP), lambda b: (0, 0)),
            pl.BlockSpec((1, CmidP), lambda b: (0, 0)),
            pl.BlockSpec((1, CmidP), lambda b: (0, 0)),
            pl.BlockSpec((9 * CmidP, CoutP), lambda b: (0, 0)),
            pl.BlockSpec((1, CoutP), lambda b: (0, 0)),
            pl.BlockSpec((1, CoutP), lambda b: (0, 0)),
        ],
        out_specs=pl.BlockSpec((1, H2, W2, CoutP), lambda b: (b, 0, 0, 0)),
        scratch_shapes=[
            pltpu.VMEM((H2 + 2, Wpad, CinP), jnp.bfloat16),    # padded pooled input
            pltpu.VMEM((H2 + 2, Wpad, CmidP), jnp.bfloat16),   # padded hidden activ.
            pltpu.VMEM((H2 * W2, 9 * CinP), jnp.bfloat16),     # im2col slab, conv1
            pltpu.VMEM((H2 * W2, 9 * CmidP), jnp.bfloat16),    # im2col slab, conv2
        ],
    )

    flops = 2 * N * H2 * W2 * 9 * (CinP * CmidP + CmidP * CoutP)
    bytes_accessed = (x.size * 2 + w1p.size * 2 + w2p.size * 2
                      + (s1p.size + t1p.size + s2p.size + t2p.size) * 4
                      + N * H2 * W2 * CoutP * 4)

    out = pl.pallas_call(
        _down_kernel,
        out_shape=jax.ShapeDtypeStruct((N, H2, W2, CoutP), jnp.float32),
        grid_spec=grid_spec,
        compiler_params=pltpu.CompilerParams(
            dimension_semantics=("parallel",),        # batch items independent (2 TCs on v7x)
            vmem_limit_bytes=64 * 1024 * 1024),
        cost_estimate=pl.CostEstimate(flops=flops, transcendentals=0,
                                      bytes_accessed=bytes_accessed),
    )(x, w1p, s1p, t1p, w2p, s2p, t2p)
    return out[..., :Cout]


def init_params(key, cin, cout):
    cmid = cout
    k = jax.random.split(key, 4)
    conv1_w = jax.random.normal(k[0], (cmid, cin, 3, 3), jnp.float32) * 0.1   # OIHW
    conv1_b = jax.random.normal(k[1], (cmid,), jnp.float32) * 0.1
    conv2_w = jax.random.normal(k[2], (cout, cmid, 3, 3), jnp.float32) * 0.1
    conv2_b = jax.random.normal(k[3], (cout,), jnp.float32) * 0.1

    def bn(c, off):
        gamma = 1.0 + 0.05 * jnp.arange(c, dtype=jnp.float32)
        beta = 0.02 * jnp.arange(c, dtype=jnp.float32) - 0.1
        mean = 0.01 * jnp.arange(c, dtype=jnp.float32) + off
        var = 1.0 + 0.03 * jnp.arange(c, dtype=jnp.float32)
        return gamma, beta, mean, var

    g1, b1, m1, v1 = bn(cmid, 0.05)
    g2, b2, m2, v2 = bn(cout, -0.02)
    eps = 1e-5
    # Fold conv bias + eval-mode BN into per-channel affine: y = conv(x) * s + t
    s1 = g1 / jnp.sqrt(v1 + eps)
    t1 = b1 + (conv1_b - m1) * s1
    s2 = g2 / jnp.sqrt(v2 + eps)
    t2 = b2 + (conv2_b - m2) * s2
    w1 = jnp.transpose(conv1_w, (2, 3, 1, 0))   # HWIO
    w2 = jnp.transpose(conv2_w, (2, 3, 1, 0))
    return (w1, s1, t1, w2, s2, t2)


def down_reference(x_nchw, params):
    # Pure-JAX reference mirroring the kernel's bf16 compute / f32 accumulation.
    w1, s1, t1, w2, s2, t2 = params
    N, Cin, H, W = x_nchw.shape
    H2, W2 = H // 2, W // 2
    x = jnp.transpose(x_nchw, (0, 2, 3, 1)).astype(jnp.bfloat16)
    p = jnp.max(x.reshape(N, H2, 2, W2, 2, Cin), axis=(2, 4))           # maxpool 2x2

    def block(y_bf16, w, s, t):
        z = lax.conv_general_dilated(
            y_bf16, w.astype(jnp.bfloat16), (1, 1), "SAME",
            dimension_numbers=("NHWC", "HWIO", "NHWC"),
            preferred_element_type=jnp.float32)
        return jnp.maximum(z * s.reshape(1, 1, 1, -1) + t.reshape(1, 1, 1, -1), 0.0)

    h = block(p, w1, s1, t1).astype(jnp.bfloat16)
    return block(h, w2, s2, t2)


if __name__ == "__main__":
    key = jax.random.PRNGKey(0)
    kx, kp = jax.random.split(key)

    N, Cin, H, W = 2, 4, 16, 16
    Cout = 8

    x_nchw = jax.random.normal(kx, (N, Cin, H, W), jnp.float32)   # PyTorch NCHW
    params = init_params(kp, Cin, Cout)

    out = jax.block_until_ready(down_forward(x_nchw, params))
    ref = jax.block_until_ready(down_reference(x_nchw, params))

    np.testing.assert_allclose(np.asarray(out), np.asarray(ref), atol=1e-2, rtol=1e-2)
    print("KERNEL_OK")
</pallas_src>

<mosaic_0001>
module attributes {stable_mosaic.version = 11 : i64} {
  func.func @_down_kernel(%arg0: i32, %arg1: memref<1x32x8x128xbf16, #tpu.memory_space<vmem>>, %arg2: memref<1152x128xbf16, #tpu.memory_space<vmem>>, %arg3: memref<1x128xf32, #tpu.memory_space<vmem>>, %arg4: memref<1x128xf32, #tpu.memory_space<vmem>>, %arg5: memref<1152x128xbf16, #tpu.memory_space<vmem>>, %arg6: memref<1x128xf32, #tpu.memory_space<vmem>>, %arg7: memref<1x128xf32, #tpu.memory_space<vmem>>, %arg8: memref<1x8x8x128xf32, #tpu.memory_space<vmem>>, %arg9: memref<10x17x128xbf16, #tpu.memory_space<vmem>>, %arg10: memref<10x17x128xbf16, #tpu.memory_space<vmem>>, %arg11: memref<64x1152xbf16, #tpu.memory_space<vmem>>, %arg12: memref<64x1152xbf16, #tpu.memory_space<vmem>>) attributes {dimension_semantics = [#tpu.dimension_semantics<parallel>], iteration_bounds = array<i64: 2>, scalar_prefetch = 0 : i64, scratch_operands = 4 : i64, tpu.core_type = #tpu.core_type<tc>, window_params = [{transform_indices = @transform_0, window_bounds = array<i64: 1, 32, 8, 128>}, {pipeline_mode = #tpu.pipeline_mode<synchronous>, transform_indices = @transform_1, window_bounds = array<i64: 1152, 128>}, {pipeline_mode = #tpu.pipeline_mode<synchronous>, transform_indices = @transform_2, window_bounds = array<i64: 1, 128>}, {pipeline_mode = #tpu.pipeline_mode<synchronous>, transform_indices = @transform_3, window_bounds = array<i64: 1, 128>}, {pipeline_mode = #tpu.pipeline_mode<synchronous>, transform_indices = @transform_4, window_bounds = array<i64: 1152, 128>}, {pipeline_mode = #tpu.pipeline_mode<synchronous>, transform_indices = @transform_5, window_bounds = array<i64: 1, 128>}, {pipeline_mode = #tpu.pipeline_mode<synchronous>, transform_indices = @transform_6, window_bounds = array<i64: 1, 128>}, {transform_indices = @transform_7, window_bounds = array<i64: 1, 8, 8, 128>}]} {
    %c0 = arith.constant 0 : index
    %c0_0 = arith.constant 0 : index
    %c0_1 = arith.constant 0 : index
    %c0_2 = arith.constant 0 : index
    %0 = vector.load %arg1[%c0, %c0_0, %c0_1, %c0_2] : memref<1x32x8x128xbf16, #tpu.memory_space<vmem>>, vector<1x8x8x128xbf16>
    %1 = vector.shape_cast %0 : vector<1x8x8x128xbf16> to vector<8x8x128xbf16>
    %c0_3 = arith.constant 0 : index
    %c8 = arith.constant 8 : index
    %c0_4 = arith.constant 0 : index
    %c0_5 = arith.constant 0 : index
    %2 = vector.load %arg1[%c0_3, %c8, %c0_4, %c0_5] : memref<1x32x8x128xbf16, #tpu.memory_space<vmem>>, vector<1x8x8x128xbf16>
    %3 = vector.shape_cast %2 : vector<1x8x8x128xbf16> to vector<8x8x128xbf16>
    %4 = arith.maximumf %1, %3 : vector<8x8x128xbf16>
    %c0_6 = arith.constant 0 : index
    %c16 = arith.constant 16 : index
    %c0_7 = arith.constant 0 : index
    %c0_8 = arith.constant 0 : index
    %5 = vector.load %arg1[%c0_6, %c16, %c0_7, %c0_8] : memref<1x32x8x128xbf16, #tpu.memory_space<vmem>>, vector<1x8x8x128xbf16>
    %6 = vector.shape_cast %5 : vector<1x8x8x128xbf16> to vector<8x8x128xbf16>
    %c0_9 = arith.constant 0 : index
    %c24 = arith.constant 24 : index
    %c0_10 = arith.constant 0 : index
    %c0_11 = arith.constant 0 : index
    %7 = vector.load %arg1[%c0_9, %c24, %c0_10, %c0_11] : memref<1x32x8x128xbf16, #tpu.memory_space<vmem>>, vector<1x8x8x128xbf16>
    %8 = vector.shape_cast %7 : vector<1x8x8x128xbf16> to vector<8x8x128xbf16>
    %9 = arith.maximumf %6, %8 : vector<8x8x128xbf16>
    %10 = arith.maximumf %4, %9 : vector<8x8x128xbf16>
    %cst = arith.constant 0.000000e+00 : bf16
    %11 = vector.broadcast %cst : bf16 to vector<1x17x128xbf16>
    %c0_12 = arith.constant 0 : index
    %c0_13 = arith.constant 0 : index
    %c0_14 = arith.constant 0 : index
    %12 = vector.load %arg9[%c0_12, %c0_13, %c0_14] : memref<10x17x128xbf16, #tpu.memory_space<vmem>>, vector<1x17x128xbf16>
    tpu.vector_store %arg9[%c0_12, %c0_13, %c0_14], %11 {strides = array<i32>} : memref<10x17x128xbf16, #tpu.memory_space<vmem>>, vector<1x17x128xbf16>,
    %c9 = arith.constant 9 : index
    %c0_15 = arith.constant 0 : index
    %c0_16 = arith.constant 0 : index
    %13 = vector.load %arg9[%c9, %c0_15, %c0_16] : memref<10x17x128xbf16, #tpu.memory_space<vmem>>, vector<1x17x128xbf16>
    tpu.vector_store %arg9[%c9, %c0_15, %c0_16], %11 {strides = array<i32>} : memref<10x17x128xbf16, #tpu.memory_space<vmem>>, vector<1x17x128xbf16>,
    %cst_17 = arith.constant 0.000000e+00 : bf16
    %14 = vector.broadcast %cst_17 : bf16 to vector<8x1x128xbf16>
    %c1 = arith.constant 1 : index
    %c7 = arith.constant 7 : index
    %c0_18 = arith.constant 0 : index
    %15 = vector.load %arg9[%c1, %c7, %c0_18] : memref<10x17x128xbf16, #tpu.memory_space<vmem>>, vector<8x1x128xbf16>
    tpu.vector_store %arg9[%c1, %c7, %c0_18], %14 {strides = array<i32>} : memref<10x17x128xbf16, #tpu.memory_space<vmem>>, vector<8x1x128xbf16>,
    %c1_19 = arith.constant 1 : index
    %c16_20 = arith.constant 16 : index
    %c0_21 = arith.constant 0 : index
    %16 = vector.load %arg9[%c1_19, %c16_20, %c0_21] : memref<10x17x128xbf16, #tpu.memory_space<vmem>>, vector<8x1x128xbf16>
    tpu.vector_store %arg9[%c1_19, %c16_20, %c0_21], %14 {strides = array<i32>} : memref<10x17x128xbf16, #tpu.memory_space<vmem>>, vector<8x1x128xbf16>,
    %c1_22 = arith.constant 1 : index
    %c8_23 = arith.constant 8 : index
    %c0_24 = arith.constant 0 : index
    %17 = vector.load %arg9[%c1_22, %c8_23, %c0_24] : memref<10x17x128xbf16, #tpu.memory_space<vmem>>, vector<8x8x128xbf16>
    tpu.vector_store %arg9[%c1_22, %c8_23, %c0_24], %10 {strides = array<i32>} : memref<10x17x128xbf16, #tpu.memory_space<vmem>>, vector<8x8x128xbf16>,
    %c0_25 = arith.constant 0 : index
    %c7_26 = arith.constant 7 : index
    %c0_27 = arith.constant 0 : index
    %18 = vector.load %arg9[%c0_25, %c7_26, %c0_27] : memref<10x17x128xbf16, #tpu.memory_space<vmem>>, vector<8x8x128xbf16>
    %19 = vector.shape_cast %18 : vector<8x8x128xbf16> to vector<64x128xbf16>
    %c0_28 = arith.constant 0 : index
    %c0_29 = arith.constant 0 : index
    %20 = vector.load %arg11[%c0_28, %c0_29] : memref<64x1152xbf16, #tpu.memory_space<vmem>>, vector<64x128xbf16>
    tpu.vector_store %arg11[%c0_28, %c0_29], %19 {strides = array<i32>} : memref<64x1152xbf16, #tpu.memory_space<vmem>>, vector<64x128xbf16>,
    %c0_30 = arith.constant 0 : index
    %c8_31 = arith.constant 8 : index
    %c0_32 = arith.constant 0 : index
    %21 = vector.load %arg9[%c0_30, %c8_31, %c0_32] : memref<10x17x128xbf16, #tpu.memory_space<vmem>>, vector<8x8x128xbf16>
    %22 = vector.shape_cast %21 : vector<8x8x128xbf16> to vector<64x128xbf16>
    %c0_33 = arith.constant 0 : index
    %c128 = arith.constant 128 : index
    %23 = vector.load %arg11[%c0_33, %c128] : memref<64x1152xbf16, #tpu.memory_space<vmem>>, vector<64x128xbf16>
    tpu.vector_store %arg11[%c0_33, %c128], %22 {strides = array<i32>} : memref<64x1152xbf16, #tpu.memory_space<vmem>>, vector<64x128xbf16>,
    %c0_34 = arith.constant 0 : index
    %c9_35 = arith.constant 9 : index
    %c0_36 = arith.constant 0 : index
    %24 = vector.load %arg9[%c0_34, %c9_35, %c0_36] : memref<10x17x128xbf16, #tpu.memory_space<vmem>>, vector<8x8x128xbf16>
    %25 = vector.shape_cast %24 : vector<8x8x128xbf16> to vector<64x128xbf16>
    %c0_37 = arith.constant 0 : index
    %c256 = arith.constant 256 : index
    %26 = vector.load %arg11[%c0_37, %c256] : memref<64x1152xbf16, #tpu.memory_space<vmem>>, vector<64x128xbf16>
    tpu.vector_store %arg11[%c0_37, %c256], %25 {strides = array<i32>} : memref<64x1152xbf16, #tpu.memory_space<vmem>>, vector<64x128xbf16>,
    %c1_38 = arith.constant 1 : index
    %c7_39 = arith.constant 7 : index
    %c0_40 = arith.constant 0 : index
    %27 = vector.load %arg9[%c1_38, %c7_39, %c0_40] : memref<10x17x128xbf16, #tpu.memory_space<vmem>>, vector<8x8x128xbf16>
    %28 = vector.shape_cast %27 : vector<8x8x128xbf16> to vector<64x128xbf16>
    %c0_41 = arith.constant 0 : index
    %c384 = arith.constant 384 : index
    %29 = vector.load %arg11[%c0_41, %c384] : memref<64x1152xbf16, #tpu.memory_space<vmem>>, vector<64x128xbf16>
    tpu.vector_store %arg11[%c0_41, %c384], %28 {strides = array<i32>} : memref<64x1152xbf16, #tpu.memory_space<vmem>>, vector<64x128xbf16>,
    %c1_42 = arith.constant 1 : index
    %c8_43 = arith.constant 8 : index
    %c0_44 = arith.constant 0 : index
    %30 = vector.load %arg9[%c1_42, %c8_43, %c0_44] : memref<10x17x128xbf16, #tpu.memory_space<vmem>>, vector<8x8x128xbf16>
    %31 = vector.shape_cast %30 : vector<8x8x128xbf16> to vector<64x128xbf16>
    %c0_45 = arith.constant 0 : index
    %c512 = arith.constant 512 : index
    %32 = vector.load %arg11[%c0_45, %c512] : memref<64x1152xbf16, #tpu.memory_space<vmem>>, vector<64x128xbf16>
    tpu.vector_store %arg11[%c0_45, %c512], %31 {strides = array<i32>} : memref<64x1152xbf16, #tpu.memory_space<vmem>>, vector<64x128xbf16>,
    %c1_46 = arith.constant 1 : index
    %c9_47 = arith.constant 9 : index
    %c0_48 = arith.constant 0 : index
    %33 = vector.load %arg9[%c1_46, %c9_47, %c0_48] : memref<10x17x128xbf16, #tpu.memory_space<vmem>>, vector<8x8x128xbf16>
    %34 = vector.shape_cast %33 : vector<8x8x128xbf16> to vector<64x128xbf16>
    %c0_49 = arith.constant 0 : index
    %c640 = arith.constant 640 : index
    %35 = vector.load %arg11[%c0_49, %c640] : memref<64x1152xbf16, #tpu.memory_space<vmem>>, vector<64x128xbf16>
    tpu.vector_store %arg11[%c0_49, %c640], %34 {strides = array<i32>} : memref<64x1152xbf16, #tpu.memory_space<vmem>>, vector<64x128xbf16>,
    %c2 = arith.constant 2 : index
    %c7_50 = arith.constant 7 : index
    %c0_51 = arith.constant 0 : index
    %36 = vector.load %arg9[%c2, %c7_50, %c0_51] : memref<10x17x128xbf16, #tpu.memory_space<vmem>>, vector<8x8x128xbf16>
    %37 = vector.shape_cast %36 : vector<8x8x128xbf16> to vector<64x128xbf16>
    %c0_52 = arith.constant 0 : index
    %c768 = arith.constant 768 : index
    %38 = vector.load %arg11[%c0_52, %c768] : memref<64x1152xbf16, #tpu.memory_space<vmem>>, vector<64x128xbf16>
    tpu.vector_store %arg11[%c0_52, %c768], %37 {strides = array<i32>} : memref<64x1152xbf16, #tpu.memory_space<vmem>>, vector<64x128xbf16>,
    %c2_53 = arith.constant 2 : index
    %c8_54 = arith.constant 8 : index
    %c0_55 = arith.constant 0 : index
    %39 = vector.load %arg9[%c2_53, %c8_54, %c0_55] : memref<10x17x128xbf16, #tpu.memory_space<vmem>>, vector<8x8x128xbf16>
    %40 = vector.shape_cast %39 : vector<8x8x128xbf16> to vector<64x128xbf16>
    %c0_56 = arith.constant 0 : index
    %c896 = arith.constant 896 : index
    %41 = vector.load %arg11[%c0_56, %c896] : memref<64x1152xbf16, #tpu.memory_space<vmem>>, vector<64x128xbf16>
    tpu.vector_store %arg11[%c0_56, %c896], %40 {strides = array<i32>} : memref<64x1152xbf16, #tpu.memory_space<vmem>>, vector<64x128xbf16>,
    %c2_57 = arith.constant 2 : index
    %c9_58 = arith.constant 9 : index
    %c0_59 = arith.constant 0 : index
    %42 = vector.load %arg9[%c2_57, %c9_58, %c0_59] : memref<10x17x128xbf16, #tpu.memory_space<vmem>>, vector<8x8x128xbf16>
    %43 = vector.shape_cast %42 : vector<8x8x128xbf16> to vector<64x128xbf16>
    %c0_60 = arith.constant 0 : index
    %c1024 = arith.constant 1024 : index
    %44 = vector.load %arg11[%c0_60, %c1024] : memref<64x1152xbf16, #tpu.memory_space<vmem>>, vector<64x128xbf16>
    tpu.vector_store %arg11[%c0_60, %c1024], %43 {strides = array<i32>} : memref<64x1152xbf16, #tpu.memory_space<vmem>>, vector<64x128xbf16>,
    %c0_61 = arith.constant 0 : index
    %c0_62 = arith.constant 0 : index
    %45 = vector.load %arg11[%c0_61, %c0_62] : memref<64x1152xbf16, #tpu.memory_space<vmem>>, vector<64x1152xbf16>
    %c0_63 = arith.constant 0 : index
    %c0_64 = arith.constant 0 : index
    %46 = vector.load %arg2[%c0_63, %c0_64] : memref<1152x128xbf16, #tpu.memory_space<vmem>>, vector<1152x128xbf16>
    %cst_65 = arith.constant dense<0.000000e+00> : vector<64x128xf32>
    %47 = tpu.matmul %45, %46, %cst_65 {dimension_numbers = #tpu.dot_dimension_numbers<[1], [0], [0], [1], [0, 0, 1, 1], [], []>} : vector<64x1152xbf16>, vector<1152x128xbf16>, vector<64x128xf32> -> vector<64x128xf32>
    %c0_66 = arith.constant 0 : index
    %c0_67 = arith.constant 0 : index
    %48 = vector.load %arg3[%c0_66, %c0_67] : memref<1x128xf32, #tpu.memory_space<vmem>>, vector<1x128xf32>
    %49 = vector.broadcast %48 : vector<1x128xf32> to vector<64x128xf32>
    %50 = arith.mulf %47, %49 : vector<64x128xf32>
    %c0_68 = arith.constant 0 : index
    %c0_69 = arith.constant 0 : index
    %51 = vector.load %arg4[%c0_68, %c0_69] : memref<1x128xf32, #tpu.memory_space<vmem>>, vector<1x128xf32>
    %52 = vector.broadcast %51 : vector<1x128xf32> to vector<64x128xf32>
    %53 = arith.addf %50, %52 : vector<64x128xf32>
    %cst_70 = arith.constant 0.000000e+00 : f32
    %54 = vector.broadcast %cst_70 : f32 to vector<64x128xf32>
    %55 = arith.maximumf %53, %54 : vector<64x128xf32>
    %cst_71 = arith.constant 0.000000e+00 : bf16
    %56 = vector.broadcast %cst_71 : bf16 to vector<1x17x128xbf16>
    %c0_72 = arith.constant 0 : index
    %c0_73 = arith.constant 0 : index
    %c0_74 = arith.constant 0 : index
    %57 = vector.load %arg10[%c0_72, %c0_73, %c0_74] : memref<10x17x128xbf16, #tpu.memory_space<vmem>>, vector<1x17x128xbf16>
    tpu.vector_store %arg10[%c0_72, %c0_73, %c0_74], %56 {strides = array<i32>} : memref<10x17x128xbf16, #tpu.memory_space<vmem>>, vector<1x17x128xbf16>,
    %c9_75 = arith.constant 9 : index
    %c0_76 = arith.constant 0 : index
    %c0_77 = arith.constant 0 : index
    %58 = vector.load %arg10[%c9_75, %c0_76, %c0_77] : memref<10x17x128xbf16, #tpu.memory_space<vmem>>, vector<1x17x128xbf16>
    tpu.vector_store %arg10[%c9_75, %c0_76, %c0_77], %56 {strides = array<i32>} : memref<10x17x128xbf16, #tpu.memory_space<vmem>>, vector<1x17x128xbf16>,
    %cst_78 = arith.constant 0.000000e+00 : bf16
    %59 = vector.broadcast %cst_78 : bf16 to vector<8x1x128xbf16>
    %c1_79 = arith.constant 1 : index
    %c7_80 = arith.constant 7 : index
    %c0_81 = arith.constant 0 : index
    %60 = vector.load %arg10[%c1_79, %c7_80, %c0_81] : memref<10x17x128xbf16, #tpu.memory_space<vmem>>, vector<8x1x128xbf16>
    tpu.vector_store %arg10[%c1_79, %c7_80, %c0_81], %59 {strides = array<i32>} : memref<10x17x128xbf16, #tpu.memory_space<vmem>>, vector<8x1x128xbf16>,
    %c1_82 = arith.constant 1 : index
    %c16_83 = arith.constant 16 : index
    %c0_84 = arith.constant 0 : index
    %61 = vector.load %arg10[%c1_82, %c16_83, %c0_84] : memref<10x17x128xbf16, #tpu.memory_space<vmem>>, vector<8x1x128xbf16>
    tpu.vector_store %arg10[%c1_82, %c16_83, %c0_84], %59 {strides = array<i32>} : memref<10x17x128xbf16, #tpu.memory_space<vmem>>, vector<8x1x128xbf16>,
    %62 = arith.truncf %55 : vector<64x128xf32> to vector<64x128xbf16>
    %63 = vector.shape_cast %62 : vector<64x128xbf16> to vector<8x8x128xbf16>
    %c1_85 = arith.constant 1 : index
    %c8_86 = arith.constant 8 : index
    %c0_87 = arith.constant 0 : index
    %64 = vector.load %arg10[%c1_85, %c8_86, %c0_87] : memref<10x17x128xbf16, #tpu.memory_space<vmem>>, vector<8x8x128xbf16>
    tpu.vector_store %arg10[%c1_85, %c8_86, %c0_87], %63 {strides = array<i32>} : memref<10x17x128xbf16, #tpu.memory_space<vmem>>, vector<8x8x128xbf16>,
    %c0_88 = arith.constant 0 : index
    %c7_89 = arith.constant 7 : index
    %c0_90 = arith.constant 0 : index
    %65 = vector.load %arg10[%c0_88, %c7_89, %c0_90] : memref<10x17x128xbf16, #tpu.memory_space<vmem>>, vector<8x8x128xbf16>
    %66 = vector.shape_cast %65 : vector<8x8x128xbf16> to vector<64x128xbf16>
    %c0_91 = arith.constant 0 : index
    %c0_92 = arith.constant 0 : index
    %67 = vector.load %arg12[%c0_91, %c0_92] : memref<64x1152xbf16, #tpu.memory_space<vmem>>, vector<64x128xbf16>
    tpu.vector_store %arg12[%c0_91, %c0_92], %66 {strides = array<i32>} : memref<64x1152xbf16, #tpu.memory_space<vmem>>, vector<64x128xbf16>,
    %c0_93 = arith.constant 0 : index
    %c8_94 = arith.constant 8 : index
    %c0_95 = arith.constant 0 : index
    %68 = vector.load %arg10[%c0_93, %c8_94, %c0_95] : memref<10x17x128xbf16, #tpu.memory_space<vmem>>, vector<8x8x128xbf16>
    %69 = vector.shape_cast %68 : vector<8x8x128xbf16> to vector<64x128xbf16>
    %c0_96 = arith.constant 0 : index
    %c128_97 = arith.constant 128 : index
    %70 = vector.load %arg12[%c0_96, %c128_97] : memref<64x1152xbf16, #tpu.memory_space<vmem>>, vector<64x128xbf16>
    tpu.vector_store %arg12[%c0_96, %c128_97], %69 {strides = array<i32>} : memref<64x1152xbf16, #tpu.memory_space<vmem>>, vector<64x128xbf16>,
    %c0_98 = arith.constant 0 : index
    %c9_99 = arith.constant 9 : index
    %c0_100 = arith.constant 0 : index
    %71 = vector.load %arg10[%c0_98, %c9_99, %c0_100] : memref<10x17x128xbf16, #tpu.memory_space<vmem>>, vector<8x8x128xbf16>
    %72 = vector.shape_cast %71 : vector<8x8x128xbf16> to vector<64x128xbf16>
    %c0_101 = arith.constant 0 : index
    %c256_102 = arith.constant 256 : index
    %73 = vector.load %arg12[%c0_101, %c256_102] : memref<64x1152xbf16, #tpu.memory_space<vmem>>, vector<64x128xbf16>
    tpu.vector_store %arg12[%c0_101, %c256_102], %72 {strides = array<i32>} : memref<64x1152xbf16, #tpu.memory_space<vmem>>, vector<64x128xbf16>,
    %c1_103 = arith.constant 1 : index
    %c7_104 = arith.constant 7 : index
    %c0_105 = arith.constant 0 : index
    %74 = vector.load %arg10[%c1_103, %c7_104, %c0_105] : memref<10x17x128xbf16, #tpu.memory_space<vmem>>, vector<8x8x128xbf16>
    %75 = vector.shape_cast %74 : vector<8x8x128xbf16> to vector<64x128xbf16>
    %c0_106 = arith.constant 0 : index
    %c384_107 = arith.constant 384 : index
    %76 = vector.load %arg12[%c0_106, %c384_107] : memref<64x1152xbf16, #tpu.memory_space<vmem>>, vector<64x128xbf16>
    tpu.vector_store %arg12[%c0_106, %c384_107], %75 {strides = array<i32>} : memref<64x1152xbf16, #tpu.memory_space<vmem>>, vector<64x128xbf16>,
    %c1_108 = arith.constant 1 : index
    %c8_109 = arith.constant 8 : index
    %c0_110 = arith.constant 0 : index
    %77 = vector.load %arg10[%c1_108, %c8_109, %c0_110] : memref<10x17x128xbf16, #tpu.memory_space<vmem>>, vector<8x8x128xbf16>
    %78 = vector.shape_cast %77 : vector<8x8x128xbf16> to vector<64x128xbf16>
    %c0_111 = arith.constant 0 : index
    %c512_112 = arith.constant 512 : index
    %79 = vector.load %arg12[%c0_111, %c512_112] : memref<64x1152xbf16, #tpu.memory_space<vmem>>, vector<64x128xbf16>
    tpu.vector_store %arg12[%c0_111, %c512_112], %78 {strides = array<i32>} : memref<64x1152xbf16, #tpu.memory_space<vmem>>, vector<64x128xbf16>,
    %c1_113 = arith.constant 1 : index
    %c9_114 = arith.constant 9 : index
    %c0_115 = arith.constant 0 : index
    %80 = vector.load %arg10[%c1_113, %c9_114, %c0_115] : memref<10x17x128xbf16, #tpu.memory_space<vmem>>, vector<8x8x128xbf16>
    %81 = vector.shape_cast %80 : vector<8x8x128xbf16> to vector<64x128xbf16>
    %c0_116 = arith.constant 0 : index
    %c640_117 = arith.constant 640 : index
    %82 = vector.load %arg12[%c0_116, %c640_117] : memref<64x1152xbf16, #tpu.memory_space<vmem>>, vector<64x128xbf16>
    tpu.vector_store %arg12[%c0_116, %c640_117], %81 {strides = array<i32>} : memref<64x1152xbf16, #tpu.memory_space<vmem>>, vector<64x128xbf16>,
    %c2_118 = arith.constant 2 : index
    %c7_119 = arith.constant 7 : index
    %c0_120 = arith.constant 0 : index
    %83 = vector.load %arg10[%c2_118, %c7_119, %c0_120] : memref<10x17x128xbf16, #tpu.memory_space<vmem>>, vector<8x8x128xbf16>
    %84 = vector.shape_cast %83 : vector<8x8x128xbf16> to vector<64x128xbf16>
    %c0_121 = arith.constant 0 : index
    %c768_122 = arith.constant 768 : index
    %85 = vector.load %arg12[%c0_121, %c768_122] : memref<64x1152xbf16, #tpu.memory_space<vmem>>, vector<64x128xbf16>
    tpu.vector_store %arg12[%c0_121, %c768_122], %84 {strides = array<i32>} : memref<64x1152xbf16, #tpu.memory_space<vmem>>, vector<64x128xbf16>,
    %c2_123 = arith.constant 2 : index
    %c8_124 = arith.constant 8 : index
    %c0_125 = arith.constant 0 : index
    %86 = vector.load %arg10[%c2_123, %c8_124, %c0_125] : memref<10x17x128xbf16, #tpu.memory_space<vmem>>, vector<8x8x128xbf16>
    %87 = vector.shape_cast %86 : vector<8x8x128xbf16> to vector<64x128xbf16>
    %c0_126 = arith.constant 0 : index
    %c896_127 = arith.constant 896 : index
    %88 = vector.load %arg12[%c0_126, %c896_127] : memref<64x1152xbf16, #tpu.memory_space<vmem>>, vector<64x128xbf16>
    tpu.vector_store %arg12[%c0_126, %c896_127], %87 {strides = array<i32>} : memref<64x1152xbf16, #tpu.memory_space<vmem>>, vector<64x128xbf16>,
    %c2_128 = arith.constant 2 : index
    %c9_129 = arith.constant 9 : index
    %c0_130 = arith.constant 0 : index
    %89 = vector.load %arg10[%c2_128, %c9_129, %c0_130] : memref<10x17x128xbf16, #tpu.memory_space<vmem>>, vector<8x8x128xbf16>
    %90 = vector.shape_cast %89 : vector<8x8x128xbf16> to vector<64x128xbf16>
    %c0_131 = arith.constant 0 : index
    %c1024_132 = arith.constant 1024 : index
    %91 = vector.load %arg12[%c0_131, %c1024_132] : memref<64x1152xbf16, #tpu.memory_space<vmem>>, vector<64x128xbf16>
    tpu.vector_store %arg12[%c0_131, %c1024_132], %90 {strides = array<i32>} : memref<64x1152xbf16, #tpu.memory_space<vmem>>, vector<64x128xbf16>,
    %c0_133 = arith.constant 0 : index
    %c0_134 = arith.constant 0 : index
    %92 = vector.load %arg12[%c0_133, %c0_134] : memref<64x1152xbf16, #tpu.memory_space<vmem>>, vector<64x1152xbf16>
    %c0_135 = arith.constant 0 : index
    %c0_136 = arith.constant 0 : index
    %93 = vector.load %arg5[%c0_135, %c0_136] : memref<1152x128xbf16, #tpu.memory_space<vmem>>, vector<1152x128xbf16>
    %cst_137 = arith.constant dense<0.000000e+00> : vector<64x128xf32>
    %94 = tpu.matmul %92, %93, %cst_137 {dimension_numbers = #tpu.dot_dimension_numbers<[1], [0], [0], [1], [0, 0, 1, 1], [], []>} : vector<64x1152xbf16>, vector<1152x128xbf16>, vector<64x128xf32> -> vector<64x128xf32>
    %c0_138 = arith.constant 0 : index
    %c0_139 = arith.constant 0 : index
    %95 = vector.load %arg6[%c0_138, %c0_139] : memref<1x128xf32, #tpu.memory_space<vmem>>, vector<1x128xf32>
    %96 = vector.broadcast %95 : vector<1x128xf32> to vector<64x128xf32>
    %97 = arith.mulf %94, %96 : vector<64x128xf32>
    %c0_140 = arith.constant 0 : index
    %c0_141 = arith.constant 0 : index
    %98 = vector.load %arg7[%c0_140, %c0_141] : memref<1x128xf32, #tpu.memory_space<vmem>>, vector<1x128xf32>
    %99 = vector.broadcast %98 : vector<1x128xf32> to vector<64x128xf32>
    %100 = arith.addf %97, %99 : vector<64x128xf32>
    %cst_142 = arith.constant 0.000000e+00 : f32
    %101 = vector.broadcast %cst_142 : f32 to vector<64x128xf32>
    %102 = arith.maximumf %100, %101 : vector<64x128xf32>
    %103 = vector.shape_cast %102 : vector<64x128xf32> to vector<8x8x128xf32>
    %c0_143 = arith.constant 0 : index
    %c0_144 = arith.constant 0 : index
    %c0_145 = arith.constant 0 : index
    %c0_146 = arith.constant 0 : index
    %104 = vector.load %arg8[%c0_143, %c0_144, %c0_145, %c0_146] : memref<1x8x8x128xf32, #tpu.memory_space<vmem>>, vector<1x8x8x128xf32>
    %105 = vector.shape_cast %104 : vector<1x8x8x128xf32> to vector<8x8x128xf32>
    %106 = vector.shape_cast %103 : vector<8x8x128xf32> to vector<1x8x8x128xf32>
    tpu.vector_store %arg8[%c0_143, %c0_144, %c0_145, %c0_146], %106 {strides = array<i32>} : memref<1x8x8x128xf32, #tpu.memory_space<vmem>>, vector<1x8x8x128xf32>,
    return
  }
  func.func @transform_0(%arg0: i32) -> (i32, i32, i32, i32) {
    %c0_i32 = arith.constant 0 : i32
    %c0_i32_0 = arith.constant 0 : i32
    %c0_i32_1 = arith.constant 0 : i32
    %c0_i32_2 = arith.constant 0 : i32
    return %arg0, %c0_i32, %c0_i32_0, %c0_i32_1 : i32, i32, i32, i32
  }
  func.func @transform_1(%arg0: i32) -> (i32, i32) {
    %c0_i32 = arith.constant 0 : i32
    %c0_i32_0 = arith.constant 0 : i32
    %c0_i32_1 = arith.constant 0 : i32
    return %c0_i32, %c0_i32_0 : i32, i32
  }
  func.func @transform_2(%arg0: i32) -> (i32, i32) {
    %c0_i32 = arith.constant 0 : i32
    %c0_i32_0 = arith.constant 0 : i32
    %c0_i32_1 = arith.constant 0 : i32
    return %c0_i32, %c0_i32_0 : i32, i32
  }
  func.func @transform_3(%arg0: i32) -> (i32, i32) {
    %c0_i32 = arith.constant 0 : i32
    %c0_i32_0 = arith.constant 0 : i32
    %c0_i32_1 = arith.constant 0 : i32
    return %c0_i32, %c0_i32_0 : i32, i32
  }
  func.func @transform_4(%arg0: i32) -> (i32, i32) {
    %c0_i32 = arith.constant 0 : i32
    %c0_i32_0 = arith.constant 0 : i32
    %c0_i32_1 = arith.constant 0 : i32
    return %c0_i32, %c0_i32_0 : i32, i32
  }
  func.func @transform_5(%arg0: i32) -> (i32, i32) {
    %c0_i32 = arith.constant 0 : i32
    %c0_i32_0 = arith.constant 0 : i32
    %c0_i32_1 = arith.constant 0 : i32
    return %c0_i32, %c0_i32_0 : i32, i32
  }
  func.func @transform_6(%arg0: i32) -> (i32, i32) {
    %c0_i32 = arith.constant 0 : i32
    %c0_i32_0 = arith.constant 0 : i32
    %c0_i32_1 = arith.constant 0 : i32
    return %c0_i32, %c0_i32_0 : i32, i32
  }
  func.func @transform_7(%arg0: i32) -> (i32, i32, i32, i32) {
    %c0_i32 = arith.constant 0 : i32
    %c0_i32_0 = arith.constant 0 : i32
    %c0_i32_1 = arith.constant 0 : i32
    %c0_i32_2 = arith.constant 0 : i32
    return %arg0, %c0_i32, %c0_i32_0, %c0_i32_1 : i32, i32, i32, i32
  }
}

</mosaic_0001>

<llo_original>
// kernel: tpu_custom_call.1
$region0: #{tpu_custom_call.1}
  #allocation0 [shape = 'u32[]', space=smem, size = 0x4, offset = 0x4, fixed_abs, tag = 'smem constant byte address 0x4 - core index']
  #allocation1 [shape = 'u32[144,128]{1,0:T(1,128)}', space=vmem, size = 0x12000, scoped, tag = 'internal scratch']
  #allocation2 [shape = 'bf16[10,17,128]{2,1,0:T(8,128)(2,1)}', space=vmem, size = 0xf000, scoped, tag = 'scratch operand']
  #allocation3 [shape = 'bf16[10,17,128]{2,1,0:T(8,128)(2,1)}', space=vmem, size = 0xf000, scoped, tag = 'scratch operand']
  #allocation4 [shape = 'bf16[64,1152]{1,0:T(8,128)(2,1)}', space=vmem, size = 0x24000, scoped, tag = 'scratch operand']
  #allocation5 [shape = 'bf16[64,1152]{1,0:T(8,128)(2,1)}', space=vmem, size = 0x24000, scoped, tag = 'scratch operand']
  %s0 = inlined_call_operand.hbm [shape: bf16[2,32,8,128], index: 0, kind: input, shape index: {}]
  %s1 = inlined_call_operand.hbm [shape: bf16[1152,128], index: 1, kind: input, shape index: {}]
  %s2 = inlined_call_operand.vmem [shape: f32[1,128], index: 2, kind: input, shape index: {}]
  %s3 = inlined_call_operand.vmem [shape: f32[1,128], index: 3, kind: input, shape index: {}]
  %s4 = inlined_call_operand.hbm [shape: bf16[1152,128], index: 4, kind: input, shape index: {}]
  %s5 = inlined_call_operand.vmem [shape: f32[1,128], index: 5, kind: input, shape index: {}]
  %s6 = inlined_call_operand.vmem [shape: f32[1,128], index: 6, kind: input, shape index: {}]
  %s7 = inlined_call_operand.hbm [shape: f32[2,8,8,128], index: 7, kind: output, shape index: {}]
  %s8 = sld [smem:[#allocation0]]
  $region73: #{tpu_custom_call.1} parent=0
    _
  %s10 = ssub.s32 1, %s8
  %s11 = scalar_select 0, %s10, %s8
  $region1: #{tpu_custom_call.1} parent=0
    #allocation6 [shape = 'u8[131072]{0}', space=vmem, size = 0x20000, scoped, tag = 'input window, operand 0']
    #allocation7 [shape = 's32[2]{0}', space=sflag, size = 0x8, scoped, tag = 'scoped memory for tpu_custom_call.1']
    #allocation8 [shape = 's32[2]{0}', space=sflag, size = 0x8, scoped, tag = 'scoped memory for tpu_custom_call.1']
    #allocation9 [shape = 'u8[294912]{0}', space=vmem, size = 0x48000, scoped, tag = 'input window, operand 1, single buffered']
    #allocation10 [shape = 's32[1]{0}', space=sflag, size = 0x4, scoped, tag = 'scoped memory for tpu_custom_call.1']
    #allocation11 [shape = 'u8[294912]{0}', space=vmem, size = 0x48000, scoped, tag = 'input window, operand 4, single buffered']
    #allocation12 [shape = 'u8[65536]{0}', space=vmem, size = 0x10000, scoped, tag = 'output window, operand 0']
    %12 = vsyncpa [#allocation7], 0
    %s13 = scalar_lea.sflag [#allocation7], 1
    %14 = vsyncpa %s13, 0
    %15 = vsyncpa [#allocation10], 0
    %16 = vsyncpa [#allocation8], 0
    %s17 = scalar_lea.sflag [#allocation8], 1
    %18 = vsyncpa %s17, 0
    loop: start=0, step=1, limit=4
    $region2: #{tpu_custom_call.1} parent=1 // loop_pre_header
      _
    $region3: #{tpu_custom_call.1} parent=1 // loop_header
      %s20 = sphi 0, %s24
      %p21 = scmp.ge.s32.totalorder %s20, 4
      %s30 = sphi 0, %s32
      %s33 = sphi 0, %s30
      %s34 = sphi 0, %s33
      %s50 = sphi 0, %s34
      %s54 = sphi 0, %s54
      %s56 = sphi 0, %s54
      %s57 = sphi 0, %s56
      %s71 = sphi 0, %s57
      %s75 = sphi 0, %s75
      %s77 = sphi 0, %s75
      %s78 = sphi 0, %s77
      %s92 = sphi 0, %s78
      %s96 = sphi 0, %s96
      %s98 = sphi 0, %s96
      %s99 = sphi 0, %s98
      %s113 = sphi 0, %s99
      %s117 = sphi 0, %s117
      %s119 = sphi 0, %s117
      %s120 = sphi 0, %s119
      %s134 = sphi 0, %s120
      %s138 = sphi 0, %s138
      %s140 = sphi 0, %s138
      %s141 = sphi 0, %s140
      %s155 = sphi 0, %s141
      %s159 = sphi 0, %s159
      %s161 = sphi 0, %s159
      %s162 = sphi 0, %s161
      %s176 = sphi 0, %s162
      %s182 = sphi 0, %s184
      %s185 = sphi 0, %s182
      %s186 = sphi 0, %s185
      %s202 = sphi 0, %s186
    $region4: #{tpu_custom_call.1} parent=1 // loop_header_branch
      %23 = sbr.rel (%p21) target = $region8
    $region5: #{tpu_custom_call.1} parent=1 // loop_body
      %s25 = ssub.s32 %s20, 1
      %s26 = ssub.s32 %s20, 2
      %s27 = sadd.s32 %s20, 1
      %s28 = ssub.s32 %s20, %s27
      %p29 = scmp.eq.s32.totalorder %s28, 0
      %s31 = sadd.s32 %s30, 1
      %s32 = scalar_select %p29, %s30, %s31
      %p35 = pneg %p29
      %p36 = scmp.eq.s32.totalorder %s20, 1
      %p37 = por %p35, %p36
      %p38 = scmp.ne.s32.totalorder %s30, %s33
      %p39 = scmp.eq.s32.totalorder %s20, 0
      %p40 = por %p38, %p39
      %p41 = scmp.ne.s32.totalorder %s30, %s33
      %p42 = scmp.eq.s32.totalorder %s25, 1
      %p43 = por %p41, %p42
      %p44 = scmp.ne.s32.totalorder %s33, %s34
      %p45 = scmp.eq.s32.totalorder %s25, 0
      %p46 = por %p44, %p45
      %p47 = scmp.ne.s32.totalorder %s33, %s34
      %p48 = scmp.eq.s32.totalorder %s26, 1
      %p49 = por %p47, %p48
      %p51 = scmp.ne.s32.totalorder %s34, %s50
      %p52 = scmp.eq.s32.totalorder %s26, 0
      %p53 = por %p51, %p52
      %s55 = sadd.s32 %s54, 1
      %p58 = scmp.eq.s32.totalorder %s20, 1
      %p59 = scmp.ne.s32.totalorder %s54, %s56
      %p60 = scmp.eq.s32.totalorder %s20, 0
      %p61 = por %p59, %p60
      %p62 = scmp.ne.s32.totalorder %s54, %s56
      %p63 = scmp.eq.s32.totalorder %s25, 1
      %p64 = por %p62, %p63
      %p65 = scmp.ne.s32.totalorder %s56, %s57
      %p66 = scmp.eq.s32.totalorder %s25, 0
      %p67 = por %p65, %p66
      %p68 = scmp.ne.s32.totalorder %s56, %s57
      %p69 = scmp.eq.s32.totalorder %s26, 1
      %p70 = por %p68, %p69
      %p72 = scmp.ne.s32.totalorder %s57, %s71
      %p73 = scmp.eq.s32.totalorder %s26, 0
      %p74 = por %p72, %p73
      %s76 = sadd.s32 %s75, 1
      %p79 = scmp.eq.s32.totalorder %s20, 1
      %p80 = scmp.ne.s32.totalorder %s75, %s77
      %p81 = scmp.eq.s32.totalorder %s20, 0
      %p82 = por %p80, %p81
      %p83 = scmp.ne.s32.totalorder %s75, %s77
      %p84 = scmp.eq.s32.totalorder %s25, 1
      %p85 = por %p83, %p84
      %p86 = scmp.ne.s32.totalorder %s77, %s78
      %p87 = scmp.eq.s32.totalorder %s25, 0
      %p88 = por %p86, %p87
      %p89 = scmp.ne.s32.totalorder %s77, %s78
      %p90 = scmp.eq.s32.totalorder %s26, 1
      %p91 = por %p89, %p90
      %p93 = scmp.ne.s32.totalorder %s78, %s92
      %p94 = scmp.eq.s32.totalorder %s26, 0
      %p95 = por %p93, %p94
      %s97 = sadd.s32 %s96, 1
      %p100 = scmp.eq.s32.totalorder %s20, 1
      %p101 = scmp.ne.s32.totalorder %s96, %s98
      %p102 = scmp.eq.s32.totalorder %s20, 0
      %p103 = por %p101, %p102
      %p104 = scmp.ne.s32.totalorder %s96, %s98
      %p105 = scmp.eq.s32.totalorder %s25, 1
      %p106 = por %p104, %p105
      %p107 = scmp.ne.s32.totalorder %s98, %s99
      %p108 = scmp.eq.s32.totalorder %s25, 0
      %p109 = por %p107, %p108
      %p110 = scmp.ne.s32.totalorder %s98, %s99
      %p111 = scmp.eq.s32.totalorder %s26, 1
      %p112 = por %p110, %p111
      %p114 = scmp.ne.s32.totalorder %s99, %s113
      %p115 = scmp.eq.s32.totalorder %s26, 0
      %p116 = por %p114, %p115
      %s118 = sadd.s32 %s117, 1
      %p121 = scmp.eq.s32.totalorder %s20, 1
      %p122 = scmp.ne.s32.totalorder %s117, %s119
      %p123 = scmp.eq.s32.totalorder %s20, 0
      %p124 = por %p122, %p123
      %p125 = scmp.ne.s32.totalorder %s117, %s119
      %p126 = scmp.eq.s32.totalorder %s25, 1
      %p127 = por %p125, %p126
      %p128 = scmp.ne.s32.totalorder %s119, %s120
      %p129 = scmp.eq.s32.totalorder %s25, 0
      %p130 = por %p128, %p129
      %p131 = scmp.ne.s32.totalorder %s119, %s120
      %p132 = scmp.eq.s32.totalorder %s26, 1
      %p133 = por %p131, %p132
      %p135 = scmp.ne.s32.totalorder %s120, %s134
      %p136 = scmp.eq.s32.totalorder %s26, 0
      %p137 = por %p135, %p136
      %s139 = sadd.s32 %s138, 1
      %p142 = scmp.eq.s32.totalorder %s20, 1
      %p143 = scmp.ne.s32.totalorder %s138, %s140
      %p144 = scmp.eq.s32.totalorder %s20, 0
      %p145 = por %p143, %p144
      %p146 = scmp.ne.s32.totalorder %s138, %s140
      %p147 = scmp.eq.s32.totalorder %s25, 1
      %p148 = por %p146, %p147
      %p149 = scmp.ne.s32.totalorder %s140, %s141
      %p150 = scmp.eq.s32.totalorder %s25, 0
      %p151 = por %p149, %p150
      %p152 = scmp.ne.s32.totalorder %s140, %s141
      %p153 = scmp.eq.s32.totalorder %s26, 1
      %p154 = por %p152, %p153
      %p156 = scmp.ne.s32.totalorder %s141, %s155
      %p157 = scmp.eq.s32.totalorder %s26, 0
      %p158 = por %p156, %p157
      %s160 = sadd.s32 %s159, 1
      %p163 = scmp.eq.s32.totalorder %s20, 1
      %p164 = scmp.ne.s32.totalorder %s159, %s161
      %p165 = scmp.eq.s32.totalorder %s20, 0
      %p166 = por %p164, %p165
      %p167 = scmp.ne.s32.totalorder %s159, %s161
      %p168 = scmp.eq.s32.totalorder %s25, 1
      %p169 = por %p167, %p168
      %p170 = scmp.ne.s32.totalorder %s161, %s162
      %p171 = scmp.eq.s32.totalorder %s25, 0
      %p172 = por %p170, %p171
      %p173 = scmp.ne.s32.totalorder %s161, %s162
      %p174 = scmp.eq.s32.totalorder %s26, 1
      %p175 = por %p173, %p174
      %p177 = scmp.ne.s32.totalorder %s162, %s176
      %p178 = scmp.eq.s32.totalorder %s26, 0
      %p179 = por %p177, %p178
      %s180 = ssub.s32 %s20, %s27
      %p181 = scmp.eq.s32.totalorder %s180, 0
      %s183 = sadd.s32 %s182, 1
      %s184 = scalar_select %p181, %s182, %s183
      %p187 = pneg %p181
      %p188 = scmp.eq.s32.totalorder %s20, 1
      %p189 = por %p187, %p188
      %p190 = scmp.ne.s32.totalorder %s182, %s185
      %p191 = scmp.eq.s32.totalorder %s20, 0
      %p192 = por %p190, %p191
      %p193 = scmp.ne.s32.totalorder %s182, %s185
      %p194 = scmp.eq.s32.totalorder %s25, 1
      %p195 = por %p193, %p194
      %p196 = scmp.ne.s32.totalorder %s185, %s186
      %p197 = scmp.eq.s32.totalorder %s25, 0
      %p198 = por %p196, %p197
      %p199 = scmp.ne.s32.totalorder %s185, %s186
      %p200 = scmp.eq.s32.totalorder %s26, 1
      %p201 = por %p199, %p200
      %p203 = scmp.ne.s32.totalorder %s186, %s202
      %p204 = scmp.eq.s32.totalorder %s26, 0
      %p205 = por %p203, %p204
      %p206 = scmp.le.s32.totalorder 1, %s20
      %p207 = scmp.lt.s32.totalorder %s20, 3
      %p208 = pnand %p206, %p207
      %p209 = pneg %p208
      // Predicated region
      $region9: #{tpu_custom_call.1} parent=5 // pred_check
        _
      $region10: #{tpu_custom_call.1} parent=5 // pred_check_branch
        %211 = sbr.rel (%p208) target = $region12
      $region11: #{tpu_custom_call.1} parent=5 // pred_region
        %s212 = ssub.s32 %s20, 1
        // Predicated region
        $region13: #{tpu_custom_call.1} parent=11 // pred_check
          %p213 = pneg %p67
        $region14: #{tpu_custom_call.1} parent=11 // pred_check_branch
          %215 = sbr.rel (%p213) target = $region16
        $region15: #{tpu_custom_call.1} parent=11 // pred_region
          %s217 = ssub.s32 9216, 9216
          %218 = vsyncadd [#allocation10], %s217
          %s219 = sshll.u32 [#allocation9], 4
          %s220 = int_to_ptr.vmem [resolvable:$true] %s219
          %225 = dma.hbm_to_vmem [thread:$0]  %s1, 9216, %s220, [#allocation10], 64, 64, 4
        $region16: #{tpu_custom_call.1} parent=11 // pred_fallthru
          _
        // Predicated region
        $region17: #{tpu_custom_call.1} parent=11 // pred_check
          %p226 = pneg %p88
        $region18: #{tpu_custom_call.1} parent=11 // pred_check_branch
          %228 = sbr.rel (%p226) target = $region20
        $region19: #{tpu_custom_call.1} parent=11 // pred_region
          _
        $region20: #{tpu_custom_call.1} parent=11 // pred_fallthru
          _
        // Predicated region
        $region21: #{tpu_custom_call.1} parent=11 // pred_check
          %p229 = pneg %p109
        $region22: #{tpu_custom_call.1} parent=11 // pred_check_branch
          %231 = sbr.rel (%p229) target = $region24
        $region23: #{tpu_custom_call.1} parent=11 // pred_region
          _
        $region24: #{tpu_custom_call.1} parent=11 // pred_fallthru
          _
        // Predicated region
        $region25: #{tpu_custom_call.1} parent=11 // pred_check
          %p232 = pneg %p130
        $region26: #{tpu_custom_call.1} parent=11 // pred_check_branch
          %234 = sbr.rel (%p232) target = $region28
        $region27: #{tpu_custom_call.1} parent=11 // pred_region
          %s236 = ssub.s32 9216, 9216
          %237 = vsyncadd [#allocation10], %s236
          %s238 = sshll.u32 [#allocation11], 4
          %s239 = int_to_ptr.vmem [resolvable:$true] %s238
          %244 = dma.hbm_to_vmem [thread:$0]  %s4, 9216, %s239, [#allocation10], 64, 64, 4
        $region28: #{tpu_custom_call.1} parent=11 // pred_fallthru
          _
        // Predicated region
        $region29: #{tpu_custom_call.1} parent=11 // pred_check
          %p245 = pneg %p151
        $region30: #{tpu_custom_call.1} parent=11 // pred_check_branch
          %247 = sbr.rel (%p245) target = $region32
        $region31: #{tpu_custom_call.1} parent=11 // pred_region
          _
        $region32: #{tpu_custom_call.1} parent=11 // pred_fallthru
          _
        // Predicated region
        $region33: #{tpu_custom_call.1} parent=11 // pred_check
          %p248 = pneg %p172
        $region34: #{tpu_custom_call.1} parent=11 // pred_check_branch
          %250 = sbr.rel (%p248) target = $region36
        $region35: #{tpu_custom_call.1} parent=11 // pred_region
          _
        $region36: #{tpu_custom_call.1} parent=11 // pred_fallthru
          _
      $region12: #{tpu_custom_call.1} parent=5 // pred_fallthru
        _
      %p251 = scmp.lt.s32.totalorder %s20, 2
      // Predicated region
      $region37: #{tpu_custom_call.1} parent=5 // pred_check
        %p252 = pneg %p251
      $region38: #{tpu_custom_call.1} parent=5 // pred_check_branch
        %254 = sbr.rel (%p252) target = $region40
      $region39: #{tpu_custom_call.1} parent=5 // pred_region
        // Predicated region
        $region41: #{tpu_custom_call.1} parent=39 // pred_check
          %p255 = pneg %p40
        $region42: #{tpu_custom_call.1} parent=39 // pred_check_branch
          %257 = sbr.rel (%p255) target = $region44
        $region43: #{tpu_custom_call.1} parent=39 // pred_region
          %s258 = sand.u32 %s30, 1
          %s259 = scalar_lea.sflag [#allocation7], %s258
          %s260 = sand.u32 %s30, 1
          %s261 = smul.addr %s260, 128
          %s262 = scalar_lea.vmem [#allocation6], %s261
          %s264 = ssub.s32 2048, 2048
          %265 = vsyncadd %s259, %s264
          %s266 = smul.addr %s20, 32
          %s267 = smul.addr %s266, 64
          %s268 = scalar_lea.hbm %s0, %s267
          %s269 = sshll.u32 %s262, 4
          %s270 = int_to_ptr.vmem [resolvable:$true] %s269
          %275 = dma.hbm_to_vmem [thread:$0]  %s268, 2048, %s270, %s259, 64, 64, 4
        $region44: #{tpu_custom_call.1} parent=39 // pred_fallthru
          _
      $region40: #{tpu_custom_call.1} parent=5 // pred_fallthru
        _
      %p276 = scmp.le.s32.totalorder 1, %s20
      %p277 = scmp.lt.s32.totalorder %s20, 3
      %p278 = pnand %p276, %p277
      %p279 = pneg %p278
      // Predicated region
      $region45: #{tpu_custom_call.1} parent=5 // pred_check
        _
      $region46: #{tpu_custom_call.1} parent=5 // pred_check_branch
        %281 = sbr.rel (%p278) target = $region48
      $region47: #{tpu_custom_call.1} parent=5 // pred_region
        %s282 = ssub.s32 %s20, 1
        %s283 = sand.u32 %s33, 1
        %s284 = scalar_lea.sflag [#allocation7], %s283
        %s285 = sand.u32 %s33, 1
        %s286 = smul.addr %s285, 128
        %s287 = scalar_lea.vmem [#allocation6], %s286
        // Predicated region
        $region49: #{tpu_custom_call.1} parent=47 // pred_check
          %p288 = pneg %p46
        $region50: #{tpu_custom_call.1} parent=47 // pred_check_branch
          %290 = sbr.rel (%p288) target = $region52
        $region51: #{tpu_custom_call.1} parent=47 // pred_region
          %291 = dma.done %s284, 2048
        $region52: #{tpu_custom_call.1} parent=47 // pred_fallthru
          _
        // Predicated region
        $region53: #{tpu_custom_call.1} parent=47 // pred_check
          %p292 = pneg %p67
        $region54: #{tpu_custom_call.1} parent=47 // pred_check_branch
          %294 = sbr.rel (%p292) target = $region56
        $region55: #{tpu_custom_call.1} parent=47 // pred_region
          %295 = dma.done [#allocation10], 9216
        $region56: #{tpu_custom_call.1} parent=47 // pred_fallthru
          _
        // Predicated region
        $region57: #{tpu_custom_call.1} parent=47 // pred_check
          %p296 = pneg %p130
        $region58: #{tpu_custom_call.1} parent=47 // pred_check_branch
          %298 = sbr.rel (%p296) target = $region60
        $region59: #{tpu_custom_call.1} parent=47 // pred_region
          %299 = dma.done [#allocation10], 9216
        $region60: #{tpu_custom_call.1} parent=47 // pred_fallthru
          _
        %s300 = sand.u32 %s33, 1
        %s301 = scalar_lea.sflag [#allocation7], %s300
        %s302 = sand.u32 %s33, 1
        %s303 = smul.addr %s302, 128
        %s304 = scalar_lea.vmem [#allocation6], %s303
        %p305 = pneg %p46
        %p306 = pneg %p43
        %p307 = pneg %p67
        %p308 = pneg %p64
        %p309 = pneg %p88
        %p310 = pneg %p85
        %p311 = pneg %p109
        %p312 = pneg %p106
        %p313 = pneg %p130
        %p314 = pneg %p127
        %p315 = pneg %p151
        %p316 = pneg %p148
        %p317 = pneg %p172
        %p318 = pneg %p169
        %p319 = pneg %p198
        %p320 = pneg %p195
        %s321 = sand.u32 %s185, 1
        %s322 = scalar_lea.sflag [#allocation8], %s321
        %s323 = sand.u32 %s185, 1
        %s324 = smul.addr %s323, 64
        %s325 = scalar_lea.vmem [#allocation12], %s324
        %v327 = vld [vmem:[%s287] sm:$0xf]
        %v328 = vld [vmem:[%s287 + $0x4] sm:$0xf]
        %v329 = vld [vmem:[%s287 + $0x8] sm:$0xf]
        %v330 = vld [vmem:[%s287 + $0xc] sm:$0xf]
        %v331 = vld [vmem:[%s287 + $0x10] sm:$0xf]
        %v332 = vld [vmem:[%s287 + $0x14] sm:$0xf]
        %v333 = vld [vmem:[%s287 + $0x18] sm:$0xf]
        %v334 = vld [vmem:[%s287 + $0x1c] sm:$0xf]
        %s335 = scalar_lea.vmem %s287, 32 [#allocation6]
        %v336 = vld [vmem:[%s335] sm:$0xf]
        %v337 = vld [vmem:[%s335 + $0x4] sm:$0xf]
        %v338 = vld [vmem:[%s335 + $0x8] sm:$0xf]
        %v339 = vld [vmem:[%s335 + $0xc] sm:$0xf]
        %v340 = vld [vmem:[%s335 + $0x10] sm:$0xf]
        %v341 = vld [vmem:[%s335 + $0x14] sm:$0xf]
        %v342 = vld [vmem:[%s335 + $0x18] sm:$0xf]
        %v343 = vld [vmem:[%s335 + $0x1c] sm:$0xf]
        %v344 = vmax.bf16 %v327, %v336
        %v345 = vmax.bf16 %v328, %v337
        %v346 = vmax.bf16 %v329, %v338
        %v347 = vmax.bf16 %v330, %v339
        %v348 = vmax.bf16 %v331, %v340
        %v349 = vmax.bf16 %v332, %v341
        %v350 = vmax.bf16 %v333, %v342
        %v351 = vmax.bf16 %v334, %v343
        %s352 = scalar_lea.vmem %s287, 64 [#allocation6]
        %v353 = vld [vmem:[%s352] sm:$0xf]
        %v354 = vld [vmem:[%s352 + $0x4] sm:$0xf]
        %v355 = vld [vmem:[%s352 + $0x8] sm:$0xf]
        %v356 = vld [vmem:[%s352 + $0xc] sm:$0xf]
        %v357 = vld [vmem:[%s352 + $0x10] sm:$0xf]
        %v358 = vld [vmem:[%s352 + $0x14] sm:$0xf]
        %v359 = vld [vmem:[%s352 + $0x18] sm:$0xf]
        %v360 = vld [vmem:[%s352 + $0x1c] sm:$0xf]
        %s361 = scalar_lea.vmem %s287, 96 [#allocation6]
        %v362 = vld [vmem:[%s361] sm:$0xf]
        %v363 = vld [vmem:[%s361 + $0x4] sm:$0xf]
        %v364 = vld [vmem:[%s361 + $0x8] sm:$0xf]
        %v365 = vld [vmem:[%s361 + $0xc] sm:$0xf]
        %v366 = vld [vmem:[%s361 + $0x10] sm:$0xf]
        %v367 = vld [vmem:[%s361 + $0x14] sm:$0xf]
        %v368 = vld [vmem:[%s361 + $0x18] sm:$0xf]
        %v369 = vld [vmem:[%s361 + $0x1c] sm:$0xf]
        %v370 = vmax.bf16 %v353, %v362
        %v371 = vmax.bf16 %v354, %v363
        %v372 = vmax.bf16 %v355, %v364
        %v373 = vmax.bf16 %v356, %v365
        %v374 = vmax.bf16 %v357, %v366
        %v375 = vmax.bf16 %v358, %v367
        %v376 = vmax.bf16 %v359, %v368
        %v377 = vmax.bf16 %v360, %v369
        %v378 = vmax.bf16 %v344, %v370
        %v379 = vmax.bf16 %v345, %v371
        %v380 = vmax.bf16 %v346, %v372
        %v381 = vmax.bf16 %v347, %v373
        %v382 = vmax.bf16 %v348, %v374
        %v383 = vmax.bf16 %v349, %v375
        %v384 = vmax.bf16 %v350, %v376
        %v385 = vmax.bf16 %v351, %v377
        %386 = vst [vmem:[#allocation2] sm:$0xf] 0
        %387 = vst [vmem:[#allocation2 + $0x4] sm:$0xf] 0
        %vm388 = vcmask 1040384
        %vm389 = vsmask.f32 256
        %vm390 = vmand %vm388, %vm389
        %v391 = vld [vmem:[#allocation2 + $0x8] sm:$0x1]
        %v392 = vsel %vm390, 0, %v391
        %393 = vst [vmem:[#allocation2 + $0x8] sm:$0x1] %v392
        %s394 = scalar_lea.vmem [#allocation2], 108
        %395 = vst [vmem:[%s394] sm:$0xf] 0
        %396 = vst [vmem:[%s394 + $0x4] sm:$0xf] 0
        %v397 = vld [vmem:[%s394 + $0x8] sm:$0x1]
        %v398 = vsel %vm390, 0, %v397
        %399 = vst [vmem:[%s394 + $0x8] sm:$0x1] %v398
        %s400 = scalar_lea.vmem [#allocation2], 12
        %vm401 = vcmask 1043459
        %vm402 = vsmask.f32 7950
        %vm403 = vmand %vm401, %vm402
        %v404 = vld [vmem:[%s400] sm:$0x8]
        %v405 = vsel %vm403, 0, %v404
        %406 = vst [vmem:[%s400] sm:$0x8] %v405
        %v407 = vld [vmem:[%s400 + $0xc] sm:$0x8]
        %v408 = vsel %vm403, 0, %v407
        %409 = vst [vmem:[%s400 + $0xc] sm:$0x8] %v408
        %v410 = vld [vmem:[%s400 + $0x18] sm:$0x8]
        %v411 = vsel %vm403, 0, %v410
        %412 = vst [vmem:[%s400 + $0x18] sm:$0x8] %v411
        %v413 = vld [vmem:[%s400 + $0x24] sm:$0x8]
        %v414 = vsel %vm403, 0, %v413
        %415 = vst [vmem:[%s400 + $0x24] sm:$0x8] %v414
        %v416 = vld [vmem:[%s400 + $0x30] sm:$0x8]
        %v417 = vsel %vm403, 0, %v416
        %418 = vst [vmem:[%s400 + $0x30] sm:$0x8] %v417
        %v419 = vld [vmem:[%s400 + $0x3c] sm:$0x8]
        %v420 = vsel %vm403, 0, %v419
        %421 = vst [vmem:[%s400 + $0x3c] sm:$0x8] %v420
        %v422 = vld [vmem:[%s400 + $0x48] sm:$0x8]
        %v423 = vsel %vm403, 0, %v422
        %424 = vst [vmem:[%s400 + $0x48] sm:$0x8] %v423
        %v425 = vld [vmem:[%s400 + $0x54] sm:$0x8]
        %v426 = vsel %vm403, 0, %v425
        %427 = vst [vmem:[%s400 + $0x54] sm:$0x8] %v426
        %v428 = vld [vmem:[%s400 + $0x8] sm:$0x1]
        %v429 = vsel %vm390, 0, %v428
        %430 = vst [vmem:[%s400 + $0x8] sm:$0x1] %v429
        %v431 = vld [vmem:[%s400 + $0x14] sm:$0x1]
        %v432 = vsel %vm390, 0, %v431
        %433 = vst [vmem:[%s400 + $0x14] sm:$0x1] %v432
        %v434 = vld [vmem:[%s400 + $0x20] sm:$0x1]
        %v435 = vsel %vm390, 0, %v434
        %436 = vst [vmem:[%s400 + $0x20] sm:$0x1] %v435
        %v437 = vld [vmem:[%s400 + $0x2c] sm:$0x1]
        %v438 = vsel %vm390, 0, %v437
        %439 = vst [vmem:[%s400 + $0x2c] sm:$0x1] %v438
        %v440 = vld [vmem:[%s400 + $0x38] sm:$0x1]
        %v441 = vsel %vm390, 0, %v440
        %442 = vst [vmem:[%s400 + $0x38] sm:$0x1] %v441
        %v443 = vld [vmem:[%s400 + $0x44] sm:$0x1]
        %v444 = vsel %vm390, 0, %v443
        %445 = vst [vmem:[%s400 + $0x44] sm:$0x1] %v444
        %v446 = vld [vmem:[%s400 + $0x50] sm:$0x1]
        %v447 = vsel %vm390, 0, %v446
        %448 = vst [vmem:[%s400 + $0x50] sm:$0x1] %v447
        %v449 = vld [vmem:[%s400 + $0x5c] sm:$0x1]
        %v450 = vsel %vm390, 0, %v449
        %451 = vst [vmem:[%s400 + $0x5c] sm:$0x1] %v450
        %452 = vst [vmem:[%s400 + $0x4] sm:$0xf] %v378
        %453 = vst [vmem:[%s400 + $0x10] sm:$0xf] %v379
        %454 = vst [vmem:[%s400 + $0x1c] sm:$0xf] %v380
        %455 = vst [vmem:[%s400 + $0x28] sm:$0xf] %v381
        %456 = vst [vmem:[%s400 + $0x34] sm:$0xf] %v382
        %457 = vst [vmem:[%s400 + $0x40] sm:$0xf] %v383
        %458 = vst [vmem:[%s400 + $0x4c] sm:$0xf] %v384
        %459 = vst [vmem:[%s400 + $0x58] sm:$0xf] %v385
        %v460 = vld [vmem:[#allocation2] sm:$0x8]
        %v461 = vld [vmem:[#allocation2 + $0x4] sm:$0xf]
        %v462 = vld [vmem:[#allocation2 + $0xc] sm:$0x8]
        %v463 = vld [vmem:[#allocation2 + $0x10] sm:$0xf]
        %v464 = vld [vmem:[#allocation2 + $0x18] sm:$0x8]
        %v465 = vld [vmem:[#allocation2 + $0x1c] sm:$0xf]
        %v466 = vld [vmem:[#allocation2 + $0x24] sm:$0x8]
        %v467 = vld [vmem:[#allocation2 + $0x28] sm:$0xf]
        %v468 = vld [vmem:[#allocation2 + $0x30] sm:$0x8]
        %v469 = vld [vmem:[#allocation2 + $0x34] sm:$0xf]
        %v470 = vld [vmem:[#allocation2 + $0x3c] sm:$0x8]
        %v471 = vld [vmem:[#allocation2 + $0x40] sm:$0xf]
        %v472 = vld [vmem:[#allocation2 + $0x48] sm:$0x8]
        %v473 = vld [vmem:[#allocation2 + $0x4c] sm:$0xf]
        %v474 = vld [vmem:[#allocation2 + $0x54] sm:$0x8]
        %v475 = vld [vmem:[#allocation2 + $0x58] sm:$0xf]
        %vm476 = vsmask.f32 4368
        %vm477 = vmor %vm389, %vm476
        %v479 = vshrl.u32 %v460, 16
        %v481 = vrot.slane %v479, 7
        %v482 = vrot.slane %v481, 4
        %v484 = vshrl.u32 %v461, 16
        %v486 = vrot.slane %v484, 7
        %v487 = vshll.u32 %v461, 16
        %v489 = vor.u32 %v486, %v487
        %v490 = vsel %vm477, %v482, %v489
        %v492 = vshrl.u32 %v462, 16
        %v494 = vrot.slane %v492, 7
        %v495 = vrot.slane %v494, 4
        %v497 = vshrl.u32 %v463, 16
        %v499 = vrot.slane %v497, 7
        %v500 = vshll.u32 %v463, 16
        %v502 = vor.u32 %v499, %v500
        %v503 = vsel %vm477, %v495, %v502
        %v505 = vshrl.u32 %v464, 16
        %v507 = vrot.slane %v505, 7
        %v508 = vrot.slane %v507, 4
        %v510 = vshrl.u32 %v465, 16
        %v512 = vrot.slane %v510, 7
        %v513 = vshll.u32 %v465, 16
        %v515 = vor.u32 %v512, %v513
        %v516 = vsel %vm477, %v508, %v515
        %v518 = vshrl.u32 %v466, 16
        %v520 = vrot.slane %v518, 7
        %v521 = vrot.slane %v520, 4
        %v523 = vshrl.u32 %v467, 16
        %v525 = vrot.slane %v523, 7
        %v526 = vshll.u32 %v467, 16
        %v528 = vor.u32 %v525, %v526
        %v529 = vsel %vm477, %v521, %v528
        %v531 = vshrl.u32 %v468, 16
        %v533 = vrot.slane %v531, 7
        %v534 = vrot.slane %v533, 4
        %v536 = vshrl.u32 %v469, 16
        %v538 = vrot.slane %v536, 7
        %v539 = vshll.u32 %v469, 16
        %v541 = vor.u32 %v538, %v539
        %v542 = vsel %vm477, %v534, %v541
        %v544 = vshrl.u32 %v470, 16
        %v546 = vrot.slane %v544, 7
        %v547 = vrot.slane %v546, 4
        %v549 = vshrl.u32 %v471, 16
        %v551 = vrot.slane %v549, 7
        %v552 = vshll.u32 %v471, 16
        %v554 = vor.u32 %v551, %v552
        %v555 = vsel %vm477, %v547, %v554
        %v557 = vshrl.u32 %v472, 16
        %v559 = vrot.slane %v557, 7
        %v560 = vrot.slane %v559, 4
        %v562 = vshrl.u32 %v473, 16
        %v564 = vrot.slane %v562, 7
        %v565 = vshll.u32 %v473, 16
        %v567 = vor.u32 %v564, %v565
        %v568 = vsel %vm477, %v560, %v567
        %v570 = vshrl.u32 %v474, 16
        %v572 = vrot.slane %v570, 7
        %v573 = vrot.slane %v572, 4
        %v575 = vshrl.u32 %v475, 16
        %v577 = vrot.slane %v575, 7
        %v578 = vshll.u32 %v475, 16
        %v580 = vor.u32 %v577, %v578
        %v581 = vsel %vm477, %v573, %v580
        %590 = vst [vmem:[#allocation4] sm:$0xf] %v490
        %591 = vst [vmem:[#allocation4 + $0x24] sm:$0xf] %v503
        %592 = vst [vmem:[#allocation4 + $0x48] sm:$0xf] %v516
        %593 = vst [vmem:[#allocation4 + $0x6c] sm:$0xf] %v529
        %594 = vst [vmem:[#allocation4 + $0x90] sm:$0xf] %v542
        %595 = vst [vmem:[#allocation4 + $0xb4] sm:$0xf] %v555
        %596 = vst [vmem:[#allocation4 + $0xd8] sm:$0xf] %v568
        %597 = vst [vmem:[#allocation4 + $0xfc] sm:$0xf] %v581
        %v598 = vld [vmem:[#allocation2 + $0x4] sm:$0xf]
        %v599 = vld [vmem:[#allocation2 + $0x10] sm:$0xf]
        %v600 = vld [vmem:[#allocation2 + $0x1c] sm:$0xf]
        %v601 = vld [vmem:[#allocation2 + $0x28] sm:$0xf]
        %v602 = vld [vmem:[#allocation2 + $0x34] sm:$0xf]
        %v603 = vld [vmem:[#allocation2 + $0x40] sm:$0xf]
        %v604 = vld [vmem:[#allocation2 + $0x4c] sm:$0xf]
        %v605 = vld [vmem:[#allocation2 + $0x58] sm:$0xf]
        %606 = vst [vmem:[#allocation4 + $0x4] sm:$0xf] %v598
        %607 = vst [vmem:[#allocation4 + $0x28] sm:$0xf] %v599
        %608 = vst [vmem:[#allocation4 + $0x4c] sm:$0xf] %v600
        %609 = vst [vmem:[#allocation4 + $0x70] sm:$0xf] %v601
        %610 = vst [vmem:[#allocation4 + $0x94] sm:$0xf] %v602
        %611 = vst [vmem:[#allocation4 + $0xb8] sm:$0xf] %v603
        %612 = vst [vmem:[#allocation4 + $0xdc] sm:$0xf] %v604
        %613 = vst [vmem:[#allocation4 + $0x100] sm:$0xf] %v605
        %v614 = vld [vmem:[#allocation2 + $0x4] sm:$0xf]
        %v615 = vld [vmem:[#allocation2 + $0x8] sm:$0x1]
        %v616 = vld [vmem:[#allocation2 + $0x10] sm:$0xf]
        %v617 = vld [vmem:[#allocation2 + $0x14] sm:$0x1]
        %v618 = vld [vmem:[#allocation2 + $0x1c] sm:$0xf]
        %v619 = vld [vmem:[#allocation2 + $0x20] sm:$0x1]
        %v620 = vld [vmem:[#allocation2 + $0x28] sm:$0xf]
        %v621 = vld [vmem:[#allocation2 + $0x2c] sm:$0x1]
        %v622 = vld [vmem:[#allocation2 + $0x34] sm:$0xf]
        %v623 = vld [vmem:[#allocation2 + $0x38] sm:$0x1]
        %v624 = vld [vmem:[#allocation2 + $0x40] sm:$0xf]
        %v625 = vld [vmem:[#allocation2 + $0x44] sm:$0x1]
        %v626 = vld [vmem:[#allocation2 + $0x4c] sm:$0xf]
        %v627 = vld [vmem:[#allocation2 + $0x50] sm:$0x1]
        %v628 = vld [vmem:[#allocation2 + $0x58] sm:$0xf]
        %v629 = vld [vmem:[#allocation2 + $0x5c] sm:$0x1]
        %vm630 = vsmask.f32 3328
        %vm631 = vsmask.f32 7440
        %vm632 = vmor %vm630, %vm631
        %v634 = vshrl.u32 %v614, 16
        %v636 = vrot.slane %v634, 4
        %v637 = vshll.u32 %v614, 16
        %v639 = vrot.slane %v637, 5
        %v640 = vor.u32 %v636, %v639
        %v641 = vrot.slane %v640, 4
        %v643 = vshll.u32 %v615, 16
        %v645 = vrot.slane %v643, 5
        %v646 = vsel %vm632, %v641, %v645
        %v648 = vshrl.u32 %v616, 16
        %v650 = vrot.slane %v648, 4
        %v651 = vshll.u32 %v616, 16
        %v653 = vrot.slane %v651, 5
        %v654 = vor.u32 %v650, %v653
        %v655 = vrot.slane %v654, 4
        %v657 = vshll.u32 %v617, 16
        %v659 = vrot.slane %v657, 5
        %v660 = vsel %vm632, %v655, %v659
        %v662 = vshrl.u32 %v618, 16
        %v664 = vrot.slane %v662, 4
        %v665 = vshll.u32 %v618, 16
        %v667 = vrot.slane %v665, 5
        %v668 = vor.u32 %v664, %v667
        %v669 = vrot.slane %v668, 4
        %v671 = vshll.u32 %v619, 16
        %v673 = vrot.slane %v671, 5
        %v674 = vsel %vm632, %v669, %v673
        %v676 = vshrl.u32 %v620, 16
        %v678 = vrot.slane %v676, 4
        %v679 = vshll.u32 %v620, 16
        %v681 = vrot.slane %v679, 5
        %v682 = vor.u32 %v678, %v681
        %v683 = vrot.slane %v682, 4
        %v685 = vshll.u32 %v621, 16
        %v687 = vrot.slane %v685, 5
        %v688 = vsel %vm632, %v683, %v687
        %v690 = vshrl.u32 %v622, 16
        %v692 = vrot.slane %v690, 4
        %v693 = vshll.u32 %v622, 16
        %v695 = vrot.slane %v693, 5
        %v696 = vor.u32 %v692, %v695
        %v697 = vrot.slane %v696, 4
        %v699 = vshll.u32 %v623, 16
        %v701 = vrot.slane %v699, 5
        %v702 = vsel %vm632, %v697, %v701
        %v704 = vshrl.u32 %v624, 16
        %v706 = vrot.slane %v704, 4
        %v707 = vshll.u32 %v624, 16
        %v709 = vrot.slane %v707, 5
        %v710 = vor.u32 %v706, %v709
        %v711 = vrot.slane %v710, 4
        %v713 = vshll.u32 %v625, 16
        %v715 = vrot.slane %v713, 5
        %v716 = vsel %vm632, %v711, %v715
        %v718 = vshrl.u32 %v626, 16
        %v720 = vrot.slane %v718, 4
        %v721 = vshll.u32 %v626, 16
        %v723 = vrot.slane %v721, 5
        %v724 = vor.u32 %v720, %v723
        %v725 = vrot.slane %v724, 4
        %v727 = vshll.u32 %v627, 16
        %v729 = vrot.slane %v727, 5
        %v730 = vsel %vm632, %v725, %v729
        %v732 = vshrl.u32 %v628, 16
        %v734 = vrot.slane %v732, 4
        %v735 = vshll.u32 %v628, 16
        %v737 = vrot.slane %v735, 5
        %v738 = vor.u32 %v734, %v737
        %v739 = vrot.slane %v738, 4
        %v741 = vshll.u32 %v629, 16
        %v743 = vrot.slane %v741, 5
        %v744 = vsel %vm632, %v739, %v743
        %753 = vst [vmem:[#allocation4 + $0x8] sm:$0xf] %v646
        %754 = vst [vmem:[#allocation4 + $0x2c] sm:$0xf] %v660
        %755 = vst [vmem:[#allocation4 + $0x50] sm:$0xf] %v674
        %756 = vst [vmem:[#allocation4 + $0x74] sm:$0xf] %v688
        %757 = vst [vmem:[#allocation4 + $0x98] sm:$0xf] %v702
        %758 = vst [vmem:[#allocation4 + $0xbc] sm:$0xf] %v716
        %759 = vst [vmem:[#allocation4 + $0xe0] sm:$0xf] %v730
        %760 = vst [vmem:[#allocation4 + $0x104] sm:$0xf] %v744
        %v761 = vld [vmem:[%s400] sm:$0x8]
        %v762 = vld [vmem:[%s400 + $0x4] sm:$0xf]
        %v763 = vld [vmem:[%s400 + $0xc] sm:$0x8]
        %v764 = vld [vmem:[%s400 + $0x10] sm:$0xf]
        %v765 = vld [vmem:[%s400 + $0x18] sm:$0x8]
        %v766 = vld [vmem:[%s400 + $0x1c] sm:$0xf]
        %v767 = vld [vmem:[%s400 + $0x24] sm:$0x8]
        %v768 = vld [vmem:[%s400 + $0x28] sm:$0xf]
        %v769 = vld [vmem:[%s400 + $0x30] sm:$0x8]
        %v770 = vld [vmem:[%s400 + $0x34] sm:$0xf]
        %v771 = vld [vmem:[%s400 + $0x3c] sm:$0x8]
        %v772 = vld [vmem:[%s400 + $0x40] sm:$0xf]
        %v773 = vld [vmem:[%s400 + $0x48] sm:$0x8]
        %v774 = vld [vmem:[%s400 + $0x4c] sm:$0xf]
        %v775 = vld [vmem:[%s400 + $0x54] sm:$0x8]
        %v776 = vld [vmem:[%s400 + $0x58] sm:$0xf]
        %v778 = vshrl.u32 %v761, 16
        %v780 = vrot.slane %v778, 7
        %v781 = vrot.slane %v780, 4
        %v783 = vshrl.u32 %v762, 16
        %v785 = vrot.slane %v783, 7
        %v786 = vshll.u32 %v762, 16
        %v788 = vor.u32 %v785, %v786
        %v789 = vsel %vm477, %v781, %v788
        %v791 = vshrl.u32 %v763, 16
        %v793 = vrot.slane %v791, 7
        %v794 = vrot.slane %v793, 4
        %v796 = vshrl.u32 %v764, 16
        %v798 = vrot.slane %v796, 7
        %v799 = vshll.u32 %v764, 16
        %v801 = vor.u32 %v798, %v799
        %v802 = vsel %vm477, %v794, %v801
        %v804 = vshrl.u32 %v765, 16
        %v806 = vrot.slane %v804, 7
        %v807 = vrot.slane %v806, 4
        %v809 = vshrl.u32 %v766, 16
        %v811 = vrot.slane %v809, 7
        %v812 = vshll.u32 %v766, 16
        %v814 = vor.u32 %v811, %v812
        %v815 = vsel %vm477, %v807, %v814
        %v817 = vshrl.u32 %v767, 16
        %v819 = vrot.slane %v817, 7
        %v820 = vrot.slane %v819, 4
        %v822 = vshrl.u32 %v768, 16
        %v824 = vrot.slane %v822, 7
        %v825 = vshll.u32 %v768, 16
        %v827 = vor.u32 %v824, %v825
        %v828 = vsel %vm477, %v820, %v827
        %v830 = vshrl.u32 %v769, 16
        %v832 = vrot.slane %v830, 7
        %v833 = vrot.slane %v832, 4
        %v835 = vshrl.u32 %v770, 16
        %v837 = vrot.slane %v835, 7
        %v838 = vshll.u32 %v770, 16
        %v840 = vor.u32 %v837, %v838
        %v841 = vsel %vm477, %v833, %v840
        %v843 = vshrl.u32 %v771, 16
        %v845 = vrot.slane %v843, 7
        %v846 = vrot.slane %v845, 4
        %v848 = vshrl.u32 %v772, 16
        %v850 = vrot.slane %v848, 7
        %v851 = vshll.u32 %v772, 16
        %v853 = vor.u32 %v850, %v851
        %v854 = vsel %vm477, %v846, %v853
        %v856 = vshrl.u32 %v773, 16
        %v858 = vrot.slane %v856, 7
        %v859 = vrot.slane %v858, 4
        %v861 = vshrl.u32 %v774, 16
        %v863 = vrot.slane %v861, 7
        %v864 = vshll.u32 %v774, 16
        %v866 = vor.u32 %v863, %v864
        %v867 = vsel %vm477, %v859, %v866
        %v869 = vshrl.u32 %v775, 16
        %v871 = vrot.slane %v869, 7
        %v872 = vrot.slane %v871, 4
        %v874 = vshrl.u32 %v776, 16
        %v876 = vrot.slane %v874, 7
        %v877 = vshll.u32 %v776, 16
        %v879 = vor.u32 %v876, %v877
        %v880 = vsel %vm477, %v872, %v879
        %889 = vst [vmem:[#allocation4 + $0xc] sm:$0xf] %v789
        %890 = vst [vmem:[#allocation4 + $0x30] sm:$0xf] %v802
        %891 = vst [vmem:[#allocation4 + $0x54] sm:$0xf] %v815
        %892 = vst [vmem:[#allocation4 + $0x78] sm:$0xf] %v828
        %893 = vst [vmem:[#allocation4 + $0x9c] sm:$0xf] %v841
        %894 = vst [vmem:[#allocation4 + $0xc0] sm:$0xf] %v854
        %895 = vst [vmem:[#allocation4 + $0xe4] sm:$0xf] %v867
        %896 = vst [vmem:[#allocation4 + $0x108] sm:$0xf] %v880
        %v897 = vld [vmem:[%s400 + $0x4] sm:$0xf]
        %v898 = vld [vmem:[%s400 + $0x10] sm:$0xf]
        %v899 = vld [vmem:[%s400 + $0x1c] sm:$0xf]
        %v900 = vld [vmem:[%s400 + $0x28] sm:$0xf]
        %v901 = vld [vmem:[%s400 + $0x34] sm:$0xf]
        %v902 = vld [vmem:[%s400 + $0x40] sm:$0xf]
        %v903 = vld [vmem:[%s400 + $0x4c] sm:$0xf]
        %v904 = vld [vmem:[%s400 + $0x58] sm:$0xf]
        %905 = vst [vmem:[#allocation4 + $0x10] sm:$0xf] %v897
        %906 = vst [vmem:[#allocation4 + $0x34] sm:$0xf] %v898
        %907 = vst [vmem:[#allocation4 + $0x58] sm:$0xf] %v899
        %908 = vst [vmem:[#allocation4 + $0x7c] sm:$0xf] %v900
        %909 = vst [vmem:[#allocation4 + $0xa0] sm:$0xf] %v901
        %910 = vst [vmem:[#allocation4 + $0xc4] sm:$0xf] %v902
        %911 = vst [vmem:[#allocation4 + $0xe8] sm:$0xf] %v903
        %912 = vst [vmem:[#allocation4 + $0x10c] sm:$0xf] %v904
        %v913 = vld [vmem:[%s400 + $0x4] sm:$0xf]
        %v914 = vld [vmem:[%s400 + $0x8] sm:$0x1]
        %v915 = vld [vmem:[%s400 + $0x10] sm:$0xf]
        %v916 = vld [vmem:[%s400 + $0x14] sm:$0x1]
        %v917 = vld [vmem:[%s400 + $0x1c] sm:$0xf]
        %v918 = vld [vmem:[%s400 + $0x20] sm:$0x1]
        %v919 = vld [vmem:[%s400 + $0x28] sm:$0xf]
        %v920 = vld [vmem:[%s400 + $0x2c] sm:$0x1]
        %v921 = vld [vmem:[%s400 + $0x34] sm:$0xf]
        %v922 = vld [vmem:[%s400 + $0x38] sm:$0x1]
        %v923 = vld [vmem:[%s400 + $0x40] sm:$0xf]
        %v924 = vld [vmem:[%s400 + $0x44] sm:$0x1]
        %v925 = vld [vmem:[%s400 + $0x4c] sm:$0xf]
        %v926 = vld [vmem:[%s400 + $0x50] sm:$0x1]
        %v927 = vld [vmem:[%s400 + $0x58] sm:$0xf]
        %v928 = vld [vmem:[%s400 + $0x5c] sm:$0x1]
        %v930 = vshrl.u32 %v913, 16
        %v932 = vrot.slane %v930, 4
        %v933 = vshll.u32 %v913, 16
        %v935 = vrot.slane %v933, 5
        %v936 = vor.u32 %v932, %v935
        %v937 = vrot.slane %v936, 4
        %v939 = vshll.u32 %v914, 16
        %v941 = vrot.slane %v939, 5
        %v942 = vsel %vm632, %v937, %v941
        %v944 = vshrl.u32 %v915, 16
        %v946 = vrot.slane %v944, 4
        %v947 = vshll.u32 %v915, 16
        %v949 = vrot.slane %v947, 5
        %v950 = vor.u32 %v946, %v949
        %v951 = vrot.slane %v950, 4
        %v953 = vshll.u32 %v916, 16
        %v955 = vrot.slane %v953, 5
        %v956 = vsel %vm632, %v951, %v955
        %v958 = vshrl.u32 %v917, 16
        %v960 = vrot.slane %v958, 4
        %v961 = vshll.u32 %v917, 16
        %v963 = vrot.slane %v961, 5
        %v964 = vor.u32 %v960, %v963
        %v965 = vrot.slane %v964, 4
        %v967 = vshll.u32 %v918, 16
        %v969 = vrot.slane %v967, 5
        %v970 = vsel %vm632, %v965, %v969
        %v972 = vshrl.u32 %v919, 16
        %v974 = vrot.slane %v972, 4
        %v975 = vshll.u32 %v919, 16
        %v977 = vrot.slane %v975, 5
        %v978 = vor.u32 %v974, %v977
        %v979 = vrot.slane %v978, 4
        %v981 = vshll.u32 %v920, 16
        %v983 = vrot.slane %v981, 5
        %v984 = vsel %vm632, %v979, %v983
        %v986 = vshrl.u32 %v921, 16
        %v988 = vrot.slane %v986, 4
        %v989 = vshll.u32 %v921, 16
        %v991 = vrot.slane %v989, 5
        %v992 = vor.u32 %v988, %v991
        %v993 = vrot.slane %v992, 4
        %v995 = vshll.u32 %v922, 16
        %v997 = vrot.slane %v995, 5
        %v998 = vsel %vm632, %v993, %v997
        %v1000 = vshrl.u32 %v923, 16
        %v1002 = vrot.slane %v1000, 4
        %v1003 = vshll.u32 %v923, 16
        %v1005 = vrot.slane %v1003, 5
        %v1006 = vor.u32 %v1002, %v1005
        %v1007 = vrot.slane %v1006, 4
        %v1009 = vshll.u32 %v924, 16
        %v1011 = vrot.slane %v1009, 5
        %v1012 = vsel %vm632, %v1007, %v1011
        %v1014 = vshrl.u32 %v925, 16
        %v1016 = vrot.slane %v1014, 4
        %v1017 = vshll.u32 %v925, 16
        %v1019 = vrot.slane %v1017, 5
        %v1020 = vor.u32 %v1016, %v1019
        %v1021 = vrot.slane %v1020, 4
        %v1023 = vshll.u32 %v926, 16
        %v1025 = vrot.slane %v1023, 5
        %v1026 = vsel %vm632, %v1021, %v1025
        %v1028 = vshrl.u32 %v927, 16
        %v1030 = vrot.slane %v1028, 4
        %v1031 = vshll.u32 %v927, 16
        %v1033 = vrot.slane %v1031, 5
        %v1034 = vor.u32 %v1030, %v1033
        %v1035 = vrot.slane %v1034, 4
        %v1037 = vshll.u32 %v928, 16
        %v1039 = vrot.slane %v1037, 5
        %v1040 = vsel %vm632, %v1035, %v1039
        %1049 = vst [vmem:[#allocation4 + $0x14] sm:$0xf] %v942
        %1050 = vst [vmem:[#allocation4 + $0x38] sm:$0xf] %v956
        %1051 = vst [vmem:[#allocation4 + $0x5c] sm:$0xf] %v970
        %1052 = vst [vmem:[#allocation4 + $0x80] sm:$0xf] %v984
        %1053 = vst [vmem:[#allocation4 + $0xa4] sm:$0xf] %v998
        %1054 = vst [vmem:[#allocation4 + $0xc8] sm:$0xf] %v1012
        %1055 = vst [vmem:[#allocation4 + $0xec] sm:$0xf] %v1026
        %1056 = vst [vmem:[#allocation4 + $0x110] sm:$0xf] %v1040
        %s1057 = scalar_lea.vmem [#allocation2], 24
        %v1058 = vld [vmem:[%s1057] sm:$0x8]
        %v1059 = vld [vmem:[%s1057 + $0x4] sm:$0xf]
        %v1060 = vld [vmem:[%s1057 + $0xc] sm:$0x8]
        %v1061 = vld [vmem:[%s1057 + $0x10] sm:$0xf]
        %v1062 = vld [vmem:[%s1057 + $0x18] sm:$0x8]
        %v1063 = vld [vmem:[%s1057 + $0x1c] sm:$0xf]
        %v1064 = vld [vmem:[%s1057 + $0x24] sm:$0x8]
        %v1065 = vld [vmem:[%s1057 + $0x28] sm:$0xf]
        %v1066 = vld [vmem:[%s1057 + $0x30] sm:$0x8]
        %v1067 = vld [vmem:[%s1057 + $0x34] sm:$0xf]
        %v1068 = vld [vmem:[%s1057 + $0x3c] sm:$0x8]
        %v1069 = vld [vmem:[%s1057 + $0x40] sm:$0xf]
        %v1070 = vld [vmem:[%s1057 + $0x48] sm:$0x8]
        %v1071 = vld [vmem:[%s1057 + $0x4c] sm:$0xf]
        %v1072 = vld [vmem:[%s1057 + $0x54] sm:$0x8]
        %v1073 = vld [vmem:[%s1057 + $0x58] sm:$0xf]
        %v1075 = vshrl.u32 %v1058, 16
        %v1077 = vrot.slane %v1075, 7
        %v1078 = vrot.slane %v1077, 4
        %v1080 = vshrl.u32 %v1059, 16
        %v1082 = vrot.slane %v1080, 7
        %v1083 = vshll.u32 %v1059, 16
        %v1085 = vor.u32 %v1082, %v1083
        %v1086 = vsel %vm477, %v1078, %v1085
        %v1088 = vshrl.u32 %v1060, 16
        %v1090 = vrot.slane %v1088, 7
        %v1091 = vrot.slane %v1090, 4
        %v1093 = vshrl.u32 %v1061, 16
        %v1095 = vrot.slane %v1093, 7
        %v1096 = vshll.u32 %v1061, 16
        %v1098 = vor.u32 %v1095, %v1096
        %v1099 = vsel %vm477, %v1091, %v1098
        %v1101 = vshrl.u32 %v1062, 16
        %v1103 = vrot.slane %v1101, 7
        %v1104 = vrot.slane %v1103, 4
        %v1106 = vshrl.u32 %v1063, 16
        %v1108 = vrot.slane %v1106, 7
        %v1109 = vshll.u32 %v1063, 16
        %v1111 = vor.u32 %v1108, %v1109
        %v1112 = vsel %vm477, %v1104, %v1111
        %v1114 = vshrl.u32 %v1064, 16
        %v1116 = vrot.slane %v1114, 7
        %v1117 = vrot.slane %v1116, 4
        %v1119 = vshrl.u32 %v1065, 16
        %v1121 = vrot.slane %v1119, 7
        %v1122 = vshll.u32 %v1065, 16
        %v1124 = vor.u32 %v1121, %v1122
        %v1125 = vsel %vm477, %v1117, %v1124
        %v1127 = vshrl.u32 %v1066, 16
        %v1129 = vrot.slane %v1127, 7
        %v1130 = vrot.slane %v1129, 4
        %v1132 = vshrl.u32 %v1067, 16
        %v1134 = vrot.slane %v1132, 7
        %v1135 = vshll.u32 %v1067, 16
        %v1137 = vor.u32 %v1134, %v1135
        %v1138 = vsel %vm477, %v1130, %v1137
        %v1140 = vshrl.u32 %v1068, 16
        %v1142 = vrot.slane %v1140, 7
        %v1143 = vrot.slane %v1142, 4
        %v1145 = vshrl.u32 %v1069, 16
        %v1147 = vrot.slane %v1145, 7
        %v1148 = vshll.u32 %v1069, 16
        %v1150 = vor.u32 %v1147, %v1148
        %v1151 = vsel %vm477, %v1143, %v1150
        %v1153 = vshrl.u32 %v1070, 16
        %v1155 = vrot.slane %v1153, 7
        %v1156 = vrot.slane %v1155, 4
        %v1158 = vshrl.u32 %v1071, 16
        %v1160 = vrot.slane %v1158, 7
        %v1161 = vshll.u32 %v1071, 16
        %v1163 = vor.u32 %v1160, %v1161
        %v1164 = vsel %vm477, %v1156, %v1163
        %v1166 = vshrl.u32 %v1072, 16
        %v1168 = vrot.slane %v1166, 7
        %v1169 = vrot.slane %v1168, 4
        %v1171 = vshrl.u32 %v1073, 16
        %v1173 = vrot.slane %v1171, 7
        %v1174 = vshll.u32 %v1073, 16
        %v1176 = vor.u32 %v1173, %v1174
        %v1177 = vsel %vm477, %v1169, %v1176
        %1186 = vst [vmem:[#allocation4 + $0x18] sm:$0xf] %v1086
        %1187 = vst [vmem:[#allocation4 + $0x3c] sm:$0xf] %v1099
        %1188 = vst [vmem:[#allocation4 + $0x60] sm:$0xf] %v1112
        %1189 = vst [vmem:[#allocation4 + $0x84] sm:$0xf] %v1125
        %1190 = vst [vmem:[#allocation4 + $0xa8] sm:$0xf] %v1138
        %1191 = vst [vmem:[#allocation4 + $0xcc] sm:$0xf] %v1151
        %1192 = vst [vmem:[#allocation4 + $0xf0] sm:$0xf] %v1164
        %1193 = vst [vmem:[#allocation4 + $0x114] sm:$0xf] %v1177
        %v1194 = vld [vmem:[%s1057 + $0x4] sm:$0xf]
        %v1195 = vld [vmem:[%s1057 + $0x10] sm:$0xf]
        %v1196 = vld [vmem:[%s1057 + $0x1c] sm:$0xf]
        %v1197 = vld [vmem:[%s1057 + $0x28] sm:$0xf]
        %v1198 = vld [vmem:[%s1057 + $0x34] sm:$0xf]
        %v1199 = vld [vmem:[%s1057 + $0x40] sm:$0xf]
        %v1200 = vld [vmem:[%s1057 + $0x4c] sm:$0xf]
        %v1201 = vld [vmem:[%s1057 + $0x58] sm:$0xf]
        %1202 = vst [vmem:[#allocation4 + $0x1c] sm:$0xf] %v1194
        %1203 = vst [vmem:[#allocation4 + $0x40] sm:$0xf] %v1195
        %1204 = vst [vmem:[#allocation4 + $0x64] sm:$0xf] %v1196
        %1205 = vst [vmem:[#allocation4 + $0x88] sm:$0xf] %v1197
        %1206 = vst [vmem:[#allocation4 + $0xac] sm:$0xf] %v1198
        %1207 = vst [vmem:[#allocation4 + $0xd0] sm:$0xf] %v1199
        %1208 = vst [vmem:[#allocation4 + $0xf4] sm:$0xf] %v1200
        %1209 = vst [vmem:[#allocation4 + $0x118] sm:$0xf] %v1201
        %v1210 = vld [vmem:[%s1057 + $0x4] sm:$0xf]
        %v1211 = vld [vmem:[%s1057 + $0x8] sm:$0x1]
        %v1212 = vld [vmem:[%s1057 + $0x10] sm:$0xf]
        %v1213 = vld [vmem:[%s1057 + $0x14] sm:$0x1]
        %v1214 = vld [vmem:[%s1057 + $0x1c] sm:$0xf]
        %v1215 = vld [vmem:[%s1057 + $0x20] sm:$0x1]
        %v1216 = vld [vmem:[%s1057 + $0x28] sm:$0xf]
        %v1217 = vld [vmem:[%s1057 + $0x2c] sm:$0x1]
        %v1218 = vld [vmem:[%s1057 + $0x34] sm:$0xf]
        %v1219 = vld [vmem:[%s1057 + $0x38] sm:$0x1]
        %v1220 = vld [vmem:[%s1057 + $0x40] sm:$0xf]
        %v1221 = vld [vmem:[%s1057 + $0x44] sm:$0x1]
        %v1222 = vld [vmem:[%s1057 + $0x4c] sm:$0xf]
        %v1223 = vld [vmem:[%s1057 + $0x50] sm:$0x1]
        %v1224 = vld [vmem:[%s1057 + $0x58] sm:$0xf]
        %v1225 = vld [vmem:[%s1057 + $0x5c] sm:$0x1]
        %v1227 = vshrl.u32 %v1210, 16
        %v1229 = vrot.slane %v1227, 4
        %v1230 = vshll.u32 %v1210, 16
        %v1232 = vrot.slane %v1230, 5
        %v1233 = vor.u32 %v1229, %v1232
        %v1234 = vrot.slane %v1233, 4
        %v1236 = vshll.u32 %v1211, 16
        %v1238 = vrot.slane %v1236, 5
        %v1239 = vsel %vm632, %v1234, %v1238
        %v1241 = vshrl.u32 %v1212, 16
        %v1243 = vrot.slane %v1241, 4
        %v1244 = vshll.u32 %v1212, 16
        %v1246 = vrot.slane %v1244, 5
        %v1247 = vor.u32 %v1243, %v1246
        %v1248 = vrot.slane %v1247, 4
        %v1250 = vshll.u32 %v1213, 16
        %v1252 = vrot.slane %v1250, 5
        %v1253 = vsel %vm632, %v1248, %v1252
        %v1255 = vshrl.u32 %v1214, 16
        %v1257 = vrot.slane %v1255, 4
        %v1258 = vshll.u32 %v1214, 16
        %v1260 = vrot.slane %v1258, 5
        %v1261 = vor.u32 %v1257, %v1260
        %v1262 = vrot.slane %v1261, 4
        %v1264 = vshll.u32 %v1215, 16
        %v1266 = vrot.slane %v1264, 5
        %v1267 = vsel %vm632, %v1262, %v1266
        %v1269 = vshrl.u32 %v1216, 16
        %v1271 = vrot.slane %v1269, 4
        %v1272 = vshll.u32 %v1216, 16
        %v1274 = vrot.slane %v1272, 5
        %v1275 = vor.u32 %v1271, %v1274
        %v1276 = vrot.slane %v1275, 4
        %v1278 = vshll.u32 %v1217, 16
        %v1280 = vrot.slane %v1278, 5
        %v1281 = vsel %vm632, %v1276, %v1280
        %v1283 = vshrl.u32 %v1218, 16
        %v1285 = vrot.slane %v1283, 4
        %v1286 = vshll.u32 %v1218, 16
        %v1288 = vrot.slane %v1286, 5
        %v1289 = vor.u32 %v1285, %v1288
        %v1290 = vrot.slane %v1289, 4
        %v1292 = vshll.u32 %v1219, 16
        %v1294 = vrot.slane %v1292, 5
        %v1295 = vsel %vm632, %v1290, %v1294
        %v1297 = vshrl.u32 %v1220, 16
        %v1299 = vrot.slane %v1297, 4
        %v1300 = vshll.u32 %v1220, 16
        %v1302 = vrot.slane %v1300, 5
        %v1303 = vor.u32 %v1299, %v1302
        %v1304 = vrot.slane %v1303, 4
        %v1306 = vshll.u32 %v1221, 16
        %v1308 = vrot.slane %v1306, 5
        %v1309 = vsel %vm632, %v1304, %v1308
        %v1311 = vshrl.u32 %v1222, 16
        %v1313 = vrot.slane %v1311, 4
        %v1314 = vshll.u32 %v1222, 16
        %v1316 = vrot.slane %v1314, 5
        %v1317 = vor.u32 %v1313, %v1316
        %v1318 = vrot.slane %v1317, 4
        %v1320 = vshll.u32 %v1223, 16
        %v1322 = vrot.slane %v1320, 5
        %v1323 = vsel %vm632, %v1318, %v1322
        %v1325 = vshrl.u32 %v1224, 16
        %v1327 = vrot.slane %v1325, 4
        %v1328 = vshll.u32 %v1224, 16
        %v1330 = vrot.slane %v1328, 5
        %v1331 = vor.u32 %v1327, %v1330
        %v1332 = vrot.slane %v1331, 4
        %v1334 = vshll.u32 %v1225, 16
        %v1336 = vrot.slane %v1334, 5
        %v1337 = vsel %vm632, %v1332, %v1336
        %1346 = vst [vmem:[#allocation4 + $0x20] sm:$0xf] %v1239
        %1347 = vst [vmem:[#allocation4 + $0x44] sm:$0xf] %v1253
        %1348 = vst [vmem:[#allocation4 + $0x68] sm:$0xf] %v1267
        %1349 = vst [vmem:[#allocation4 + $0x8c] sm:$0xf] %v1281
        %1350 = vst [vmem:[#allocation4 + $0xb0] sm:$0xf] %v1295
        %1351 = vst [vmem:[#allocation4 + $0xd4] sm:$0xf] %v1309
        %1352 = vst [vmem:[#allocation4 + $0xf8] sm:$0xf] %v1323
        %1353 = vst [vmem:[#allocation4 + $0x11c] sm:$0xf] %v1337
        %v1354 = vld [vmem:[#allocation4] sm:$0xff]
        %v1355 = vld [vmem:[#allocation4 + $0x8] sm:$0xff]
        %v1356 = vld [vmem:[#allocation4 + $0x10] sm:$0xff]
        %v1357 = vld [vmem:[#allocation4 + $0x18] sm:$0xff]
        %v1358 = vld [vmem:[#allocation4 + $0x20] sm:$0xf]
        %v1359 = vld [vmem:[#allocation4 + $0x24] sm:$0xff]
        %v1360 = vld [vmem:[#allocation4 + $0x2c] sm:$0xff]
        %v1361 = vld [vmem:[#allocation4 + $0x34] sm:$0xff]
        %v1362 = vld [vmem:[#allocation4 + $0x3c] sm:$0xff]
        %v1363 = vld [vmem:[#allocation4 + $0x44] sm:$0xf]
        %v1364 = vld [vmem:[#allocation4 + $0x48] sm:$0xff]
        %v1365 = vld [vmem:[#allocation4 + $0x50] sm:$0xff]
        %v1366 = vld [vmem:[#allocation4 + $0x58] sm:$0xff]
        %v1367 = vld [vmem:[#allocation4 + $0x60] sm:$0xff]
        %v1368 = vld [vmem:[#allocation4 + $0x68] sm:$0xf]
        %v1369 = vld [vmem:[#allocation4 + $0x6c] sm:$0xff]
        %v1370 = vld [vmem:[#allocation4 + $0x74] sm:$0xff]
        %v1371 = vld [vmem:[#allocation4 + $0x7c] sm:$0xff]
        %v1372 = vld [vmem:[#allocation4 + $0x84] sm:$0xff]
        %v1373 = vld [vmem:[#allocation4 + $0x8c] sm:$0xf]
        %v1374 = vld [vmem:[#allocation4 + $0x90] sm:$0xff]
        %v1375 = vld [vmem:[#allocation4 + $0x98] sm:$0xff]
        %v1376 = vld [vmem:[#allocation4 + $0xa0] sm:$0xff]
        %v1377 = vld [vmem:[#allocation4 + $0xa8] sm:$0xff]
        %v1378 = vld [vmem:[#allocation4 + $0xb0] sm:$0xf]
        %v1379 = vld [vmem:[#allocation4 + $0xb4] sm:$0xff]
        %v1380 = vld [vmem:[#allocation4 + $0xbc] sm:$0xff]
        %v1381 = vld [vmem:[#allocation4 + $0xc4] sm:$0xff]
        %v1382 = vld [vmem:[#allocation4 + $0xcc] sm:$0xff]
        %v1383 = vld [vmem:[#allocation4 + $0xd4] sm:$0xf]
        %v1384 = vld [vmem:[#allocation4 + $0xd8] sm:$0xff]
        %v1385 = vld [vmem:[#allocation4 + $0xe0] sm:$0xff]
        %v1386 = vld [vmem:[#allocation4 + $0xe8] sm:$0xff]
        %v1387 = vld [vmem:[#allocation4 + $0xf0] sm:$0xff]
        %v1388 = vld [vmem:[#allocation4 + $0xf8] sm:$0xf]
        %v1389 = vld [vmem:[#allocation4 + $0xfc] sm:$0xff]
        %v1390 = vld [vmem:[#allocation4 + $0x104] sm:$0xff]
        %v1391 = vld [vmem:[#allocation4 + $0x10c] sm:$0xff]
        %v1392 = vld [vmem:[#allocation4 + $0x114] sm:$0xff]
        %v1393 = vld [vmem:[#allocation4 + $0x11c] sm:$0xf]
        %v1394 = vld [vmem:[#allocation9] sm:$0xf]
        %v1395 = vld [vmem:[#allocation9 + $0x4] sm:$0xf]
        %v1396 = vld [vmem:[#allocation9 + $0x8] sm:$0xf]
        %v1397 = vld [vmem:[#allocation9 + $0xc] sm:$0xf]
        %v1398 = vld [vmem:[#allocation9 + $0x10] sm:$0xf]
        %v1399 = vld [vmem:[#allocation9 + $0x14] sm:$0xf]
        %v1400 = vld [vmem:[#allocation9 + $0x18] sm:$0xf]
        %v1401 = vld [vmem:[#allocation9 + $0x1c] sm:$0xf]
        %v1402 = vld [vmem:[#allocation9 + $0x20] sm:$0xf]
        %v1403 = vld [vmem:[#allocation9 + $0x24] sm:$0xf]
        %v1404 = vld [vmem:[#allocation9 + $0x28] sm:$0xf]
        %v1405 = vld [vmem:[#allocation9 + $0x2c] sm:$0xf]
        %v1406 = vld [vmem:[#allocation9 + $0x30] sm:$0xf]
        %v1407 = vld [vmem:[#allocation9 + $0x34] sm:$0xf]
        %v1408 = vld [vmem:[#allocation9 + $0x38] sm:$0xf]
        %v1409 = vld [vmem:[#allocation9 + $0x3c] sm:$0xf]
        %v1410 = vld [vmem:[#allocation9 + $0x40] sm:$0xf]
        %v1411 = vld [vmem:[#allocation9 + $0x44] sm:$0xf]
        %v1412 = vld [vmem:[#allocation9 + $0x48] sm:$0xf]
        %v1413 = vld [vmem:[#allocation9 + $0x4c] sm:$0xf]
        %v1414 = vld [vmem:[#allocation9 + $0x50] sm:$0xf]
        %v1415 = vld [vmem:[#allocation9 + $0x54] sm:$0xf]
        %v1416 = vld [vmem:[#allocation9 + $0x58] sm:$0xf]
        %v1417 = vld [vmem:[#allocation9 + $0x5c] sm:$0xf]
        %v1418 = vld [vmem:[#allocation9 + $0x60] sm:$0xf]
        %v1419 = vld [vmem:[#allocation9 + $0x64] sm:$0xf]
        %v1420 = vld [vmem:[#allocation9 + $0x68] sm:$0xf]
        %v1421 = vld [vmem:[#allocation9 + $0x6c] sm:$0xf]
        %v1422 = vld [vmem:[#allocation9 + $0x70] sm:$0xf]
        %v1423 = vld [vmem:[#allocation9 + $0x74] sm:$0xf]
        %v1424 = vld [vmem:[#allocation9 + $0x78] sm:$0xf]
        %v1425 = vld [vmem:[#allocation9 + $0x7c] sm:$0xf]
        %v1426 = vld [vmem:[#allocation9 + $0x80] sm:$0xf]
        %v1427 = vld [vmem:[#allocation9 + $0x84] sm:$0xf]
        %v1428 = vld [vmem:[#allocation9 + $0x88] sm:$0xf]
        %v1429 = vld [vmem:[#allocation9 + $0x8c] sm:$0xf]
        %v1430 = vld [vmem:[#allocation9 + $0x90] sm:$0xf]
        %v1431 = vld [vmem:[#allocation9 + $0x94] sm:$0xf]
        %v1432 = vld [vmem:[#allocation9 + $0x98] sm:$0xf]
        %v1433 = vld [vmem:[#allocation9 + $0x9c] sm:$0xf]
        %v1434 = vld [vmem:[#allocation9 + $0xa0] sm:$0xf]
        %v1435 = vld [vmem:[#allocation9 + $0xa4] sm:$0xf]
        %v1436 = vld [vmem:[#allocation9 + $0xa8] sm:$0xf]
        %v1437 = vld [vmem:[#allocation9 + $0xac] sm:$0xf]
        %v1438 = vld [vmem:[#allocation9 + $0xb0] sm:$0xf]
        %v1439 = vld [vmem:[#allocation9 + $0xb4] sm:$0xf]
        %v1440 = vld [vmem:[#allocation9 + $0xb8] sm:$0xf]
        %v1441 = vld [vmem:[#allocation9 + $0xbc] sm:$0xf]
        %v1442 = vld [vmem:[#allocation9 + $0xc0] sm:$0xf]
        %v1443 = vld [vmem:[#allocation9 + $0xc4] sm:$0xf]
        %v1444 = vld [vmem:[#allocation9 + $0xc8] sm:$0xf]
        %v1445 = vld [vmem:[#allocation9 + $0xcc] sm:$0xf]
        %v1446 = vld [vmem:[#allocation9 + $0xd0] sm:$0xf]
        %v1447 = vld [vmem:[#allocation9 + $0xd4] sm:$0xf]
        %v1448 = vld [vmem:[#allocation9 + $0xd8] sm:$0xf]
        %v1449 = vld [vmem:[#allocation9 + $0xdc] sm:$0xf]
        %v1450 = vld [vmem:[#allocation9 + $0xe0] sm:$0xf]
        %v1451 = vld [vmem:[#allocation9 + $0xe4] sm:$0xf]
        %v1452 = vld [vmem:[#allocation9 + $0xe8] sm:$0xf]
        %v1453 = vld [vmem:[#allocation9 + $0xec] sm:$0xf]
        %v1454 = vld [vmem:[#allocation9 + $0xf0] sm:$0xf]
        %v1455 = vld [vmem:[#allocation9 + $0xf4] sm:$0xf]
        %v1456 = vld [vmem:[#allocation9 + $0xf8] sm:$0xf]
        %v1457 = vld [vmem:[#allocation9 + $0xfc] sm:$0xf]
        %v1458 = vld [vmem:[#allocation9 + $0x100] sm:$0xf]
        %v1459 = vld [vmem:[#allocation9 + $0x104] sm:$0xf]
        %v1460 = vld [vmem:[#allocation9 + $0x108] sm:$0xf]
        %v1461 = vld [vmem:[#allocation9 + $0x10c] sm:$0xf]
        %v1462 = vld [vmem:[#allocation9 + $0x110] sm:$0xf]
        %v1463 = vld [vmem:[#allocation9 + $0x114] sm:$0xf]
        %v1464 = vld [vmem:[#allocation9 + $0x118] sm:$0xf]
        %v1465 = vld [vmem:[#allocation9 + $0x11c] sm:$0xf]
        %v1466 = vld [vmem:[#allocation9 + $0x120] sm:$0xf]
        %v1467 = vld [vmem:[#allocation9 + $0x124] sm:$0xf]
        %v1468 = vld [vmem:[#allocation9 + $0x128] sm:$0xf]
        %v1469 = vld [vmem:[#allocation9 + $0x12c] sm:$0xf]
        %v1470 = vld [vmem:[#allocation9 + $0x130] sm:$0xf]
        %v1471 = vld [vmem:[#allocation9 + $0x134] sm:$0xf]
        %v1472 = vld [vmem:[#allocation9 + $0x138] sm:$0xf]
        %v1473 = vld [vmem:[#allocation9 + $0x13c] sm:$0xf]
        %v1474 = vld [vmem:[#allocation9 + $0x140] sm:$0xf]
        %v1475 = vld [vmem:[#allocation9 + $0x144] sm:$0xf]
        %v1476 = vld [vmem:[#allocation9 + $0x148] sm:$0xf]
        %v1477 = vld [vmem:[#allocation9 + $0x14c] sm:$0xf]
        %v1478 = vld [vmem:[#allocation9 + $0x150] sm:$0xf]
        %v1479 = vld [vmem:[#allocation9 + $0x154] sm:$0xf]
        %v1480 = vld [vmem:[#allocation9 + $0x158] sm:$0xf]
        %v1481 = vld [vmem:[#allocation9 + $0x15c] sm:$0xf]
        %v1482 = vld [vmem:[#allocation9 + $0x160] sm:$0xf]
        %v1483 = vld [vmem:[#allocation9 + $0x164] sm:$0xf]
        %v1484 = vld [vmem:[#allocation9 + $0x168] sm:$0xf]
        %v1485 = vld [vmem:[#allocation9 + $0x16c] sm:$0xf]
        %v1486 = vld [vmem:[#allocation9 + $0x170] sm:$0xf]
        %v1487 = vld [vmem:[#allocation9 + $0x174] sm:$0xf]
        %v1488 = vld [vmem:[#allocation9 + $0x178] sm:$0xf]
        %v1489 = vld [vmem:[#allocation9 + $0x17c] sm:$0xf]
        %v1490 = vld [vmem:[#allocation9 + $0x180] sm:$0xf]
        %v1491 = vld [vmem:[#allocation9 + $0x184] sm:$0xf]
        %v1492 = vld [vmem:[#allocation9 + $0x188] sm:$0xf]
        %v1493 = vld [vmem:[#allocation9 + $0x18c] sm:$0xf]
        %v1494 = vld [vmem:[#allocation9 + $0x190] sm:$0xf]
        %v1495 = vld [vmem:[#allocation9 + $0x194] sm:$0xf]
        %v1496 = vld [vmem:[#allocation9 + $0x198] sm:$0xf]
        %v1497 = vld [vmem:[#allocation9 + $0x19c] sm:$0xf]
        %v1498 = vld [vmem:[#allocation9 + $0x1a0] sm:$0xf]
        %v1499 = vld [vmem:[#allocation9 + $0x1a4] sm:$0xf]
        %v1500 = vld [vmem:[#allocation9 + $0x1a8] sm:$0xf]
        %v1501 = vld [vmem:[#allocation9 + $0x1ac] sm:$0xf]
        %v1502 = vld [vmem:[#allocation9 + $0x1b0] sm:$0xf]
        %v1503 = vld [vmem:[#allocation9 + $0x1b4] sm:$0xf]
        %v1504 = vld [vmem:[#allocation9 + $0x1b8] sm:$0xf]
        %v1505 = vld [vmem:[#allocation9 + $0x1bc] sm:$0xf]
        %v1506 = vld [vmem:[#allocation9 + $0x1c0] sm:$0xf]
        %v1507 = vld [vmem:[#allocation9 + $0x1c4] sm:$0xf]
        %v1508 = vld [vmem:[#allocation9 + $0x1c8] sm:$0xf]
        %v1509 = vld [vmem:[#allocation9 + $0x1cc] sm:$0xf]
        %v1510 = vld [vmem:[#allocation9 + $0x1d0] sm:$0xf]
        %v1511 = vld [vmem:[#allocation9 + $0x1d4] sm:$0xf]
        %v1512 = vld [vmem:[#allocation9 + $0x1d8] sm:$0xf]
        %v1513 = vld [vmem:[#allocation9 + $0x1dc] sm:$0xf]
        %v1514 = vld [vmem:[#allocation9 + $0x1e0] sm:$0xf]
        %v1515 = vld [vmem:[#allocation9 + $0x1e4] sm:$0xf]
        %v1516 = vld [vmem:[#allocation9 + $0x1e8] sm:$0xf]
        %v1517 = vld [vmem:[#allocation9 + $0x1ec] sm:$0xf]
        %v1518 = vld [vmem:[#allocation9 + $0x1f0] sm:$0xf]
        %v1519 = vld [vmem:[#allocation9 + $0x1f4] sm:$0xf]
        %v1520 = vld [vmem:[#allocation9 + $0x1f8] sm:$0xf]
        %v1521 = vld [vmem:[#allocation9 + $0x1fc] sm:$0xf]
        %v1522 = vld [vmem:[#allocation9 + $0x200] sm:$0xf]
        %v1523 = vld [vmem:[#allocation9 + $0x204] sm:$0xf]
        %v1524 = vld [vmem:[#allocation9 + $0x208] sm:$0xf]
        %v1525 = vld [vmem:[#allocation9 + $0x20c] sm:$0xf]
        %v1526 = vld [vmem:[#allocation9 + $0x210] sm:$0xf]
        %v1527 = vld [vmem:[#allocation9 + $0x214] sm:$0xf]
        %v1528 = vld [vmem:[#allocation9 + $0x218] sm:$0xf]
        %v1529 = vld [vmem:[#allocation9 + $0x21c] sm:$0xf]
        %v1530 = vld [vmem:[#allocation9 + $0x220] sm:$0xf]
        %v1531 = vld [vmem:[#allocation9 + $0x224] sm:$0xf]
        %v1532 = vld [vmem:[#allocation9 + $0x228] sm:$0xf]
        %v1533 = vld [vmem:[#allocation9 + $0x22c] sm:$0xf]
        %v1534 = vld [vmem:[#allocation9 + $0x230] sm:$0xf]
        %v1535 = vld [vmem:[#allocation9 + $0x234] sm:$0xf]
        %v1536 = vld [vmem:[#allocation9 + $0x238] sm:$0xf]
        %v1537 = vld [vmem:[#allocation9 + $0x23c] sm:$0xf]
        %v1578 = vunpack.c.l.b16 %v1354
        %v1579 = vunpack.c.h.b16 %v1354
        %v1580 = vunpack.c.l.b16 %v1355
        %v1581 = vunpack.c.h.b16 %v1355
        %v1582 = vunpack.c.l.b16 %v1356
        %v1583 = vunpack.c.h.b16 %v1356
        %v1584 = vunpack.c.l.b16 %v1357
        %v1585 = vunpack.c.h.b16 %v1357
        %v1586 = vunpack.c.l.b16 %v1358
        %v1587 = vunpack.c.l.b16 %v1359
        %v1588 = vunpack.c.h.b16 %v1359
        %v1589 = vunpack.c.l.b16 %v1360
        %v1590 = vunpack.c.h.b16 %v1360
        %v1591 = vunpack.c.l.b16 %v1361
        %v1592 = vunpack.c.h.b16 %v1361
        %v1593 = vunpack.c.l.b16 %v1362
        %v1594 = vunpack.c.h.b16 %v1362
        %v1595 = vunpack.c.l.b16 %v1363
        %v1596 = vunpack.c.l.b16 %v1364
        %v1597 = vunpack.c.h.b16 %v1364
        %v1598 = vunpack.c.l.b16 %v1365
        %v1599 = vunpack.c.h.b16 %v1365
        %v1600 = vunpack.c.l.b16 %v1366
        %v1601 = vunpack.c.h.b16 %v1366
        %v1602 = vunpack.c.l.b16 %v1367
        %v1603 = vunpack.c.h.b16 %v1367
        %v1604 = vunpack.c.l.b16 %v1368
        %v1605 = vunpack.c.l.b16 %v1369
        %v1606 = vunpack.c.h.b16 %v1369
        %v1607 = vunpack.c.l.b16 %v1370
        %v1608 = vunpack.c.h.b16 %v1370
        %v1609 = vunpack.c.l.b16 %v1371
        %v1610 = vunpack.c.h.b16 %v1371
        %v1611 = vunpack.c.l.b16 %v1372
        %v1612 = vunpack.c.h.b16 %v1372
        %v1613 = vunpack.c.l.b16 %v1373
        %v1614 = vunpack.c.l.b16 %v1374
        %v1615 = vunpack.c.h.b16 %v1374
        %v1616 = vunpack.c.l.b16 %v1375
        %v1617 = vunpack.c.h.b16 %v1375
        %v1618 = vunpack.c.l.b16 %v1376
        %v1619 = vunpack.c.h.b16 %v1376
        %v1620 = vunpack.c.l.b16 %v1377
        %v1621 = vunpack.c.h.b16 %v1377
        %v1622 = vunpack.c.l.b16 %v1378
        %v1623 = vunpack.c.l.b16 %v1379
        %v1624 = vunpack.c.h.b16 %v1379
        %v1625 = vunpack.c.l.b16 %v1380
        %v1626 = vunpack.c.h.b16 %v1380
        %v1627 = vunpack.c.l.b16 %v1381
        %v1628 = vunpack.c.h.b16 %v1381
        %v1629 = vunpack.c.l.b16 %v1382
        %v1630 = vunpack.c.h.b16 %v1382
        %v1631 = vunpack.c.l.b16 %v1383
        %v1632 = vunpack.c.l.b16 %v1384
        %v1633 = vunpack.c.h.b16 %v1384
        %v1634 = vunpack.c.l.b16 %v1385
        %v1635 = vunpack.c.h.b16 %v1385
        %v1636 = vunpack.c.l.b16 %v1386
        %v1637 = vunpack.c.h.b16 %v1386
        %v1638 = vunpack.c.l.b16 %v1387
        %v1639 = vunpack.c.h.b16 %v1387
        %v1640 = vunpack.c.l.b16 %v1388
        %v1641 = vunpack.c.l.b16 %v1389
        %v1642 = vunpack.c.h.b16 %v1389
        %v1643 = vunpack.c.l.b16 %v1390
        %v1644 = vunpack.c.h.b16 %v1390
        %v1645 = vunpack.c.l.b16 %v1391
        %v1646 = vunpack.c.h.b16 %v1391
        %v1647 = vunpack.c.l.b16 %v1392
        %v1648 = vunpack.c.h.b16 %v1392
        %v1649 = vunpack.c.l.b16 %v1393
        %v1650 = vpack.c.b16 %v1587, %v1578
        %v1651 = vpack.c.b16 %v1588, %v1579
        %v1652 = vpack.c.b16 %v1589, %v1580
        %v1653 = vpack.c.b16 %v1590, %v1581
        %v1654 = vpack.c.b16 %v1591, %v1582
        %v1655 = vpack.c.b16 %v1592, %v1583
        %v1656 = vpack.c.b16 %v1593, %v1584
        %v1657 = vpack.c.b16 %v1594, %v1585
        %v1658 = vpack.c.b16 %v1595, %v1586
        %v1659 = vpack.c.b16 %v1605, %v1596
        %v1660 = vpack.c.b16 %v1606, %v1597
        %v1661 = vpack.c.b16 %v1607, %v1598
        %v1662 = vpack.c.b16 %v1608, %v1599
        %v1663 = vpack.c.b16 %v1609, %v1600
        %v1664 = vpack.c.b16 %v1610, %v1601
        %v1665 = vpack.c.b16 %v1611, %v1602
        %v1666 = vpack.c.b16 %v1612, %v1603
        %v1667 = vpack.c.b16 %v1613, %v1604
        %v1668 = vpack.c.b16 %v1623, %v1614
        %v1669 = vpack.c.b16 %v1624, %v1615
        %v1670 = vpack.c.b16 %v1625, %v1616
        %v1671 = vpack.c.b16 %v1626, %v1617
        %v1672 = vpack.c.b16 %v1627, %v1618
        %v1673 = vpack.c.b16 %v1628, %v1619
        %v1674 = vpack.c.b16 %v1629, %v1620
        %v1675 = vpack.c.b16 %v1630, %v1621
        %v1676 = vpack.c.b16 %v1631, %v1622
        %v1677 = vpack.c.b16 %v1641, %v1632
        %v1678 = vpack.c.b16 %v1642, %v1633
        %v1679 = vpack.c.b16 %v1643, %v1634
        %v1680 = vpack.c.b16 %v1644, %v1635
        %v1681 = vpack.c.b16 %v1645, %v1636
        %v1682 = vpack.c.b16 %v1646, %v1637
        %v1683 = vpack.c.b16 %v1647, %v1638
        %v1684 = vpack.c.b16 %v1648, %v1639
        %v1685 = vpack.c.b16 %v1649, %v1640
        %v1866 = vunpack.c.l.b16 %v1394
        %v1867 = vunpack.c.l.b16 %v1395
        %v1868 = vunpack.c.l.b16 %v1396
        %v1869 = vunpack.c.l.b16 %v1397
        %v1870 = vunpack.c.l.b16 %v1398
        %v1871 = vunpack.c.l.b16 %v1399
        %v1872 = vunpack.c.l.b16 %v1400
        %v1873 = vunpack.c.l.b16 %v1401
        %v1874 = vunpack.c.l.b16 %v1402
        %v1875 = vunpack.c.l.b16 %v1403
        %v1876 = vunpack.c.l.b16 %v1404
        %v1877 = vunpack.c.l.b16 %v1405
        %v1878 = vunpack.c.l.b16 %v1406
        %v1879 = vunpack.c.l.b16 %v1407
        %v1880 = vunpack.c.l.b16 %v1408
        %v1881 = vunpack.c.l.b16 %v1409
        %v1882 = vunpack.c.l.b16 %v1410
        %v1883 = vunpack.c.l.b16 %v1411
        %v1884 = vunpack.c.l.b16 %v1412
        %v1885 = vunpack.c.l.b16 %v1413
        %v1886 = vunpack.c.l.b16 %v1414
        %v1887 = vunpack.c.l.b16 %v1415
        %v1888 = vunpack.c.l.b16 %v1416
        %v1889 = vunpack.c.l.b16 %v1417
        %v1890 = vunpack.c.l.b16 %v1418
        %v1891 = vunpack.c.l.b16 %v1419
        %v1892 = vunpack.c.l.b16 %v1420
        %v1893 = vunpack.c.l.b16 %v1421
        %v1894 = vunpack.c.l.b16 %v1422
        %v1895 = vunpack.c.l.b16 %v1423
        %v1896 = vunpack.c.l.b16 %v1424
        %v1897 = vunpack.c.l.b16 %v1425
        %v1898 = vunpack.c.l.b16 %v1426
        %v1899 = vunpack.c.l.b16 %v1427
        %v1900 = vunpack.c.l.b16 %v1428
        %v1901 = vunpack.c.l.b16 %v1429
        %v1902 = vunpack.c.l.b16 %v1430
        %v1903 = vunpack.c.l.b16 %v1431
        %v1904 = vunpack.c.l.b16 %v1432
        %v1905 = vunpack.c.l.b16 %v1433
        %v1906 = vunpack.c.l.b16 %v1434
        %v1907 = vunpack.c.l.b16 %v1435
        %v1908 = vunpack.c.l.b16 %v1436
        %v1909 = vunpack.c.l.b16 %v1437
        %v1910 = vunpack.c.l.b16 %v1438
        %v1911 = vunpack.c.l.b16 %v1439
        %v1912 = vunpack.c.l.b16 %v1440
        %v1913 = vunpack.c.l.b16 %v1441
        %v1914 = vunpack.c.l.b16 %v1442
        %v1915 = vunpack.c.l.b16 %v1443
        %v1916 = vunpack.c.l.b16 %v1444
        %v1917 = vunpack.c.l.b16 %v1445
        %v1918 = vunpack.c.l.b16 %v1446
        %v1919 = vunpack.c.l.b16 %v1447
        %v1920 = vunpack.c.l.b16 %v1448
        %v1921 = vunpack.c.l.b16 %v1449
        %v1922 = vunpack.c.l.b16 %v1450
        %v1923 = vunpack.c.l.b16 %v1451
        %v1924 = vunpack.c.l.b16 %v1452
        %v1925 = vunpack.c.l.b16 %v1453
        %v1926 = vunpack.c.l.b16 %v1454
        %v1927 = vunpack.c.l.b16 %v1455
        %v1928 = vunpack.c.l.b16 %v1456
        %v1929 = vunpack.c.l.b16 %v1457
        %v1930 = vunpack.c.l.b16 %v1458
        %v1931 = vunpack.c.l.b16 %v1459
        %v1932 = vunpack.c.l.b16 %v1460
        %v1933 = vunpack.c.l.b16 %v1461
        %v1934 = vunpack.c.l.b16 %v1462
        %v1935 = vunpack.c.l.b16 %v1463
        %v1936 = vunpack.c.l.b16 %v1464
        %v1937 = vunpack.c.l.b16 %v1465
        %v1938 = vunpack.c.l.b16 %v1466
        %v1939 = vunpack.c.l.b16 %v1467
        %v1940 = vunpack.c.l.b16 %v1468
        %v1941 = vunpack.c.l.b16 %v1469
        %v1942 = vunpack.c.l.b16 %v1470
        %v1943 = vunpack.c.l.b16 %v1471
        %v1944 = vunpack.c.l.b16 %v1472
        %v1945 = vunpack.c.l.b16 %v1473
        %v1946 = vunpack.c.l.b16 %v1474
        %v1947 = vunpack.c.l.b16 %v1475
        %v1948 = vunpack.c.l.b16 %v1476
        %v1949 = vunpack.c.l.b16 %v1477
        %v1950 = vunpack.c.l.b16 %v1478
        %v1951 = vunpack.c.l.b16 %v1479
        %v1952 = vunpack.c.l.b16 %v1480
        %v1953 = vunpack.c.l.b16 %v1481
        %v1954 = vunpack.c.l.b16 %v1482
        %v1955 = vunpack.c.l.b16 %v1483
        %v1956 = vunpack.c.l.b16 %v1484
        %v1957 = vunpack.c.l.b16 %v1485
        %v1958 = vunpack.c.l.b16 %v1486
        %v1959 = vunpack.c.l.b16 %v1487
        %v1960 = vunpack.c.l.b16 %v1488
        %v1961 = vunpack.c.l.b16 %v1489
        %v1962 = vunpack.c.l.b16 %v1490
        %v1963 = vunpack.c.l.b16 %v1491
        %v1964 = vunpack.c.l.b16 %v1492
        %v1965 = vunpack.c.l.b16 %v1493
        %v1966 = vunpack.c.l.b16 %v1494
        %v1967 = vunpack.c.l.b16 %v1495
        %v1968 = vunpack.c.l.b16 %v1496
        %v1969 = vunpack.c.l.b16 %v1497
        %v1970 = vunpack.c.l.b16 %v1498
        %v1971 = vunpack.c.l.b16 %v1499
        %v1972 = vunpack.c.l.b16 %v1500
        %v1973 = vunpack.c.l.b16 %v1501
        %v1974 = vunpack.c.l.b16 %v1502
        %v1975 = vunpack.c.l.b16 %v1503
        %v1976 = vunpack.c.l.b16 %v1504
        %v1977 = vunpack.c.l.b16 %v1505
        %v1978 = vunpack.c.l.b16 %v1506
        %v1979 = vunpack.c.l.b16 %v1507
        %v1980 = vunpack.c.l.b16 %v1508
        %v1981 = vunpack.c.l.b16 %v1509
        %v1982 = vunpack.c.l.b16 %v1510
        %v1983 = vunpack.c.l.b16 %v1511
        %v1984 = vunpack.c.l.b16 %v1512
        %v1985 = vunpack.c.l.b16 %v1513
        %v1986 = vunpack.c.l.b16 %v1514
        %v1987 = vunpack.c.l.b16 %v1515
        %v1988 = vunpack.c.l.b16 %v1516
        %v1989 = vunpack.c.l.b16 %v1517
        %v1990 = vunpack.c.l.b16 %v1518
        %v1991 = vunpack.c.l.b16 %v1519
        %v1992 = vunpack.c.l.b16 %v1520
        %v1993 = vunpack.c.l.b16 %v1521
        %v1994 = vunpack.c.l.b16 %v1522
        %v1995 = vunpack.c.l.b16 %v1523
        %v1996 = vunpack.c.l.b16 %v1524
        %v1997 = vunpack.c.l.b16 %v1525
        %v1998 = vunpack.c.l.b16 %v1526
        %v1999 = vunpack.c.l.b16 %v1527
        %v2000 = vunpack.c.l.b16 %v1528
        %v2001 = vunpack.c.l.b16 %v1529
        %v2002 = vunpack.c.l.b16 %v1530
        %v2003 = vunpack.c.l.b16 %v1531
        %v2004 = vunpack.c.l.b16 %v1532
        %v2005 = vunpack.c.l.b16 %v1533
        %v2006 = vunpack.c.l.b16 %v1534
        %v2007 = vunpack.c.l.b16 %v1535
        %v2008 = vunpack.c.l.b16 %v1536
        %v2009 = vunpack.c.l.b16 %v1537
        %v2010 = vpack.c.b16 %v1867, %v1866
        %v2011 = vpack.c.b16 %v1869, %v1868
        %v2012 = vpack.c.b16 %v1871, %v1870
        %v2013 = vpack.c.b16 %v1873, %v1872
        %v2014 = vpack.c.b16 %v1875, %v1874
        %v2015 = vpack.c.b16 %v1877, %v1876
        %v2016 = vpack.c.b16 %v1879, %v1878
        %v2017 = vpack.c.b16 %v1881, %v1880
        %v2018 = vpack.c.b16 %v1883, %v1882
        %v2019 = vpack.c.b16 %v1885, %v1884
        %v2020 = vpack.c.b16 %v1887, %v1886
        %v2021 = vpack.c.b16 %v1889, %v1888
        %v2022 = vpack.c.b16 %v1891, %v1890
        %v2023 = vpack.c.b16 %v1893, %v1892
        %v2024 = vpack.c.b16 %v1895, %v1894
        %v2025 = vpack.c.b16 %v1897, %v1896
        %v2026 = vpack.c.b16 %v1899, %v1898
        %v2027 = vpack.c.b16 %v1901, %v1900
        %v2028 = vpack.c.b16 %v1903, %v1902
        %v2029 = vpack.c.b16 %v1905, %v1904
        %v2030 = vpack.c.b16 %v1907, %v1906
        %v2031 = vpack.c.b16 %v1909, %v1908
        %v2032 = vpack.c.b16 %v1911, %v1910
        %v2033 = vpack.c.b16 %v1913, %v1912
        %v2034 = vpack.c.b16 %v1915, %v1914
        %v2035 = vpack.c.b16 %v1917, %v1916
        %v2036 = vpack.c.b16 %v1919, %v1918
        %v2037 = vpack.c.b16 %v1921, %v1920
        %v2038 = vpack.c.b16 %v1923, %v1922
        %v2039 = vpack.c.b16 %v1925, %v1924
        %v2040 = vpack.c.b16 %v1927, %v1926
        %v2041 = vpack.c.b16 %v1929, %v1928
        %v2042 = vpack.c.b16 %v1931, %v1930
        %v2043 = vpack.c.b16 %v1933, %v1932
        %v2044 = vpack.c.b16 %v1935, %v1934
        %v2045 = vpack.c.b16 %v1937, %v1936
        %v2046 = vpack.c.b16 %v1939, %v1938
        %v2047 = vpack.c.b16 %v1941, %v1940
        %v2048 = vpack.c.b16 %v1943, %v1942
        %v2049 = vpack.c.b16 %v1945, %v1944
        %v2050 = vpack.c.b16 %v1947, %v1946
        %v2051 = vpack.c.b16 %v1949, %v1948
        %v2052 = vpack.c.b16 %v1951, %v1950
        %v2053 = vpack.c.b16 %v1953, %v1952
        %v2054 = vpack.c.b16 %v1955, %v1954
        %v2055 = vpack.c.b16 %v1957, %v1956
        %v2056 = vpack.c.b16 %v1959, %v1958
        %v2057 = vpack.c.b16 %v1961, %v1960
        %v2058 = vpack.c.b16 %v1963, %v1962
        %v2059 = vpack.c.b16 %v1965, %v1964
        %v2060 = vpack.c.b16 %v1967, %v1966
        %v2061 = vpack.c.b16 %v1969, %v1968
        %v2062 = vpack.c.b16 %v1971, %v1970
        %v2063 = vpack.c.b16 %v1973, %v1972
        %v2064 = vpack.c.b16 %v1975, %v1974
        %v2065 = vpack.c.b16 %v1977, %v1976
        %v2066 = vpack.c.b16 %v1979, %v1978
        %v2067 = vpack.c.b16 %v1981, %v1980
        %v2068 = vpack.c.b16 %v1983, %v1982
        %v2069 = vpack.c.b16 %v1985, %v1984
        %v2070 = vpack.c.b16 %v1987, %v1986
        %v2071 = vpack.c.b16 %v1989, %v1988
        %v2072 = vpack.c.b16 %v1991, %v1990
        %v2073 = vpack.c.b16 %v1993, %v1992
        %v2074 = vpack.c.b16 %v1995, %v1994
        %v2075 = vpack.c.b16 %v1997, %v1996
        %v2076 = vpack.c.b16 %v1999, %v1998
        %v2077 = vpack.c.b16 %v2001, %v2000
        %v2078 = vpack.c.b16 %v2003, %v2002
        %v2079 = vpack.c.b16 %v2005, %v2004
        %v2080 = vpack.c.b16 %v2007, %v2006
        %v2081 = vpack.c.b16 %v2009, %v2008
        %2154 = vmatprep.subr.bf16.mxu0 0
        %2155 = vmatpush1.bf16.msra.mxu0 %v2017
        %2156 = vmatprep.subr.bf16.mxu0 0
        %2157 = vmatpush1.bf16.msra.mxu0 %v2016
        %2158 = vmatprep.subr.bf16.mxu0 0
        %2159 = vmatpush1.bf16.msra.mxu0 %v2015
        %2160 = vmatprep.subr.bf16.mxu0 0
        %2161 = vmatpush1.bf16.msra.mxu0 %v2014
        %2162 = vmatprep.subr.bf16.mxu0 0
        %2163 = vmatpush1.bf16.msra.mxu0 %v2013
        %2164 = vmatprep.subr.bf16.mxu0 0
        %2165 = vmatpush1.bf16.msra.mxu0 %v2012
        %2166 = vmatprep.subr.bf16.mxu0 0
        %2167 = vmatpush1.bf16.msra.mxu0 %v2011
        %2168 = vmatprep.subr.bf16.mxu0 0
        %2169 = vmatpush1.bf16.msra.mxu0 %v2010
        %2170 = vmatprep.subr.bf16.mxu0 0
        %2171 = vmatpush2.bf16.msra.mxu0 %v2025
        %2172 = vmatprep.subr.bf16.mxu0 0
        %2173 = vmatpush2.bf16.msra.mxu0 %v2024
        %2174 = vmatprep.subr.bf16.mxu0 0
        %2175 = vmatpush2.bf16.msra.mxu0 %v2023
        %2176 = vmatprep.subr.bf16.mxu0 0
        %2177 = vmatpush2.bf16.msra.mxu0 %v2022
        %2178 = vmatprep.subr.bf16.mxu0 0
        %2179 = vmatpush2.bf16.msra.mxu0 %v2021
        %2180 = vmatprep.subr.bf16.mxu0 0
        %2181 = vmatpush2.bf16.msra.mxu0 %v2020
        %2182 = vmatprep.subr.bf16.mxu0 0
        %2183 = vmatpush2.bf16.msra.mxu0 %v2019
        %2184 = vmatprep.subr.bf16.mxu0 0
        %2185 = vmatpush2.bf16.msra.mxu0 %v2018
        %2186 = vmatprep.mubr.bf16.mxu0 %v1651
        %2187 = vmatmul.mubr.bf16.gmra.mxu0 %v1650
        %v2188 = vpop.f32.mrf.mxu0
        %v2189 = vadd.f32 0.0, %v2188
        %v2190 = vpop.f32.mrf.mxu0
        %v2191 = vpop.f32.mrf.mxu0
        %v2192 = vadd.f32 0.0, %v2191
        %v2193 = vpop.f32.mrf.mxu0
        %2194 = vmatprep.mubr.bf16.mxu0 %v1660
        %2195 = vmatmul.mubr.bf16.gmra.mxu0 %v1659
        %v2196 = vpop.f32.mrf.mxu0
        %v2197 = vadd.f32 0.0, %v2196
        %v2198 = vpop.f32.mrf.mxu0
        %v2199 = vpop.f32.mrf.mxu0
        %v2200 = vadd.f32 0.0, %v2199
        %v2201 = vpop.f32.mrf.mxu0
        %2202 = vmatprep.mubr.bf16.mxu0 %v1669
        %2203 = vmatmul.mubr.bf16.gmra.mxu0 %v1668
        %v2204 = vpop.f32.mrf.mxu0
        %v2205 = vadd.f32 0.0, %v2204
        %v2206 = vpop.f32.mrf.mxu0
        %v2207 = vpop.f32.mrf.mxu0
        %v2208 = vadd.f32 0.0, %v2207
        %v2209 = vpop.f32.mrf.mxu0
        %2210 = vmatprep.mubr.bf16.mxu0 %v1678
        %2211 = vmatmul.mubr.bf16.gmra.mxu0 %v1677
        %v2212 = vpop.f32.mrf.mxu0
        %v2213 = vadd.f32 0.0, %v2212
        %v2214 = vpop.f32.mrf.mxu0
        %v2215 = vpop.f32.mrf.mxu0
        %v2216 = vadd.f32 0.0, %v2215
        %v2217 = vpop.f32.mrf.mxu0
        %2218 = vdwg.mxu0
        %2219 = vmatprep.subr.bf16.mxu0 0
        %2220 = vmatpush1.bf16.msra.mxu0 %v2033
        %2221 = vmatprep.subr.bf16.mxu0 0
        %2222 = vmatpush1.bf16.msra.mxu0 %v2032
        %2223 = vmatprep.subr.bf16.mxu0 0
        %2224 = vmatpush1.bf16.msra.mxu0 %v2031
        %2225 = vmatprep.subr.bf16.mxu0 0
        %2226 = vmatpush1.bf16.msra.mxu0 %v2030
        %2227 = vmatprep.subr.bf16.mxu0 0
        %2228 = vmatpush1.bf16.msra.mxu0 %v2029
        %2229 = vmatprep.subr.bf16.mxu0 0
        %2230 = vmatpush1.bf16.msra.mxu0 %v2028
        %2231 = vmatprep.subr.bf16.mxu0 0
        %2232 = vmatpush1.bf16.msra.mxu0 %v2027
        %2233 = vmatprep.subr.bf16.mxu0 0
        %2234 = vmatpush1.bf16.msra.mxu0 %v2026
        %2235 = vmatprep.subr.bf16.mxu0 0
        %2236 = vmatpush2.bf16.msra.mxu0 %v2041
        %2237 = vmatprep.subr.bf16.mxu0 0
        %2238 = vmatpush2.bf16.msra.mxu0 %v2040
        %2239 = vmatprep.subr.bf16.mxu0 0
        %2240 = vmatpush2.bf16.msra.mxu0 %v2039
        %2241 = vmatprep.subr.bf16.mxu0 0
        %2242 = vmatpush2.bf16.msra.mxu0 %v2038
        %2243 = vmatprep.subr.bf16.mxu0 0
        %2244 = vmatpush2.bf16.msra.mxu0 %v2037
        %2245 = vmatprep.subr.bf16.mxu0 0
        %2246 = vmatpush2.bf16.msra.mxu0 %v2036
        %2247 = vmatprep.subr.bf16.mxu0 0
        %2248 = vmatpush2.bf16.msra.mxu0 %v2035
        %2249 = vmatprep.subr.bf16.mxu0 0
        %2250 = vmatpush2.bf16.msra.mxu0 %v2034
        %2251 = vmatprep.mubr.bf16.mxu0 %v1653
        %2252 = vmatmul.mubr.bf16.gmra.mxu0 %v1652
        %v2253 = vpop.f32.mrf.mxu0
        %v2254 = vadd.f32 %v2189, %v2253
        %v2255 = vpop.f32.mrf.mxu0
        %v2256 = vpop.f32.mrf.mxu0
        %v2257 = vadd.f32 %v2192, %v2256
        %v2258 = vpop.f32.mrf.mxu0
        %2259 = vmatprep.mubr.bf16.mxu0 %v1662
        %2260 = vmatmul.mubr.bf16.gmra.mxu0 %v1661
        %v2261 = vpop.f32.mrf.mxu0
        %v2262 = vadd.f32 %v2197, %v2261
        %v2263 = vpop.f32.mrf.mxu0
        %v2264 = vpop.f32.mrf.mxu0
        %v2265 = vadd.f32 %v2200, %v2264
        %v2266 = vpop.f32.mrf.mxu0
        %2267 = vmatprep.mubr.bf16.mxu0 %v1671
        %2268 = vmatmul.mubr.bf16.gmra.mxu0 %v1670
        %v2269 = vpop.f32.mrf.mxu0
        %v2270 = vadd.f32 %v2205, %v2269
        %v2271 = vpop.f32.mrf.mxu0
        %v2272 = vpop.f32.mrf.mxu0
        %v2273 = vadd.f32 %v2208, %v2272
        %v2274 = vpop.f32.mrf.mxu0
        %2275 = vmatprep.mubr.bf16.mxu0 %v1680
        %2276 = vmatmul.mubr.bf16.gmra.mxu0 %v1679
        %v2277 = vpop.f32.mrf.mxu0
        %v2278 = vadd.f32 %v2213, %v2277
        %v2279 = vpop.f32.mrf.mxu0
        %v2280 = vpop.f32.mrf.mxu0
        %v2281 = vadd.f32 %v2216, %v2280
        %v2282 = vpop.f32.mrf.mxu0
        %2283 = vdwg.mxu0
        %2284 = vmatprep.subr.bf16.mxu0 0
        %2285 = vmatpush1.bf16.msra.mxu0 %v2049
        %2286 = vmatprep.subr.bf16.mxu0 0
        %2287 = vmatpush1.bf16.msra.mxu0 %v2048
        %2288 = vmatprep.subr.bf16.mxu0 0
        %2289 = vmatpush1.bf16.msra.mxu0 %v2047
        %2290 = vmatprep.subr.bf16.mxu0 0
        %2291 = vmatpush1.bf16.msra.mxu0 %v2046
        %2292 = vmatprep.subr.bf16.mxu0 0
        %2293 = vmatpush1.bf16.msra.mxu0 %v2045
        %2294 = vmatprep.subr.bf16.mxu0 0
        %2295 = vmatpush1.bf16.msra.mxu0 %v2044
        %2296 = vmatprep.subr.bf16.mxu0 0
        %2297 = vmatpush1.bf16.msra.mxu0 %v2043
        %2298 = vmatprep.subr.bf16.mxu0 0
        %2299 = vmatpush1.bf16.msra.mxu0 %v2042
        %2300 = vmatprep.subr.bf16.mxu0 0
        %2301 = vmatpush2.bf16.msra.mxu0 %v2057
        %2302 = vmatprep.subr.bf16.mxu0 0
        %2303 = vmatpush2.bf16.msra.mxu0 %v2056
        %2304 = vmatprep.subr.bf16.mxu0 0
        %2305 = vmatpush2.bf16.msra.mxu0 %v2055
        %2306 = vmatprep.subr.bf16.mxu0 0
        %2307 = vmatpush2.bf16.msra.mxu0 %v2054
        %2308 = vmatprep.subr.bf16.mxu0 0
        %2309 = vmatpush2.bf16.msra.mxu0 %v2053
        %2310 = vmatprep.subr.bf16.mxu0 0
        %2311 = vmatpush2.bf16.msra.mxu0 %v2052
        %2312 = vmatprep.subr.bf16.mxu0 0
        %2313 = vmatpush2.bf16.msra.mxu0 %v2051
        %2314 = vmatprep.subr.bf16.mxu0 0
        %2315 = vmatpush2.bf16.msra.mxu0 %v2050
        %2316 = vmatprep.mubr.bf16.mxu0 %v1655
        %2317 = vmatmul.mubr.bf16.gmra.mxu0 %v1654
        %v2318 = vpop.f32.mrf.mxu0
        %v2319 = vadd.f32 %v2254, %v2318
        %v2320 = vpop.f32.mrf.mxu0
        %v2321 = vpop.f32.mrf.mxu0
        %v2322 = vadd.f32 %v2257, %v2321
        %v2323 = vpop.f32.mrf.mxu0
        %2324 = vmatprep.mubr.bf16.mxu0 %v1664
        %2325 = vmatmul.mubr.bf16.gmra.mxu0 %v1663
        %v2326 = vpop.f32.mrf.mxu0
        %v2327 = vadd.f32 %v2262, %v2326
        %v2328 = vpop.f32.mrf.mxu0
        %v2329 = vpop.f32.mrf.mxu0
        %v2330 = vadd.f32 %v2265, %v2329
        %v2331 = vpop.f32.mrf.mxu0
        %2332 = vmatprep.mubr.bf16.mxu0 %v1673
        %2333 = vmatmul.mubr.bf16.gmra.mxu0 %v1672
        %v2334 = vpop.f32.mrf.mxu0
        %v2335 = vadd.f32 %v2270, %v2334
        %v2336 = vpop.f32.mrf.mxu0
        %v2337 = vpop.f32.mrf.mxu0
        %v2338 = vadd.f32 %v2273, %v2337
        %v2339 = vpop.f32.mrf.mxu0
        %2340 = vmatprep.mubr.bf16.mxu0 %v1682
        %2341 = vmatmul.mubr.bf16.gmra.mxu0 %v1681
        %v2342 = vpop.f32.mrf.mxu0
        %v2343 = vadd.f32 %v2278, %v2342
        %v2344 = vpop.f32.mrf.mxu0
        %v2345 = vpop.f32.mrf.mxu0
        %v2346 = vadd.f32 %v2281, %v2345
        %v2347 = vpop.f32.mrf.mxu0
        %2348 = vdwg.mxu0
        %2349 = vmatprep.subr.bf16.mxu0 0
        %2350 = vmatpush1.bf16.msra.mxu0 %v2065
        %2351 = vmatprep.subr.bf16.mxu0 0
        %2352 = vmatpush1.bf16.msra.mxu0 %v2064
        %2353 = vmatprep.subr.bf16.mxu0 0
        %2354 = vmatpush1.bf16.msra.mxu0 %v2063
        %2355 = vmatprep.subr.bf16.mxu0 0
        %2356 = vmatpush1.bf16.msra.mxu0 %v2062
        %2357 = vmatprep.subr.bf16.mxu0 0
        %2358 = vmatpush1.bf16.msra.mxu0 %v2061
        %2359 = vmatprep.subr.bf16.mxu0 0
        %2360 = vmatpush1.bf16.msra.mxu0 %v2060
        %2361 = vmatprep.subr.bf16.mxu0 0
        %2362 = vmatpush1.bf16.msra.mxu0 %v2059
        %2363 = vmatprep.subr.bf16.mxu0 0
        %2364 = vmatpush1.bf16.msra.mxu0 %v2058
        %2365 = vmatprep.subr.bf16.mxu0 0
        %2366 = vmatpush2.bf16.msra.mxu0 %v2073
        %2367 = vmatprep.subr.bf16.mxu0 0
        %2368 = vmatpush2.bf16.msra.mxu0 %v2072
        %2369 = vmatprep.subr.bf16.mxu0 0
        %2370 = vmatpush2.bf16.msra.mxu0 %v2071
        %2371 = vmatprep.subr.bf16.mxu0 0
        %2372 = vmatpush2.bf16.msra.mxu0 %v2070
        %2373 = vmatprep.subr.bf16.mxu0 0
        %2374 = vmatpush2.bf16.msra.mxu0 %v2069
        %2375 = vmatprep.subr.bf16.mxu0 0
        %2376 = vmatpush2.bf16.msra.mxu0 %v2068
        %2377 = vmatprep.subr.bf16.mxu0 0
        %2378 = vmatpush2.bf16.msra.mxu0 %v2067
        %2379 = vmatprep.subr.bf16.mxu0 0
        %2380 = vmatpush2.bf16.msra.mxu0 %v2066
        %2381 = vmatprep.mubr.bf16.mxu0 %v1657
        %2382 = vmatmul.mubr.bf16.gmra.mxu0 %v1656
        %v2383 = vpop.f32.mrf.mxu0
        %v2384 = vadd.f32 %v2319, %v2383
        %v2385 = vpop.f32.mrf.mxu0
        %v2386 = vpop.f32.mrf.mxu0
        %v2387 = vadd.f32 %v2322, %v2386
        %v2388 = vpop.f32.mrf.mxu0
        %2389 = vmatprep.mubr.bf16.mxu0 %v1666
        %2390 = vmatmul.mubr.bf16.gmra.mxu0 %v1665
        %v2391 = vpop.f32.mrf.mxu0
        %v2392 = vadd.f32 %v2327, %v2391
        %v2393 = vpop.f32.mrf.mxu0
        %v2394 = vpop.f32.mrf.mxu0
        %v2395 = vadd.f32 %v2330, %v2394
        %v2396 = vpop.f32.mrf.mxu0
        %2397 = vmatprep.mubr.bf16.mxu0 %v1675
        %2398 = vmatmul.mubr.bf16.gmra.mxu0 %v1674
        %v2399 = vpop.f32.mrf.mxu0
        %v2400 = vadd.f32 %v2335, %v2399
        %v2401 = vpop.f32.mrf.mxu0
        %v2402 = vpop.f32.mrf.mxu0
        %v2403 = vadd.f32 %v2338, %v2402
        %v2404 = vpop.f32.mrf.mxu0
        %2405 = vmatprep.mubr.bf16.mxu0 %v1684
        %2406 = vmatmul.mubr.bf16.gmra.mxu0 %v1683
        %v2407 = vpop.f32.mrf.mxu0
        %v2408 = vadd.f32 %v2343, %v2407
        %v2409 = vpop.f32.mrf.mxu0
        %v2410 = vpop.f32.mrf.mxu0
        %v2411 = vadd.f32 %v2346, %v2410
        %v2412 = vpop.f32.mrf.mxu0
        %2413 = vdwg.mxu0
        %2414 = vmatprep.subr.bf16.mxu0 0
        %2415 = vmatpush1.bf16.msra.mxu0 %v2081
        %2416 = vmatprep.subr.bf16.mxu0 0
        %2417 = vmatpush1.bf16.msra.mxu0 %v2080
        %2418 = vmatprep.subr.bf16.mxu0 0
        %2419 = vmatpush1.bf16.msra.mxu0 %v2079
        %2420 = vmatprep.subr.bf16.mxu0 0
        %2421 = vmatpush1.bf16.msra.mxu0 %v2078
        %2422 = vmatprep.subr.bf16.mxu0 0
        %2423 = vmatpush1.bf16.msra.mxu0 %v2077
        %2424 = vmatprep.subr.bf16.mxu0 0
        %2425 = vmatpush1.bf16.msra.mxu0 %v2076
        %2426 = vmatprep.subr.bf16.mxu0 0
        %2427 = vmatpush1.bf16.msra.mxu0 %v2075
        %2428 = vmatprep.subr.bf16.mxu0 0
        %2429 = vmatpush1.bf16.msra.mxu0 %v2074
        %2430 = vmatprep.subr.bf16.mxu0 0
        %2431 = vmatpush2.bf16.msra.mxu0 0
        %2432 = vmatprep.subr.bf16.mxu0 0
        %2433 = vmatpush2.bf16.msra.mxu0 0
        %2434 = vmatprep.subr.bf16.mxu0 0
        %2435 = vmatpush2.bf16.msra.mxu0 0
        %2436 = vmatprep.subr.bf16.mxu0 0
        %2437 = vmatpush2.bf16.msra.mxu0 0
        %2438 = vmatprep.subr.bf16.mxu0 0
        %2439 = vmatpush2.bf16.msra.mxu0 0
        %2440 = vmatprep.subr.bf16.mxu0 0
        %2441 = vmatpush2.bf16.msra.mxu0 0
        %2442 = vmatprep.subr.bf16.mxu0 0
        %2443 = vmatpush2.bf16.msra.mxu0 0
        %2444 = vmatprep.subr.bf16.mxu0 0
        %2445 = vmatpush2.bf16.msra.mxu0 0
        %2446 = vmatprep.mubr.bf16.mxu0 0
        %2447 = vmatmul.mubr.bf16.gmra.mxu0 %v1658
        %v2448 = vpop.f32.mrf.mxu0
        %v2449 = vadd.f32 %v2384, %v2448
        %v2450 = vpop.f32.mrf.mxu0
        %v2451 = vpop.f32.mrf.mxu0
        %v2452 = vadd.f32 %v2387, %v2451
        %v2453 = vpop.f32.mrf.mxu0
        %2454 = vmatprep.mubr.bf16.mxu0 0
        %2455 = vmatmul.mubr.bf16.gmra.mxu0 %v1667
        %v2456 = vpop.f32.mrf.mxu0
        %v2457 = vadd.f32 %v2392, %v2456
        %v2458 = vpop.f32.mrf.mxu0
        %v2459 = vpop.f32.mrf.mxu0
        %v2460 = vadd.f32 %v2395, %v2459
        %v2461 = vpop.f32.mrf.mxu0
        %2462 = vmatprep.mubr.bf16.mxu0 0
        %2463 = vmatmul.mubr.bf16.gmra.mxu0 %v1676
        %v2464 = vpop.f32.mrf.mxu0
        %v2465 = vadd.f32 %v2400, %v2464
        %v2466 = vpop.f32.mrf.mxu0
        %v2467 = vpop.f32.mrf.mxu0
        %v2468 = vadd.f32 %v2403, %v2467
        %v2469 = vpop.f32.mrf.mxu0
        %2470 = vmatprep.mubr.bf16.mxu0 0
        %2471 = vmatmul.mubr.bf16.gmra.mxu0 %v1685
        %v2472 = vpop.f32.mrf.mxu0
        %v2473 = vadd.f32 %v2408, %v2472
        %v2474 = vpop.f32.mrf.mxu0
        %v2475 = vpop.f32.mrf.mxu0
        %v2476 = vadd.f32 %v2411, %v2475
        %v2477 = vpop.f32.mrf.mxu0
        %2478 = vdwg.mxu0
        %v2479 = vld [vmem:[%s2] sm:$0x1]
        %v2481 = vlaneseq
        %v2482 = vshrl.u32 %v2481, 7
        %v2483 = vsub.s32 0, %v2482
        %v2484 = vrot.slane %v2479, %v2483
        %v2486 = vmul.f32 %v2449, %v2484
        %v2487 = vmul.f32 %v2452, %v2484
        %v2488 = vmul.f32 %v2457, %v2484
        %v2489 = vmul.f32 %v2460, %v2484
        %v2490 = vmul.f32 %v2465, %v2484
        %v2491 = vmul.f32 %v2468, %v2484
        %v2492 = vmul.f32 %v2473, %v2484
        %v2493 = vmul.f32 %v2476, %v2484
        %v2494 = vld [vmem:[%s3] sm:$0x1]
        %v2496 = vlaneseq
        %v2497 = vshrl.u32 %v2496, 7
        %v2498 = vsub.s32 0, %v2497
        %v2499 = vrot.slane %v2494, %v2498
        %v2501 = vadd.f32 %v2486, %v2499
        %v2502 = vadd.f32 %v2487, %v2499
        %v2503 = vadd.f32 %v2488, %v2499
        %v2504 = vadd.f32 %v2489, %v2499
        %v2505 = vadd.f32 %v2490, %v2499
        %v2506 = vadd.f32 %v2491, %v2499
        %v2507 = vadd.f32 %v2492, %v2499
        %v2508 = vadd.f32 %v2493, %v2499
        %v2509 = vmax.f32 %v2501, 0.0
        %v2510 = vmax.f32 %v2502, 0.0
        %v2511 = vmax.f32 %v2503, 0.0
        %v2512 = vmax.f32 %v2504, 0.0
        %v2513 = vmax.f32 %v2505, 0.0
        %v2514 = vmax.f32 %v2506, 0.0
        %v2515 = vmax.f32 %v2507, 0.0
        %v2516 = vmax.f32 %v2508, 0.0
        %2517 = vst [vmem:[#allocation3] sm:$0xf] 0
        %2518 = vst [vmem:[#allocation3 + $0x4] sm:$0xf] 0
        %v2519 = vld [vmem:[#allocation3 + $0x8] sm:$0x1]
        %v2520 = vsel %vm390, 0, %v2519
        %2521 = vst [vmem:[#allocation3 + $0x8] sm:$0x1] %v2520
        %s2522 = scalar_lea.vmem [#allocation3], 108
        %2523 = vst [vmem:[%s2522] sm:$0xf] 0
        %2524 = vst [vmem:[%s2522 + $0x4] sm:$0xf] 0
        %v2525 = vld [vmem:[%s2522 + $0x8] sm:$0x1]
        %v2526 = vsel %vm390, 0, %v2525
        %2527 = vst [vmem:[%s2522 + $0x8] sm:$0x1] %v2526
        %s2528 = scalar_lea.vmem [#allocation3], 12
        %v2529 = vld [vmem:[%s2528] sm:$0x8]
        %v2530 = vsel %vm403, 0, %v2529
        %2531 = vst [vmem:[%s2528] sm:$0x8] %v2530
        %v2532 = vld [vmem:[%s2528 + $0xc] sm:$0x8]
        %v2533 = vsel %vm403, 0, %v2532
        %2534 = vst [vmem:[%s2528 + $0xc] sm:$0x8] %v2533
        %v2535 = vld [vmem:[%s2528 + $0x18] sm:$0x8]
        %v2536 = vsel %vm403, 0, %v2535
        %2537 = vst [vmem:[%s2528 + $0x18] sm:$0x8] %v2536
        %v2538 = vld [vmem:[%s2528 + $0x24] sm:$0x8]
        %v2539 = vsel %vm403, 0, %v2538
        %2540 = vst [vmem:[%s2528 + $0x24] sm:$0x8] %v2539
        %v2541 = vld [vmem:[%s2528 + $0x30] sm:$0x8]
        %v2542 = vsel %vm403, 0, %v2541
        %2543 = vst [vmem:[%s2528 + $0x30] sm:$0x8] %v2542
        %v2544 = vld [vmem:[%s2528 + $0x3c] sm:$0x8]
        %v2545 = vsel %vm403, 0, %v2544
        %2546 = vst [vmem:[%s2528 + $0x3c] sm:$0x8] %v2545
        %v2547 = vld [vmem:[%s2528 + $0x48] sm:$0x8]
        %v2548 = vsel %vm403, 0, %v2547
        %2549 = vst [vmem:[%s2528 + $0x48] sm:$0x8] %v2548
        %v2550 = vld [vmem:[%s2528 + $0x54] sm:$0x8]
        %v2551 = vsel %vm403, 0, %v2550
        %2552 = vst [vmem:[%s2528 + $0x54] sm:$0x8] %v2551
        %v2553 = vld [vmem:[%s2528 + $0x8] sm:$0x1]
        %v2554 = vsel %vm390, 0, %v2553
        %2555 = vst [vmem:[%s2528 + $0x8] sm:$0x1] %v2554
        %v2556 = vld [vmem:[%s2528 + $0x14] sm:$0x1]
        %v2557 = vsel %vm390, 0, %v2556
        %2558 = vst [vmem:[%s2528 + $0x14] sm:$0x1] %v2557
        %v2559 = vld [vmem:[%s2528 + $0x20] sm:$0x1]
        %v2560 = vsel %vm390, 0, %v2559
        %2561 = vst [vmem:[%s2528 + $0x20] sm:$0x1] %v2560
        %v2562 = vld [vmem:[%s2528 + $0x2c] sm:$0x1]
        %v2563 = vsel %vm390, 0, %v2562
        %2564 = vst [vmem:[%s2528 + $0x2c] sm:$0x1] %v2563
        %v2565 = vld [vmem:[%s2528 + $0x38] sm:$0x1]
        %v2566 = vsel %vm390, 0, %v2565
        %2567 = vst [vmem:[%s2528 + $0x38] sm:$0x1] %v2566
        %v2568 = vld [vmem:[%s2528 + $0x44] sm:$0x1]
        %v2569 = vsel %vm390, 0, %v2568
        %2570 = vst [vmem:[%s2528 + $0x44] sm:$0x1] %v2569
        %v2571 = vld [vmem:[%s2528 + $0x50] sm:$0x1]
        %v2572 = vsel %vm390, 0, %v2571
        %2573 = vst [vmem:[%s2528 + $0x50] sm:$0x1] %v2572
        %v2574 = vld [vmem:[%s2528 + $0x5c] sm:$0x1]
        %v2575 = vsel %vm390, 0, %v2574
        %2576 = vst [vmem:[%s2528 + $0x5c] sm:$0x1] %v2575
        %v2577 = vpack.c.bf16 %v2510, %v2509
        %v2578 = vpack.c.bf16 %v2512, %v2511
        %v2579 = vpack.c.bf16 %v2514, %v2513
        %v2580 = vpack.c.bf16 %v2516, %v2515
        %v2585 = vunpack.c.l.b16 %v2577
        %v2586 = vunpack.c.h.b16 %v2577
        %v2587 = vunpack.c.l.b16 %v2578
        %v2588 = vunpack.c.h.b16 %v2578
        %v2589 = vunpack.c.l.b16 %v2579
        %v2590 = vunpack.c.h.b16 %v2579
        %v2591 = vunpack.c.l.b16 %v2580
        %v2592 = vunpack.c.h.b16 %v2580
        %v2593 = vpack.c.b16 %v2585, %v2585
        %v2594 = vpack.c.b16 %v2586, %v2586
        %v2595 = vpack.c.b16 %v2587, %v2587
        %v2596 = vpack.c.b16 %v2588, %v2588
        %v2597 = vpack.c.b16 %v2589, %v2589
        %v2598 = vpack.c.b16 %v2590, %v2590
        %v2599 = vpack.c.b16 %v2591, %v2591
        %v2600 = vpack.c.b16 %v2592, %v2592
        %2609 = vst [vmem:[%s2528 + $0x4] sm:$0xf] %v2593
        %2610 = vst [vmem:[%s2528 + $0x10] sm:$0xf] %v2594
        %2611 = vst [vmem:[%s2528 + $0x1c] sm:$0xf] %v2595
        %2612 = vst [vmem:[%s2528 + $0x28] sm:$0xf] %v2596
        %2613 = vst [vmem:[%s2528 + $0x34] sm:$0xf] %v2597
        %2614 = vst [vmem:[%s2528 + $0x40] sm:$0xf] %v2598
        %2615 = vst [vmem:[%s2528 + $0x4c] sm:$0xf] %v2599
        %2616 = vst [vmem:[%s2528 + $0x58] sm:$0xf] %v2600
        %v2617 = vld [vmem:[#allocation3] sm:$0x8]
        %v2618 = vld [vmem:[#allocation3 + $0x4] sm:$0xf]
        %v2619 = vld [vmem:[#allocation3 + $0xc] sm:$0x8]
        %v2620 = vld [vmem:[#allocation3 + $0x10] sm:$0xf]
        %v2621 = vld [vmem:[#allocation3 + $0x18] sm:$0x8]
        %v2622 = vld [vmem:[#allocation3 + $0x1c] sm:$0xf]
        %v2623 = vld [vmem:[#allocation3 + $0x24] sm:$0x8]
        %v2624 = vld [vmem:[#allocation3 + $0x28] sm:$0xf]
        %v2625 = vld [vmem:[#allocation3 + $0x30] sm:$0x8]
        %v2626 = vld [vmem:[#allocation3 + $0x34] sm:$0xf]
        %v2627 = vld [vmem:[#allocation3 + $0x3c] sm:$0x8]
        %v2628 = vld [vmem:[#allocation3 + $0x40] sm:$0xf]
        %v2629 = vld [vmem:[#allocation3 + $0x48] sm:$0x8]
        %v2630 = vld [vmem:[#allocation3 + $0x4c] sm:$0xf]
        %v2631 = vld [vmem:[#allocation3 + $0x54] sm:$0x8]
        %v2632 = vld [vmem:[#allocation3 + $0x58] sm:$0xf]
        %v2634 = vshrl.u32 %v2617, 16
        %v2636 = vrot.slane %v2634, 7
        %v2637 = vrot.slane %v2636, 4
        %v2639 = vshrl.u32 %v2618, 16
        %v2641 = vrot.slane %v2639, 7
        %v2642 = vshll.u32 %v2618, 16
        %v2644 = vor.u32 %v2641, %v2642
        %v2645 = vsel %vm477, %v2637, %v2644
        %v2647 = vshrl.u32 %v2619, 16
        %v2649 = vrot.slane %v2647, 7
        %v2650 = vrot.slane %v2649, 4
        %v2652 = vshrl.u32 %v2620, 16
        %v2654 = vrot.slane %v2652, 7
        %v2655 = vshll.u32 %v2620, 16
        %v2657 = vor.u32 %v2654, %v2655
        %v2658 = vsel %vm477, %v2650, %v2657
        %v2660 = vshrl.u32 %v2621, 16
        %v2662 = vrot.slane %v2660, 7
        %v2663 = vrot.slane %v2662, 4
        %v2665 = vshrl.u32 %v2622, 16
        %v2667 = vrot.slane %v2665, 7
        %v2668 = vshll.u32 %v2622, 16
        %v2670 = vor.u32 %v2667, %v2668
        %v2671 = vsel %vm477, %v2663, %v2670
        %v2673 = vshrl.u32 %v2623, 16
        %v2675 = vrot.slane %v2673, 7
        %v2676 = vrot.slane %v2675, 4
        %v2678 = vshrl.u32 %v2624, 16
        %v2680 = vrot.slane %v2678, 7
        %v2681 = vshll.u32 %v2624, 16
        %v2683 = vor.u32 %v2680, %v2681
        %v2684 = vsel %vm477, %v2676, %v2683
        %v2686 = vshrl.u32 %v2625, 16
        %v2688 = vrot.slane %v2686, 7
        %v2689 = vrot.slane %v2688, 4
        %v2691 = vshrl.u32 %v2626, 16
        %v2693 = vrot.slane %v2691, 7
        %v2694 = vshll.u32 %v2626, 16
        %v2696 = vor.u32 %v2693, %v2694
        %v2697 = vsel %vm477, %v2689, %v2696
        %v2699 = vshrl.u32 %v2627, 16
        %v2701 = vrot.slane %v2699, 7
        %v2702 = vrot.slane %v2701, 4
        %v2704 = vshrl.u32 %v2628, 16
        %v2706 = vrot.slane %v2704, 7
        %v2707 = vshll.u32 %v2628, 16
        %v2709 = vor.u32 %v2706, %v2707
        %v2710 = vsel %vm477, %v2702, %v2709
        %v2712 = vshrl.u32 %v2629, 16
        %v2714 = vrot.slane %v2712, 7
        %v2715 = vrot.slane %v2714, 4
        %v2717 = vshrl.u32 %v2630, 16
        %v2719 = vrot.slane %v2717, 7
        %v2720 = vshll.u32 %v2630, 16
        %v2722 = vor.u32 %v2719, %v2720
        %v2723 = vsel %vm477, %v2715, %v2722
        %v2725 = vshrl.u32 %v2631, 16
        %v2727 = vrot.slane %v2725, 7
        %v2728 = vrot.slane %v2727, 4
        %v2730 = vshrl.u32 %v2632, 16
        %v2732 = vrot.slane %v2730, 7
        %v2733 = vshll.u32 %v2632, 16
        %v2735 = vor.u32 %v2732, %v2733
        %v2736 = vsel %vm477, %v2728, %v2735
        %2745 = vst [vmem:[#allocation5] sm:$0xf] %v2645
        %2746 = vst [vmem:[#allocation5 + $0x24] sm:$0xf] %v2658
        %2747 = vst [vmem:[#allocation5 + $0x48] sm:$0xf] %v2671
        %2748 = vst [vmem:[#allocation5 + $0x6c] sm:$0xf] %v2684
        %2749 = vst [vmem:[#allocation5 + $0x90] sm:$0xf] %v2697
        %2750 = vst [vmem:[#allocation5 + $0xb4] sm:$0xf] %v2710
        %2751 = vst [vmem:[#allocation5 + $0xd8] sm:$0xf] %v2723
        %2752 = vst [vmem:[#allocation5 + $0xfc] sm:$0xf] %v2736
        %v2753 = vld [vmem:[#allocation3 + $0x4] sm:$0xf]
        %v2754 = vld [vmem:[#allocation3 + $0x10] sm:$0xf]
        %v2755 = vld [vmem:[#allocation3 + $0x1c] sm:$0xf]
        %v2756 = vld [vmem:[#allocation3 + $0x28] sm:$0xf]
        %v2757 = vld [vmem:[#allocation3 + $0x34] sm:$0xf]
        %v2758 = vld [vmem:[#allocation3 + $0x40] sm:$0xf]
        %v2759 = vld [vmem:[#allocation3 + $0x4c] sm:$0xf]
        %v2760 = vld [vmem:[#allocation3 + $0x58] sm:$0xf]
        %2761 = vst [vmem:[#allocation5 + $0x4] sm:$0xf] %v2753
        %2762 = vst [vmem:[#allocation5 + $0x28] sm:$0xf] %v2754
        %2763 = vst [vmem:[#allocation5 + $0x4c] sm:$0xf] %v2755
        %2764 = vst [vmem:[#allocation5 + $0x70] sm:$0xf] %v2756
        %2765 = vst [vmem:[#allocation5 + $0x94] sm:$0xf] %v2757
        %2766 = vst [vmem:[#allocation5 + $0xb8] sm:$0xf] %v2758
        %2767 = vst [vmem:[#allocation5 + $0xdc] sm:$0xf] %v2759
        %2768 = vst [vmem:[#allocation5 + $0x100] sm:$0xf] %v2760
        %v2769 = vld [vmem:[#allocation3 + $0x4] sm:$0xf]
        %v2770 = vld [vmem:[#allocation3 + $0x8] sm:$0x1]
        %v2771 = vld [vmem:[#allocation3 + $0x10] sm:$0xf]
        %v2772 = vld [vmem:[#allocation3 + $0x14] sm:$0x1]
        %v2773 = vld [vmem:[#allocation3 + $0x1c] sm:$0xf]
        %v2774 = vld [vmem:[#allocation3 + $0x20] sm:$0x1]
        %v2775 = vld [vmem:[#allocation3 + $0x28] sm:$0xf]
        %v2776 = vld [vmem:[#allocation3 + $0x2c] sm:$0x1]
        %v2777 = vld [vmem:[#allocation3 + $0x34] sm:$0xf]
        %v2778 = vld [vmem:[#allocation3 + $0x38] sm:$0x1]
        %v2779 = vld [vmem:[#allocation3 + $0x40] sm:$0xf]
        %v2780 = vld [vmem:[#allocation3 + $0x44] sm:$0x1]
        %v2781 = vld [vmem:[#allocation3 + $0x4c] sm:$0xf]
        %v2782 = vld [vmem:[#allocation3 + $0x50] sm:$0x1]
        %v2783 = vld [vmem:[#allocation3 + $0x58] sm:$0xf]
        %v2784 = vld [vmem:[#allocation3 + $0x5c] sm:$0x1]
        %v2786 = vshrl.u32 %v2769, 16
        %v2788 = vrot.slane %v2786, 4
        %v2789 = vshll.u32 %v2769, 16
        %v2791 = vrot.slane %v2789, 5
        %v2792 = vor.u32 %v2788, %v2791
        %v2793 = vrot.slane %v2792, 4
        %v2795 = vshll.u32 %v2770, 16
        %v2797 = vrot.slane %v2795, 5
        %v2798 = vsel %vm632, %v2793, %v2797
        %v2800 = vshrl.u32 %v2771, 16
        %v2802 = vrot.slane %v2800, 4
        %v2803 = vshll.u32 %v2771, 16
        %v2805 = vrot.slane %v2803, 5
        %v2806 = vor.u32 %v2802, %v2805
        %v2807 = vrot.slane %v2806, 4
        %v2809 = vshll.u32 %v2772, 16
        %v2811 = vrot.slane %v2809, 5
        %v2812 = vsel %vm632, %v2807, %v2811
        %v2814 = vshrl.u32 %v2773, 16
        %v2816 = vrot.slane %v2814, 4
        %v2817 = vshll.u32 %v2773, 16
        %v2819 = vrot.slane %v2817, 5
        %v2820 = vor.u32 %v2816, %v2819
        %v2821 = vrot.slane %v2820, 4
        %v2823 = vshll.u32 %v2774, 16
        %v2825 = vrot.slane %v2823, 5
        %v2826 = vsel %vm632, %v2821, %v2825
        %v2828 = vshrl.u32 %v2775, 16
        %v2830 = vrot.slane %v2828, 4
        %v2831 = vshll.u32 %v2775, 16
        %v2833 = vrot.slane %v2831, 5
        %v2834 = vor.u32 %v2830, %v2833
        %v2835 = vrot.slane %v2834, 4
        %v2837 = vshll.u32 %v2776, 16
        %v2839 = vrot.slane %v2837, 5
        %v2840 = vsel %vm632, %v2835, %v2839
        %v2842 = vshrl.u32 %v2777, 16
        %v2844 = vrot.slane %v2842, 4
        %v2845 = vshll.u32 %v2777, 16
        %v2847 = vrot.slane %v2845, 5
        %v2848 = vor.u32 %v2844, %v2847
        %v2849 = vrot.slane %v2848, 4
        %v2851 = vshll.u32 %v2778, 16
        %v2853 = vrot.slane %v2851, 5
        %v2854 = vsel %vm632, %v2849, %v2853
        %v2856 = vshrl.u32 %v2779, 16
        %v2858 = vrot.slane %v2856, 4
        %v2859 = vshll.u32 %v2779, 16
        %v2861 = vrot.slane %v2859, 5
        %v2862 = vor.u32 %v2858, %v2861
        %v2863 = vrot.slane %v2862, 4
        %v2865 = vshll.u32 %v2780, 16
        %v2867 = vrot.slane %v2865, 5
        %v2868 = vsel %vm632, %v2863, %v2867
        %v2870 = vshrl.u32 %v2781, 16
        %v2872 = vrot.slane %v2870, 4
        %v2873 = vshll.u32 %v2781, 16
        %v2875 = vrot.slane %v2873, 5
        %v2876 = vor.u32 %v2872, %v2875
        %v2877 = vrot.slane %v2876, 4
        %v2879 = vshll.u32 %v2782, 16
        %v2881 = vrot.slane %v2879, 5
        %v2882 = vsel %vm632, %v2877, %v2881
        %v2884 = vshrl.u32 %v2783, 16
        %v2886 = vrot.slane %v2884, 4
        %v2887 = vshll.u32 %v2783, 16
        %v2889 = vrot.slane %v2887, 5
        %v2890 = vor.u32 %v2886, %v2889
        %v2891 = vrot.slane %v2890, 4
        %v2893 = vshll.u32 %v2784, 16
        %v2895 = vrot.slane %v2893, 5
        %v2896 = vsel %vm632, %v2891, %v2895
        %2905 = vst [vmem:[#allocation5 + $0x8] sm:$0xf] %v2798
        %2906 = vst [vmem:[#allocation5 + $0x2c] sm:$0xf] %v2812
        %2907 = vst [vmem:[#allocation5 + $0x50] sm:$0xf] %v2826
        %2908 = vst [vmem:[#allocation5 + $0x74] sm:$0xf] %v2840
        %2909 = vst [vmem:[#allocation5 + $0x98] sm:$0xf] %v2854
        %2910 = vst [vmem:[#allocation5 + $0xbc] sm:$0xf] %v2868
        %2911 = vst [vmem:[#allocation5 + $0xe0] sm:$0xf] %v2882
        %2912 = vst [vmem:[#allocation5 + $0x104] sm:$0xf] %v2896
        %v2913 = vld [vmem:[%s2528] sm:$0x8]
        %v2914 = vld [vmem:[%s2528 + $0x4] sm:$0xf]
        %v2915 = vld [vmem:[%s2528 + $0xc] sm:$0x8]
        %v2916 = vld [vmem:[%s2528 + $0x10] sm:$0xf]
        %v2917 = vld [vmem:[%s2528 + $0x18] sm:$0x8]
        %v2918 = vld [vmem:[%s2528 + $0x1c] sm:$0xf]
        %v2919 = vld [vmem:[%s2528 + $0x24] sm:$0x8]
        %v2920 = vld [vmem:[%s2528 + $0x28] sm:$0xf]
        %v2921 = vld [vmem:[%s2528 + $0x30] sm:$0x8]
        %v2922 = vld [vmem:[%s2528 + $0x34] sm:$0xf]
        %v2923 = vld [vmem:[%s2528 + $0x3c] sm:$0x8]
        %v2924 = vld [vmem:[%s2528 + $0x40] sm:$0xf]
        %v2925 = vld [vmem:[%s2528 + $0x48] sm:$0x8]
        %v2926 = vld [vmem:[%s2528 + $0x4c] sm:$0xf]
        %v2927 = vld [vmem:[%s2528 + $0x54] sm:$0x8]
        %v2928 = vld [vmem:[%s2528 + $0x58] sm:$0xf]
        %v2930 = vshrl.u32 %v2913, 16
        %v2932 = vrot.slane %v2930, 7
        %v2933 = vrot.slane %v2932, 4
        %v2935 = vshrl.u32 %v2914, 16
        %v2937 = vrot.slane %v2935, 7
        %v2938 = vshll.u32 %v2914, 16
        %v2940 = vor.u32 %v2937, %v2938
        %v2941 = vsel %vm477, %v2933, %v2940
        %v2943 = vshrl.u32 %v2915, 16
        %v2945 = vrot.slane %v2943, 7
        %v2946 = vrot.slane %v2945, 4
        %v2948 = vshrl.u32 %v2916, 16
        %v2950 = vrot.slane %v2948, 7
        %v2951 = vshll.u32 %v2916, 16
        %v2953 = vor.u32 %v2950, %v2951
        %v2954 = vsel %vm477, %v2946, %v2953
        %v2956 = vshrl.u32 %v2917, 16
        %v2958 = vrot.slane %v2956, 7
        %v2959 = vrot.slane %v2958, 4
        %v2961 = vshrl.u32 %v2918, 16
        %v2963 = vrot.slane %v2961, 7
        %v2964 = vshll.u32 %v2918, 16
        %v2966 = vor.u32 %v2963, %v2964
        %v2967 = vsel %vm477, %v2959, %v2966
        %v2969 = vshrl.u32 %v2919, 16
        %v2971 = vrot.slane %v2969, 7
        %v2972 = vrot.slane %v2971, 4
        %v2974 = vshrl.u32 %v2920, 16
        %v2976 = vrot.slane %v2974, 7
        %v2977 = vshll.u32 %v2920, 16
        %v2979 = vor.u32 %v2976, %v2977
        %v2980 = vsel %vm477, %v2972, %v2979
        %v2982 = vshrl.u32 %v2921, 16
        %v2984 = vrot.slane %v2982, 7
        %v2985 = vrot.slane %v2984, 4
        %v2987 = vshrl.u32 %v2922, 16
        %v2989 = vrot.slane %v2987, 7
        %v2990 = vshll.u32 %v2922, 16
        %v2992 = vor.u32 %v2989, %v2990
        %v2993 = vsel %vm477, %v2985, %v2992
        %v2995 = vshrl.u32 %v2923, 16
        %v2997 = vrot.slane %v2995, 7
        %v2998 = vrot.slane %v2997, 4
        %v3000 = vshrl.u32 %v2924, 16
        %v3002 = vrot.slane %v3000, 7
        %v3003 = vshll.u32 %v2924, 16
        %v3005 = vor.u32 %v3002, %v3003
        %v3006 = vsel %vm477, %v2998, %v3005
        %v3008 = vshrl.u32 %v2925, 16
        %v3010 = vrot.slane %v3008, 7
        %v3011 = vrot.slane %v3010, 4
        %v3013 = vshrl.u32 %v2926, 16
        %v3015 = vrot.slane %v3013, 7
        %v3016 = vshll.u32 %v2926, 16
        %v3018 = vor.u32 %v3015, %v3016
        %v3019 = vsel %vm477, %v3011, %v3018
        %v3021 = vshrl.u32 %v2927, 16
        %v3023 = vrot.slane %v3021, 7
        %v3024 = vrot.slane %v3023, 4
        %v3026 = vshrl.u32 %v2928, 16
        %v3028 = vrot.slane %v3026, 7
        %v3029 = vshll.u32 %v2928, 16
        %v3031 = vor.u32 %v3028, %v3029
        %v3032 = vsel %vm477, %v3024, %v3031
        %3041 = vst [vmem:[#allocation5 + $0xc] sm:$0xf] %v2941
        %3042 = vst [vmem:[#allocation5 + $0x30] sm:$0xf] %v2954
        %3043 = vst [vmem:[#allocation5 + $0x54] sm:$0xf] %v2967
        %3044 = vst [vmem:[#allocation5 + $0x78] sm:$0xf] %v2980
        %3045 = vst [vmem:[#allocation5 + $0x9c] sm:$0xf] %v2993
        %3046 = vst [vmem:[#allocation5 + $0xc0] sm:$0xf] %v3006
        %3047 = vst [vmem:[#allocation5 + $0xe4] sm:$0xf] %v3019
        %3048 = vst [vmem:[#allocation5 + $0x108] sm:$0xf] %v3032
        %v3049 = vld [vmem:[%s2528 + $0x4] sm:$0xf]
        %v3050 = vld [vmem:[%s2528 + $0x10] sm:$0xf]
        %v3051 = vld [vmem:[%s2528 + $0x1c] sm:$0xf]
        %v3052 = vld [vmem:[%s2528 + $0x28] sm:$0xf]
        %v3053 = vld [vmem:[%s2528 + $0x34] sm:$0xf]
        %v3054 = vld [vmem:[%s2528 + $0x40] sm:$0xf]
        %v3055 = vld [vmem:[%s2528 + $0x4c] sm:$0xf]
        %v3056 = vld [vmem:[%s2528 + $0x58] sm:$0xf]
        %3057 = vst [vmem:[#allocation5 + $0x10] sm:$0xf] %v3049
        %3058 = vst [vmem:[#allocation5 + $0x34] sm:$0xf] %v3050
        %3059 = vst [vmem:[#allocation5 + $0x58] sm:$0xf] %v3051
        %3060 = vst [vmem:[#allocation5 + $0x7c] sm:$0xf] %v3052
        %3061 = vst [vmem:[#allocation5 + $0xa0] sm:$0xf] %v3053
        %3062 = vst [vmem:[#allocation5 + $0xc4] sm:$0xf] %v3054
        %3063 = vst [vmem:[#allocation5 + $0xe8] sm:$0xf] %v3055
        %3064 = vst [vmem:[#allocation5 + $0x10c] sm:$0xf] %v3056
        %v3065 = vld [vmem:[%s2528 + $0x4] sm:$0xf]
        %v3066 = vld [vmem:[%s2528 + $0x8] sm:$0x1]
        %v3067 = vld [vmem:[%s2528 + $0x10] sm:$0xf]
        %v3068 = vld [vmem:[%s2528 + $0x14] sm:$0x1]
        %v3069 = vld [vmem:[%s2528 + $0x1c] sm:$0xf]
        %v3070 = vld [vmem:[%s2528 + $0x20] sm:$0x1]
        %v3071 = vld [vmem:[%s2528 + $0x28] sm:$0xf]
        %v3072 = vld [vmem:[%s2528 + $0x2c] sm:$0x1]
        %v3073 = vld [vmem:[%s2528 + $0x34] sm:$0xf]
        %v3074 = vld [vmem:[%s2528 + $0x38] sm:$0x1]
        %v3075 = vld [vmem:[%s2528 + $0x40] sm:$0xf]
        %v3076 = vld [vmem:[%s2528 + $0x44] sm:$0x1]
        %v3077 = vld [vmem:[%s2528 + $0x4c] sm:$0xf]
        %v3078 = vld [vmem:[%s2528 + $0x50] sm:$0x1]
        %v3079 = vld [vmem:[%s2528 + $0x58] sm:$0xf]
        %v3080 = vld [vmem:[%s2528 + $0x5c] sm:$0x1]
        %v3082 = vshrl.u32 %v3065, 16
        %v3084 = vrot.slane %v3082, 4
        %v3085 = vshll.u32 %v3065, 16
        %v3087 = vrot.slane %v3085, 5
        %v3088 = vor.u32 %v3084, %v3087
        %v3089 = vrot.slane %v3088, 4
        %v3091 = vshll.u32 %v3066, 16
        %v3093 = vrot.slane %v3091, 5
        %v3094 = vsel %vm632, %v3089, %v3093
        %v3096 = vshrl.u32 %v3067, 16
        %v3098 = vrot.slane %v3096, 4
        %v3099 = vshll.u32 %v3067, 16
        %v3101 = vrot.slane %v3099, 5
        %v3102 = vor.u32 %v3098, %v3101
        %v3103 = vrot.slane %v3102, 4
        %v3105 = vshll.u32 %v3068, 16
        %v3107 = vrot.slane %v3105, 5
        %v3108 = vsel %vm632, %v3103, %v3107
        %v3110 = vshrl.u32 %v3069, 16
        %v3112 = vrot.slane %v3110, 4
        %v3113 = vshll.u32 %v3069, 16
        %v3115 = vrot.slane %v3113, 5
        %v3116 = vor.u32 %v3112, %v3115
        %v3117 = vrot.slane %v3116, 4
        %v3119 = vshll.u32 %v3070, 16
        %v3121 = vrot.slane %v3119, 5
        %v3122 = vsel %vm632, %v3117, %v3121
        %v3124 = vshrl.u32 %v3071, 16
        %v3126 = vrot.slane %v3124, 4
        %v3127 = vshll.u32 %v3071, 16
        %v3129 = vrot.slane %v3127, 5
        %v3130 = vor.u32 %v3126, %v3129
        %v3131 = vrot.slane %v3130, 4
        %v3133 = vshll.u32 %v3072, 16
        %v3135 = vrot.slane %v3133, 5
        %v3136 = vsel %vm632, %v3131, %v3135
        %v3138 = vshrl.u32 %v3073, 16
        %v3140 = vrot.slane %v3138, 4
        %v3141 = vshll.u32 %v3073, 16
        %v3143 = vrot.slane %v3141, 5
        %v3144 = vor.u32 %v3140, %v3143
        %v3145 = vrot.slane %v3144, 4
        %v3147 = vshll.u32 %v3074, 16
        %v3149 = vrot.slane %v3147, 5
        %v3150 = vsel %vm632, %v3145, %v3149
        %v3152 = vshrl.u32 %v3075, 16
        %v3154 = vrot.slane %v3152, 4
        %v3155 = vshll.u32 %v3075, 16
        %v3157 = vrot.slane %v3155, 5
        %v3158 = vor.u32 %v3154, %v3157
        %v3159 = vrot.slane %v3158, 4
        %v3161 = vshll.u32 %v3076, 16
        %v3163 = vrot.slane %v3161, 5
        %v3164 = vsel %vm632, %v3159, %v3163
        %v3166 = vshrl.u32 %v3077, 16
        %v3168 = vrot.slane %v3166, 4
        %v3169 = vshll.u32 %v3077, 16
        %v3171 = vrot.slane %v3169, 5
        %v3172 = vor.u32 %v3168, %v3171
        %v3173 = vrot.slane %v3172, 4
        %v3175 = vshll.u32 %v3078, 16
        %v3177 = vrot.slane %v3175, 5
        %v3178 = vsel %vm632, %v3173, %v3177
        %v3180 = vshrl.u32 %v3079, 16
        %v3182 = vrot.slane %v3180, 4
        %v3183 = vshll.u32 %v3079, 16
        %v3185 = vrot.slane %v3183, 5
        %v3186 = vor.u32 %v3182, %v3185
        %v3187 = vrot.slane %v3186, 4
        %v3189 = vshll.u32 %v3080, 16
        %v3191 = vrot.slane %v3189, 5
        %v3192 = vsel %vm632, %v3187, %v3191
        %3201 = vst [vmem:[#allocation5 + $0x14] sm:$0xf] %v3094
        %3202 = vst [vmem:[#allocation5 + $0x38] sm:$0xf] %v3108
        %3203 = vst [vmem:[#allocation5 + $0x5c] sm:$0xf] %v3122
        %3204 = vst [vmem:[#allocation5 + $0x80] sm:$0xf] %v3136
        %3205 = vst [vmem:[#allocation5 + $0xa4] sm:$0xf] %v3150
        %3206 = vst [vmem:[#allocation5 + $0xc8] sm:$0xf] %v3164
        %3207 = vst [vmem:[#allocation5 + $0xec] sm:$0xf] %v3178
        %3208 = vst [vmem:[#allocation5 + $0x110] sm:$0xf] %v3192
        %s3209 = scalar_lea.vmem [#allocation3], 24
        %v3210 = vld [vmem:[%s3209] sm:$0x8]
        %v3211 = vld [vmem:[%s3209 + $0x4] sm:$0xf]
        %v3212 = vld [vmem:[%s3209 + $0xc] sm:$0x8]
        %v3213 = vld [vmem:[%s3209 + $0x10] sm:$0xf]
        %v3214 = vld [vmem:[%s3209 + $0x18] sm:$0x8]
        %v3215 = vld [vmem:[%s3209 + $0x1c] sm:$0xf]
        %v3216 = vld [vmem:[%s3209 + $0x24] sm:$0x8]
        %v3217 = vld [vmem:[%s3209 + $0x28] sm:$0xf]
        %v3218 = vld [vmem:[%s3209 + $0x30] sm:$0x8]
        %v3219 = vld [vmem:[%s3209 + $0x34] sm:$0xf]
        %v3220 = vld [vmem:[%s3209 + $0x3c] sm:$0x8]
        %v3221 = vld [vmem:[%s3209 + $0x40] sm:$0xf]
        %v3222 = vld [vmem:[%s3209 + $0x48] sm:$0x8]
        %v3223 = vld [vmem:[%s3209 + $0x4c] sm:$0xf]
        %v3224 = vld [vmem:[%s3209 + $0x54] sm:$0x8]
        %v3225 = vld [vmem:[%s3209 + $0x58] sm:$0xf]
        %v3227 = vshrl.u32 %v3210, 16
        %v3229 = vrot.slane %v3227, 7
        %v3230 = vrot.slane %v3229, 4
        %v3232 = vshrl.u32 %v3211, 16
        %v3234 = vrot.slane %v3232, 7
        %v3235 = vshll.u32 %v3211, 16
        %v3237 = vor.u32 %v3234, %v3235
        %v3238 = vsel %vm477, %v3230, %v3237
        %v3240 = vshrl.u32 %v3212, 16
        %v3242 = vrot.slane %v3240, 7
        %v3243 = vrot.slane %v3242, 4
        %v3245 = vshrl.u32 %v3213, 16
        %v3247 = vrot.slane %v3245, 7
        %v3248 = vshll.u32 %v3213, 16
        %v3250 = vor.u32 %v3247, %v3248
        %v3251 = vsel %vm477, %v3243, %v3250
        %v3253 = vshrl.u32 %v3214, 16
        %v3255 = vrot.slane %v3253, 7
        %v3256 = vrot.slane %v3255, 4
        %v3258 = vshrl.u32 %v3215, 16
        %v3260 = vrot.slane %v3258, 7
        %v3261 = vshll.u32 %v3215, 16
        %v3263 = vor.u32 %v3260, %v3261
        %v3264 = vsel %vm477, %v3256, %v3263
        %v3266 = vshrl.u32 %v3216, 16
        %v3268 = vrot.slane %v3266, 7
        %v3269 = vrot.slane %v3268, 4
        %v3271 = vshrl.u32 %v3217, 16
        %v3273 = vrot.slane %v3271, 7
        %v3274 = vshll.u32 %v3217, 16
        %v3276 = vor.u32 %v3273, %v3274
        %v3277 = vsel %vm477, %v3269, %v3276
        %v3279 = vshrl.u32 %v3218, 16
        %v3281 = vrot.slane %v3279, 7
        %v3282 = vrot.slane %v3281, 4
        %v3284 = vshrl.u32 %v3219, 16
        %v3286 = vrot.slane %v3284, 7
        %v3287 = vshll.u32 %v3219, 16
        %v3289 = vor.u32 %v3286, %v3287
        %v3290 = vsel %vm477, %v3282, %v3289
        %v3292 = vshrl.u32 %v3220, 16
        %v3294 = vrot.slane %v3292, 7
        %v3295 = vrot.slane %v3294, 4
        %v3297 = vshrl.u32 %v3221, 16
        %v3299 = vrot.slane %v3297, 7
        %v3300 = vshll.u32 %v3221, 16
        %v3302 = vor.u32 %v3299, %v3300
        %v3303 = vsel %vm477, %v3295, %v3302
        %v3305 = vshrl.u32 %v3222, 16
        %v3307 = vrot.slane %v3305, 7
        %v3308 = vrot.slane %v3307, 4
        %v3310 = vshrl.u32 %v3223, 16
        %v3312 = vrot.slane %v3310, 7
        %v3313 = vshll.u32 %v3223, 16
        %v3315 = vor.u32 %v3312, %v3313
        %v3316 = vsel %vm477, %v3308, %v3315
        %v3318 = vshrl.u32 %v3224, 16
        %v3320 = vrot.slane %v3318, 7
        %v3321 = vrot.slane %v3320, 4
        %v3323 = vshrl.u32 %v3225, 16
        %v3325 = vrot.slane %v3323, 7
        %v3326 = vshll.u32 %v3225, 16
        %v3328 = vor.u32 %v3325, %v3326
        %v3329 = vsel %vm477, %v3321, %v3328
        %3338 = vst [vmem:[#allocation5 + $0x18] sm:$0xf] %v3238
        %3339 = vst [vmem:[#allocation5 + $0x3c] sm:$0xf] %v3251
        %3340 = vst [vmem:[#allocation5 + $0x60] sm:$0xf] %v3264
        %3341 = vst [vmem:[#allocation5 + $0x84] sm:$0xf] %v3277
        %3342 = vst [vmem:[#allocation5 + $0xa8] sm:$0xf] %v3290
        %3343 = vst [vmem:[#allocation5 + $0xcc] sm:$0xf] %v3303
        %3344 = vst [vmem:[#allocation5 + $0xf0] sm:$0xf] %v3316
        %3345 = vst [vmem:[#allocation5 + $0x114] sm:$0xf] %v3329
        %v3346 = vld [vmem:[%s3209 + $0x4] sm:$0xf]
        %v3347 = vld [vmem:[%s3209 + $0x10] sm:$0xf]
        %v3348 = vld [vmem:[%s3209 + $0x1c] sm:$0xf]
        %v3349 = vld [vmem:[%s3209 + $0x28] sm:$0xf]
        %v3350 = vld [vmem:[%s3209 + $0x34] sm:$0xf]
        %v3351 = vld [vmem:[%s3209 + $0x40] sm:$0xf]
        %v3352 = vld [vmem:[%s3209 + $0x4c] sm:$0xf]
        %v3353 = vld [vmem:[%s3209 + $0x58] sm:$0xf]
        %3354 = vst [vmem:[#allocation5 + $0x1c] sm:$0xf] %v3346
        %3355 = vst [vmem:[#allocation5 + $0x40] sm:$0xf] %v3347
        %3356 = vst [vmem:[#allocation5 + $0x64] sm:$0xf] %v3348
        %3357 = vst [vmem:[#allocation5 + $0x88] sm:$0xf] %v3349
        %3358 = vst [vmem:[#allocation5 + $0xac] sm:$0xf] %v3350
        %3359 = vst [vmem:[#allocation5 + $0xd0] sm:$0xf] %v3351
        %3360 = vst [vmem:[#allocation5 + $0xf4] sm:$0xf] %v3352
        %3361 = vst [vmem:[#allocation5 + $0x118] sm:$0xf] %v3353
        %v3362 = vld [vmem:[%s3209 + $0x4] sm:$0xf]
        %v3363 = vld [vmem:[%s3209 + $0x8] sm:$0x1]
        %v3364 = vld [vmem:[%s3209 + $0x10] sm:$0xf]
        %v3365 = vld [vmem:[%s3209 + $0x14] sm:$0x1]
        %v3366 = vld [vmem:[%s3209 + $0x1c] sm:$0xf]
        %v3367 = vld [vmem:[%s3209 + $0x20] sm:$0x1]
        %v3368 = vld [vmem:[%s3209 + $0x28] sm:$0xf]
        %v3369 = vld [vmem:[%s3209 + $0x2c] sm:$0x1]
        %v3370 = vld [vmem:[%s3209 + $0x34] sm:$0xf]
        %v3371 = vld [vmem:[%s3209 + $0x38] sm:$0x1]
        %v3372 = vld [vmem:[%s3209 + $0x40] sm:$0xf]
        %v3373 = vld [vmem:[%s3209 + $0x44] sm:$0x1]
        %v3374 = vld [vmem:[%s3209 + $0x4c] sm:$0xf]
        %v3375 = vld [vmem:[%s3209 + $0x50] sm:$0x1]
        %v3376 = vld [vmem:[%s3209 + $0x58] sm:$0xf]
        %v3377 = vld [vmem:[%s3209 + $0x5c] sm:$0x1]
        %v3379 = vshrl.u32 %v3362, 16
        %v3381 = vrot.slane %v3379, 4
        %v3382 = vshll.u32 %v3362, 16
        %v3384 = vrot.slane %v3382, 5
        %v3385 = vor.u32 %v3381, %v3384
        %v3386 = vrot.slane %v3385, 4
        %v3388 = vshll.u32 %v3363, 16
        %v3390 = vrot.slane %v3388, 5
        %v3391 = vsel %vm632, %v3386, %v3390
        %v3393 = vshrl.u32 %v3364, 16
        %v3395 = vrot.slane %v3393, 4
        %v3396 = vshll.u32 %v3364, 16
        %v3398 = vrot.slane %v3396, 5
        %v3399 = vor.u32 %v3395, %v3398
        %v3400 = vrot.slane %v3399, 4
        %v3402 = vshll.u32 %v3365, 16
        %v3404 = vrot.slane %v3402, 5
        %v3405 = vsel %vm632, %v3400, %v3404
        %v3407 = vshrl.u32 %v3366, 16
        %v3409 = vrot.slane %v3407, 4
        %v3410 = vshll.u32 %v3366, 16
        %v3412 = vrot.slane %v3410, 5
        %v3413 = vor.u32 %v3409, %v3412
        %v3414 = vrot.slane %v3413, 4
        %v3416 = vshll.u32 %v3367, 16
        %v3418 = vrot.slane %v3416, 5
        %v3419 = vsel %vm632, %v3414, %v3418
        %v3421 = vshrl.u32 %v3368, 16
        %v3423 = vrot.slane %v3421, 4
        %v3424 = vshll.u32 %v3368, 16
        %v3426 = vrot.slane %v3424, 5
        %v3427 = vor.u32 %v3423, %v3426
        %v3428 = vrot.slane %v3427, 4
        %v3430 = vshll.u32 %v3369, 16
        %v3432 = vrot.slane %v3430, 5
        %v3433 = vsel %vm632, %v3428, %v3432
        %v3435 = vshrl.u32 %v3370, 16
        %v3437 = vrot.slane %v3435, 4
        %v3438 = vshll.u32 %v3370, 16
        %v3440 = vrot.slane %v3438, 5
        %v3441 = vor.u32 %v3437, %v3440
        %v3442 = vrot.slane %v3441, 4
        %v3444 = vshll.u32 %v3371, 16
        %v3446 = vrot.slane %v3444, 5
        %v3447 = vsel %vm632, %v3442, %v3446
        %v3449 = vshrl.u32 %v3372, 16
        %v3451 = vrot.slane %v3449, 4
        %v3452 = vshll.u32 %v3372, 16
        %v3454 = vrot.slane %v3452, 5
        %v3455 = vor.u32 %v3451, %v3454
        %v3456 = vrot.slane %v3455, 4
        %v3458 = vshll.u32 %v3373, 16
        %v3460 = vrot.slane %v3458, 5
        %v3461 = vsel %vm632, %v3456, %v3460
        %v3463 = vshrl.u32 %v3374, 16
        %v3465 = vrot.slane %v3463, 4
        %v3466 = vshll.u32 %v3374, 16
        %v3468 = vrot.slane %v3466, 5
        %v3469 = vor.u32 %v3465, %v3468
        %v3470 = vrot.slane %v3469, 4
        %v3472 = vshll.u32 %v3375, 16
        %v3474 = vrot.slane %v3472, 5
        %v3475 = vsel %vm632, %v3470, %v3474
        %v3477 = vshrl.u32 %v3376, 16
        %v3479 = vrot.slane %v3477, 4
        %v3480 = vshll.u32 %v3376, 16
        %v3482 = vrot.slane %v3480, 5
        %v3483 = vor.u32 %v3479, %v3482
        %v3484 = vrot.slane %v3483, 4
        %v3486 = vshll.u32 %v3377, 16
        %v3488 = vrot.slane %v3486, 5
        %v3489 = vsel %vm632, %v3484, %v3488
        %3498 = vst [vmem:[#allocation5 + $0x20] sm:$0xf] %v3391
        %3499 = vst [vmem:[#allocation5 + $0x44] sm:$0xf] %v3405
        %3500 = vst [vmem:[#allocation5 + $0x68] sm:$0xf] %v3419
        %3501 = vst [vmem:[#allocation5 + $0x8c] sm:$0xf] %v3433
        %3502 = vst [vmem:[#allocation5 + $0xb0] sm:$0xf] %v3447
        %3503 = vst [vmem:[#allocation5 + $0xd4] sm:$0xf] %v3461
        %3504 = vst [vmem:[#allocation5 + $0xf8] sm:$0xf] %v3475
        %3505 = vst [vmem:[#allocation5 + $0x11c] sm:$0xf] %v3489
        %v3506 = vld [vmem:[#allocation5] sm:$0xff]
        %v3507 = vld [vmem:[#allocation5 + $0x8] sm:$0xff]
        %v3508 = vld [vmem:[#allocation5 + $0x10] sm:$0xff]
        %v3509 = vld [vmem:[#allocation5 + $0x18] sm:$0xff]
        %v3510 = vld [vmem:[#allocation5 + $0x20] sm:$0xf]
        %v3511 = vld [vmem:[#allocation5 + $0x24] sm:$0xff]
        %v3512 = vld [vmem:[#allocation5 + $0x2c] sm:$0xff]
        %v3513 = vld [vmem:[#allocation5 + $0x34] sm:$0xff]
        %v3514 = vld [vmem:[#allocation5 + $0x3c] sm:$0xff]
        %v3515 = vld [vmem:[#allocation5 + $0x44] sm:$0xf]
        %v3516 = vld [vmem:[#allocation5 + $0x48] sm:$0xff]
        %v3517 = vld [vmem:[#allocation5 + $0x50] sm:$0xff]
        %v3518 = vld [vmem:[#allocation5 + $0x58] sm:$0xff]
        %v3519 = vld [vmem:[#allocation5 + $0x60] sm:$0xff]
        %v3520 = vld [vmem:[#allocation5 + $0x68] sm:$0xf]
        %v3521 = vld [vmem:[#allocation5 + $0x6c] sm:$0xff]
        %v3522 = vld [vmem:[#allocation5 + $0x74] sm:$0xff]
        %v3523 = vld [vmem:[#allocation5 + $0x7c] sm:$0xff]
        %v3524 = vld [vmem:[#allocation5 + $0x84] sm:$0xff]
        %v3525 = vld [vmem:[#allocation5 + $0x8c] sm:$0xf]
        %v3526 = vld [vmem:[#allocation5 + $0x90] sm:$0xff]
        %v3527 = vld [vmem:[#allocation5 + $0x98] sm:$0xff]
        %v3528 = vld [vmem:[#allocation5 + $0xa0] sm:$0xff]
        %v3529 = vld [vmem:[#allocation5 + $0xa8] sm:$0xff]
        %v3530 = vld [vmem:[#allocation5 + $0xb0] sm:$0xf]
        %v3531 = vld [vmem:[#allocation5 + $0xb4] sm:$0xff]
        %v3532 = vld [vmem:[#allocation5 + $0xbc] sm:$0xff]
        %v3533 = vld [vmem:[#allocation5 + $0xc4] sm:$0xff]
        %v3534 = vld [vmem:[#allocation5 + $0xcc] sm:$0xff]
        %v3535 = vld [vmem:[#allocation5 + $0xd4] sm:$0xf]
        %v3536 = vld [vmem:[#allocation5 + $0xd8] sm:$0xff]
        %v3537 = vld [vmem:[#allocation5 + $0xe0] sm:$0xff]
        %v3538 = vld [vmem:[#allocation5 + $0xe8] sm:$0xff]
        %v3539 = vld [vmem:[#allocation5 + $0xf0] sm:$0xff]
        %v3540 = vld [vmem:[#allocation5 + $0xf8] sm:$0xf]
        %v3541 = vld [vmem:[#allocation5 + $0xfc] sm:$0xff]
        %v3542 = vld [vmem:[#allocation5 + $0x104] sm:$0xff]
        %v3543 = vld [vmem:[#allocation5 + $0x10c] sm:$0xff]
        %v3544 = vld [vmem:[#allocation5 + $0x114] sm:$0xff]
        %v3545 = vld [vmem:[#allocation5 + $0x11c] sm:$0xf]
        %v3546 = vld [vmem:[#allocation11] sm:$0xf]
        %v3547 = vld [vmem:[#allocation11 + $0x4] sm:$0xf]
        %v3548 = vld [vmem:[#allocation11 + $0x8] sm:$0xf]
        %v3549 = vld [vmem:[#allocation11 + $0xc] sm:$0xf]
        %v3550 = vld [vmem:[#allocation11 + $0x10] sm:$0xf]
        %v3551 = vld [vmem:[#allocation11 + $0x14] sm:$0xf]
        %v3552 = vld [vmem:[#allocation11 + $0x18] sm:$0xf]
        %v3553 = vld [vmem:[#allocation11 + $0x1c] sm:$0xf]
        %v3554 = vld [vmem:[#allocation11 + $0x20] sm:$0xf]
        %v3555 = vld [vmem:[#allocation11 + $0x24] sm:$0xf]
        %v3556 = vld [vmem:[#allocation11 + $0x28] sm:$0xf]
        %v3557 = vld [vmem:[#allocation11 + $0x2c] sm:$0xf]
        %v3558 = vld [vmem:[#allocation11 + $0x30] sm:$0xf]
        %v3559 = vld [vmem:[#allocation11 + $0x34] sm:$0xf]
        %v3560 = vld [vmem:[#allocation11 + $0x38] sm:$0xf]
        %v3561 = vld [vmem:[#allocation11 + $0x3c] sm:$0xf]
        %v3562 = vld [vmem:[#allocation11 + $0x40] sm:$0xf]
        %v3563 = vld [vmem:[#allocation11 + $0x44] sm:$0xf]
        %v3564 = vld [vmem:[#allocation11 + $0x48] sm:$0xf]
        %v3565 = vld [vmem:[#allocation11 + $0x4c] sm:$0xf]
        %v3566 = vld [vmem:[#allocation11 + $0x50] sm:$0xf]
        %v3567 = vld [vmem:[#allocation11 + $0x54] sm:$0xf]
        %v3568 = vld [vmem:[#allocation11 + $0x58] sm:$0xf]
        %v3569 = vld [vmem:[#allocation11 + $0x5c] sm:$0xf]
        %v3570 = vld [vmem:[#allocation11 + $0x60] sm:$0xf]
        %v3571 = vld [vmem:[#allocation11 + $0x64] sm:$0xf]
        %v3572 = vld [vmem:[#allocation11 + $0x68] sm:$0xf]
        %v3573 = vld [vmem:[#allocation11 + $0x6c] sm:$0xf]
        %v3574 = vld [vmem:[#allocation11 + $0x70] sm:$0xf]
        %v3575 = vld [vmem:[#allocation11 + $0x74] sm:$0xf]
        %v3576 = vld [vmem:[#allocation11 + $0x78] sm:$0xf]
        %v3577 = vld [vmem:[#allocation11 + $0x7c] sm:$0xf]
        %v3578 = vld [vmem:[#allocation11 + $0x80] sm:$0xf]
        %v3579 = vld [vmem:[#allocation11 + $0x84] sm:$0xf]
        %v3580 = vld [vmem:[#allocation11 + $0x88] sm:$0xf]
        %v3581 = vld [vmem:[#allocation11 + $0x8c] sm:$0xf]
        %v3582 = vld [vmem:[#allocation11 + $0x90] sm:$0xf]
        %v3583 = vld [vmem:[#allocation11 + $0x94] sm:$0xf]
        %v3584 = vld [vmem:[#allocation11 + $0x98] sm:$0xf]
        %v3585 = vld [vmem:[#allocation11 + $0x9c] sm:$0xf]
        %v3586 = vld [vmem:[#allocation11 + $0xa0] sm:$0xf]
        %v3587 = vld [vmem:[#allocation11 + $0xa4] sm:$0xf]
        %v3588 = vld [vmem:[#allocation11 + $0xa8] sm:$0xf]
        %v3589 = vld [vmem:[#allocation11 + $0xac] sm:$0xf]
        %v3590 = vld [vmem:[#allocation11 + $0xb0] sm:$0xf]
        %v3591 = vld [vmem:[#allocation11 + $0xb4] sm:$0xf]
        %v3592 = vld [vmem:[#allocation11 + $0xb8] sm:$0xf]
        %v3593 = vld [vmem:[#allocation11 + $0xbc] sm:$0xf]
        %v3594 = vld [vmem:[#allocation11 + $0xc0] sm:$0xf]
        %v3595 = vld [vmem:[#allocation11 + $0xc4] sm:$0xf]
        %v3596 = vld [vmem:[#allocation11 + $0xc8] sm:$0xf]
        %v3597 = vld [vmem:[#allocation11 + $0xcc] sm:$0xf]
        %v3598 = vld [vmem:[#allocation11 + $0xd0] sm:$0xf]
        %v3599 = vld [vmem:[#allocation11 + $0xd4] sm:$0xf]
        %v3600 = vld [vmem:[#allocation11 + $0xd8] sm:$0xf]
        %v3601 = vld [vmem:[#allocation11 + $0xdc] sm:$0xf]
        %v3602 = vld [vmem:[#allocation11 + $0xe0] sm:$0xf]
        %v3603 = vld [vmem:[#allocation11 + $0xe4] sm:$0xf]
        %v3604 = vld [vmem:[#allocation11 + $0xe8] sm:$0xf]
        %v3605 = vld [vmem:[#allocation11 + $0xec] sm:$0xf]
        %v3606 = vld [vmem:[#allocation11 + $0xf0] sm:$0xf]
        %v3607 = vld [vmem:[#allocation11 + $0xf4] sm:$0xf]
        %v3608 = vld [vmem:[#allocation11 + $0xf8] sm:$0xf]
        %v3609 = vld [vmem:[#allocation11 + $0xfc] sm:$0xf]
        %v3610 = vld [vmem:[#allocation11 + $0x100] sm:$0xf]
        %v3611 = vld [vmem:[#allocation11 + $0x104] sm:$0xf]
        %v3612 = vld [vmem:[#allocation11 + $0x108] sm:$0xf]
        %v3613 = vld [vmem:[#allocation11 + $0x10c] sm:$0xf]
        %v3614 = vld [vmem:[#allocation11 + $0x110] sm:$0xf]
        %v3615 = vld [vmem:[#allocation11 + $0x114] sm:$0xf]
        %v3616 = vld [vmem:[#allocation11 + $0x118] sm:$0xf]
        %v3617 = vld [vmem:[#allocation11 + $0x11c] sm:$0xf]
        %v3618 = vld [vmem:[#allocation11 + $0x120] sm:$0xf]
        %v3619 = vld [vmem:[#allocation11 + $0x124] sm:$0xf]
        %v3620 = vld [vmem:[#allocation11 + $0x128] sm:$0xf]
        %v3621 = vld [vmem:[#allocation11 + $0x12c] sm:$0xf]
        %v3622 = vld [vmem:[#allocation11 + $0x130] sm:$0xf]
        %v3623 = vld [vmem:[#allocation11 + $0x134] sm:$0xf]
        %v3624 = vld [vmem:[#allocation11 + $0x138] sm:$0xf]
        %v3625 = vld [vmem:[#allocation11 + $0x13c] sm:$0xf]
        %v3626 = vld [vmem:[#allocation11 + $0x140] sm:$0xf]
        %v3627 = vld [vmem:[#allocation11 + $0x144] sm:$0xf]
        %v3628 = vld [vmem:[#allocation11 + $0x148] sm:$0xf]
        %v3629 = vld [vmem:[#allocation11 + $0x14c] sm:$0xf]
        %v3630 = vld [vmem:[#allocation11 + $0x150] sm:$0xf]
        %v3631 = vld [vmem:[#allocation11 + $0x154] sm:$0xf]
        %v3632 = vld [vmem:[#allocation11 + $0x158] sm:$0xf]
        %v3633 = vld [vmem:[#allocation11 + $0x15c] sm:$0xf]
        %v3634 = vld [vmem:[#allocation11 + $0x160] sm:$0xf]
        %v3635 = vld [vmem:[#allocation11 + $0x164] sm:$0xf]
        %v3636 = vld [vmem:[#allocation11 + $0x168] sm:$0xf]
        %v3637 = vld [vmem:[#allocation11 + $0x16c] sm:$0xf]
        %v3638 = vld [vmem:[#allocation11 + $0x170] sm:$0xf]
        %v3639 = vld [vmem:[#allocation11 + $0x174] sm:$0xf]
        %v3640 = vld [vmem:[#allocation11 + $0x178] sm:$0xf]
        %v3641 = vld [vmem:[#allocation11 + $0x17c] sm:$0xf]
        %v3642 = vld [vmem:[#allocation11 + $0x180] sm:$0xf]
        %v3643 = vld [vmem:[#allocation11 + $0x184] sm:$0xf]
        %v3644 = vld [vmem:[#allocation11 + $0x188] sm:$0xf]
        %v3645 = vld [vmem:[#allocation11 + $0x18c] sm:$0xf]
        %v3646 = vld [vmem:[#allocation11 + $0x190] sm:$0xf]
        %v3647 = vld [vmem:[#allocation11 + $0x194] sm:$0xf]
        %v3648 = vld [vmem:[#allocation11 + $0x198] sm:$0xf]
        %v3649 = vld [vmem:[#allocation11 + $0x19c] sm:$0xf]
        %v3650 = vld [vmem:[#allocation11 + $0x1a0] sm:$0xf]
        %v3651 = vld [vmem:[#allocation11 + $0x1a4] sm:$0xf]
        %v3652 = vld [vmem:[#allocation11 + $0x1a8] sm:$0xf]
        %v3653 = vld [vmem:[#allocation11 + $0x1ac] sm:$0xf]
        %v3654 = vld [vmem:[#allocation11 + $0x1b0] sm:$0xf]
        %v3655 = vld [vmem:[#allocation11 + $0x1b4] sm:$0xf]
        %v3656 = vld [vmem:[#allocation11 + $0x1b8] sm:$0xf]
        %v3657 = vld [vmem:[#allocation11 + $0x1bc] sm:$0xf]
        %v3658 = vld [vmem:[#allocation11 + $0x1c0] sm:$0xf]
        %v3659 = vld [vmem:[#allocation11 + $0x1c4] sm:$0xf]
        %v3660 = vld [vmem:[#allocation11 + $0x1c8] sm:$0xf]
        %v3661 = vld [vmem:[#allocation11 + $0x1cc] sm:$0xf]
        %v3662 = vld [vmem:[#allocation11 + $0x1d0] sm:$0xf]
        %v3663 = vld [vmem:[#allocation11 + $0x1d4] sm:$0xf]
        %v3664 = vld [vmem:[#allocation11 + $0x1d8] sm:$0xf]
        %v3665 = vld [vmem:[#allocation11 + $0x1dc] sm:$0xf]
        %v3666 = vld [vmem:[#allocation11 + $0x1e0] sm:$0xf]
        %v3667 = vld [vmem:[#allocation11 + $0x1e4] sm:$0xf]
        %v3668 = vld [vmem:[#allocation11 + $0x1e8] sm:$0xf]
        %v3669 = vld [vmem:[#allocation11 + $0x1ec] sm:$0xf]
        %v3670 = vld [vmem:[#allocation11 + $0x1f0] sm:$0xf]
        %v3671 = vld [vmem:[#allocation11 + $0x1f4] sm:$0xf]
        %v3672 = vld [vmem:[#allocation11 + $0x1f8] sm:$0xf]
        %v3673 = vld [vmem:[#allocation11 + $0x1fc] sm:$0xf]
        %v3674 = vld [vmem:[#allocation11 + $0x200] sm:$0xf]
        %v3675 = vld [vmem:[#allocation11 + $0x204] sm:$0xf]
        %v3676 = vld [vmem:[#allocation11 + $0x208] sm:$0xf]
        %v3677 = vld [vmem:[#allocation11 + $0x20c] sm:$0xf]
        %v3678 = vld [vmem:[#allocation11 + $0x210] sm:$0xf]
        %v3679 = vld [vmem:[#allocation11 + $0x214] sm:$0xf]
        %v3680 = vld [vmem:[#allocation11 + $0x218] sm:$0xf]
        %v3681 = vld [vmem:[#allocation11 + $0x21c] sm:$0xf]
        %v3682 = vld [vmem:[#allocation11 + $0x220] sm:$0xf]
        %v3683 = vld [vmem:[#allocation11 + $0x224] sm:$0xf]
        %v3684 = vld [vmem:[#allocation11 + $0x228] sm:$0xf]
        %v3685 = vld [vmem:[#allocation11 + $0x22c] sm:$0xf]
        %v3686 = vld [vmem:[#allocation11 + $0x230] sm:$0xf]
        %v3687 = vld [vmem:[#allocation11 + $0x234] sm:$0xf]
        %v3688 = vld [vmem:[#allocation11 + $0x238] sm:$0xf]
        %v3689 = vld [vmem:[#allocation11 + $0x23c] sm:$0xf]
        %v3730 = vunpack.c.l.b16 %v3506
        %v3731 = vunpack.c.h.b16 %v3506
        %v3732 = vunpack.c.l.b16 %v3507
        %v3733 = vunpack.c.h.b16 %v3507
        %v3734 = vunpack.c.l.b16 %v3508
        %v3735 = vunpack.c.h.b16 %v3508
        %v3736 = vunpack.c.l.b16 %v3509
        %v3737 = vunpack.c.h.b16 %v3509
        %v3738 = vunpack.c.l.b16 %v3510
        %v3739 = vunpack.c.l.b16 %v3511
        %v3740 = vunpack.c.h.b16 %v3511
        %v3741 = vunpack.c.l.b16 %v3512
        %v3742 = vunpack.c.h.b16 %v3512
        %v3743 = vunpack.c.l.b16 %v3513
        %v3744 = vunpack.c.h.b16 %v3513
        %v3745 = vunpack.c.l.b16 %v3514
        %v3746 = vunpack.c.h.b16 %v3514
        %v3747 = vunpack.c.l.b16 %v3515
        %v3748 = vunpack.c.l.b16 %v3516
        %v3749 = vunpack.c.h.b16 %v3516
        %v3750 = vunpack.c.l.b16 %v3517
        %v3751 = vunpack.c.h.b16 %v3517
        %v3752 = vunpack.c.l.b16 %v3518
        %v3753 = vunpack.c.h.b16 %v3518
        %v3754 = vunpack.c.l.b16 %v3519
        %v3755 = vunpack.c.h.b16 %v3519
        %v3756 = vunpack.c.l.b16 %v3520
        %v3757 = vunpack.c.l.b16 %v3521
        %v3758 = vunpack.c.h.b16 %v3521
        %v3759 = vunpack.c.l.b16 %v3522
        %v3760 = vunpack.c.h.b16 %v3522
        %v3761 = vunpack.c.l.b16 %v3523
        %v3762 = vunpack.c.h.b16 %v3523
        %v3763 = vunpack.c.l.b16 %v3524
        %v3764 = vunpack.c.h.b16 %v3524
        %v3765 = vunpack.c.l.b16 %v3525
        %v3766 = vunpack.c.l.b16 %v3526
        %v3767 = vunpack.c.h.b16 %v3526
        %v3768 = vunpack.c.l.b16 %v3527
        %v3769 = vunpack.c.h.b16 %v3527
        %v3770 = vunpack.c.l.b16 %v3528
        %v3771 = vunpack.c.h.b16 %v3528
        %v3772 = vunpack.c.l.b16 %v3529
        %v3773 = vunpack.c.h.b16 %v3529
        %v3774 = vunpack.c.l.b16 %v3530
        %v3775 = vunpack.c.l.b16 %v3531
        %v3776 = vunpack.c.h.b16 %v3531
        %v3777 = vunpack.c.l.b16 %v3532
        %v3778 = vunpack.c.h.b16 %v3532
        %v3779 = vunpack.c.l.b16 %v3533
        %v3780 = vunpack.c.h.b16 %v3533
        %v3781 = vunpack.c.l.b16 %v3534
        %v3782 = vunpack.c.h.b16 %v3534
        %v3783 = vunpack.c.l.b16 %v3535
        %v3784 = vunpack.c.l.b16 %v3536
        %v3785 = vunpack.c.h.b16 %v3536
        %v3786 = vunpack.c.l.b16 %v3537
        %v3787 = vunpack.c.h.b16 %v3537
        %v3788 = vunpack.c.l.b16 %v3538
        %v3789 = vunpack.c.h.b16 %v3538
        %v3790 = vunpack.c.l.b16 %v3539
        %v3791 = vunpack.c.h.b16 %v3539
        %v3792 = vunpack.c.l.b16 %v3540
        %v3793 = vunpack.c.l.b16 %v3541
        %v3794 = vunpack.c.h.b16 %v3541
        %v3795 = vunpack.c.l.b16 %v3542
        %v3796 = vunpack.c.h.b16 %v3542
        %v3797 = vunpack.c.l.b16 %v3543
        %v3798 = vunpack.c.h.b16 %v3543
        %v3799 = vunpack.c.l.b16 %v3544
        %v3800 = vunpack.c.h.b16 %v3544
        %v3801 = vunpack.c.l.b16 %v3545
        %v3802 = vpack.c.b16 %v3739, %v3730
        %v3803 = vpack.c.b16 %v3740, %v3731
        %v3804 = vpack.c.b16 %v3741, %v3732
        %v3805 = vpack.c.b16 %v3742, %v3733
        %v3806 = vpack.c.b16 %v3743, %v3734
        %v3807 = vpack.c.b16 %v3744, %v3735
        %v3808 = vpack.c.b16 %v3745, %v3736
        %v3809 = vpack.c.b16 %v3746, %v3737
        %v3810 = vpack.c.b16 %v3747, %v3738
        %v3811 = vpack.c.b16 %v3757, %v3748
        %v3812 = vpack.c.b16 %v3758, %v3749
        %v3813 = vpack.c.b16 %v3759, %v3750
        %v3814 = vpack.c.b16 %v3760, %v3751
        %v3815 = vpack.c.b16 %v3761, %v3752
        %v3816 = vpack.c.b16 %v3762, %v3753
        %v3817 = vpack.c.b16 %v3763, %v3754
        %v3818 = vpack.c.b16 %v3764, %v3755
        %v3819 = vpack.c.b16 %v3765, %v3756
        %v3820 = vpack.c.b16 %v3775, %v3766
        %v3821 = vpack.c.b16 %v3776, %v3767
        %v3822 = vpack.c.b16 %v3777, %v3768
        %v3823 = vpack.c.b16 %v3778, %v3769
        %v3824 = vpack.c.b16 %v3779, %v3770
        %v3825 = vpack.c.b16 %v3780, %v3771
        %v3826 = vpack.c.b16 %v3781, %v3772
        %v3827 = vpack.c.b16 %v3782, %v3773
        %v3828 = vpack.c.b16 %v3783, %v3774
        %v3829 = vpack.c.b16 %v3793, %v3784
        %v3830 = vpack.c.b16 %v3794, %v3785
        %v3831 = vpack.c.b16 %v3795, %v3786
        %v3832 = vpack.c.b16 %v3796, %v3787
        %v3833 = vpack.c.b16 %v3797, %v3788
        %v3834 = vpack.c.b16 %v3798, %v3789
        %v3835 = vpack.c.b16 %v3799, %v3790
        %v3836 = vpack.c.b16 %v3800, %v3791
        %v3837 = vpack.c.b16 %v3801, %v3792
        %v4018 = vunpack.c.l.b16 %v3546
        %v4019 = vunpack.c.l.b16 %v3547
        %v4020 = vunpack.c.l.b16 %v3548
        %v4021 = vunpack.c.l.b16 %v3549
        %v4022 = vunpack.c.l.b16 %v3550
        %v4023 = vunpack.c.l.b16 %v3551
        %v4024 = vunpack.c.l.b16 %v3552
        %v4025 = vunpack.c.l.b16 %v3553
        %v4026 = vunpack.c.l.b16 %v3554
        %v4027 = vunpack.c.l.b16 %v3555
        %v4028 = vunpack.c.l.b16 %v3556
        %v4029 = vunpack.c.l.b16 %v3557
        %v4030 = vunpack.c.l.b16 %v3558
        %v4031 = vunpack.c.l.b16 %v3559
        %v4032 = vunpack.c.l.b16 %v3560
        %v4033 = vunpack.c.l.b16 %v3561
        %v4034 = vunpack.c.l.b16 %v3562
        %v4035 = vunpack.c.l.b16 %v3563
        %v4036 = vunpack.c.l.b16 %v3564
        %v4037 = vunpack.c.l.b16 %v3565
        %v4038 = vunpack.c.l.b16 %v3566
        %v4039 = vunpack.c.l.b16 %v3567
        %v4040 = vunpack.c.l.b16 %v3568
        %v4041 = vunpack.c.l.b16 %v3569
        %v4042 = vunpack.c.l.b16 %v3570
        %v4043 = vunpack.c.l.b16 %v3571
        %v4044 = vunpack.c.l.b16 %v3572
        %v4045 = vunpack.c.l.b16 %v3573
        %v4046 = vunpack.c.l.b16 %v3574
        %v4047 = vunpack.c.l.b16 %v3575
        %v4048 = vunpack.c.l.b16 %v3576
        %v4049 = vunpack.c.l.b16 %v3577
        %v4050 = vunpack.c.l.b16 %v3578
        %v4051 = vunpack.c.l.b16 %v3579
        %v4052 = vunpack.c.l.b16 %v3580
        %v4053 = vunpack.c.l.b16 %v3581
        %v4054 = vunpack.c.l.b16 %v3582
        %v4055 = vunpack.c.l.b16 %v3583
        %v4056 = vunpack.c.l.b16 %v3584
        %v4057 = vunpack.c.l.b16 %v3585
        %v4058 = vunpack.c.l.b16 %v3586
        %v4059 = vunpack.c.l.b16 %v3587
        %v4060 = vunpack.c.l.b16 %v3588
        %v4061 = vunpack.c.l.b16 %v3589
        %v4062 = vunpack.c.l.b16 %v3590
        %v4063 = vunpack.c.l.b16 %v3591
        %v4064 = vunpack.c.l.b16 %v3592
        %v4065 = vunpack.c.l.b16 %v3593
        %v4066 = vunpack.c.l.b16 %v3594
        %v4067 = vunpack.c.l.b16 %v3595
        %v4068 = vunpack.c.l.b16 %v3596
        %v4069 = vunpack.c.l.b16 %v3597
        %v4070 = vunpack.c.l.b16 %v3598
        %v4071 = vunpack.c.l.b16 %v3599
        %v4072 = vunpack.c.l.b16 %v3600
        %v4073 = vunpack.c.l.b16 %v3601
        %v4074 = vunpack.c.l.b16 %v3602
        %v4075 = vunpack.c.l.b16 %v3603
        %v4076 = vunpack.c.l.b16 %v3604
        %v4077 = vunpack.c.l.b16 %v3605
        %v4078 = vunpack.c.l.b16 %v3606
        %v4079 = vunpack.c.l.b16 %v3607
        %v4080 = vunpack.c.l.b16 %v3608
        %v4081 = vunpack.c.l.b16 %v3609
        %v4082 = vunpack.c.l.b16 %v3610
        %v4083 = vunpack.c.l.b16 %v3611
        %v4084 = vunpack.c.l.b16 %v3612
        %v4085 = vunpack.c.l.b16 %v3613
        %v4086 = vunpack.c.l.b16 %v3614
        %v4087 = vunpack.c.l.b16 %v3615
        %v4088 = vunpack.c.l.b16 %v3616
        %v4089 = vunpack.c.l.b16 %v3617
        %v4090 = vunpack.c.l.b16 %v3618
        %v4091 = vunpack.c.l.b16 %v3619
        %v4092 = vunpack.c.l.b16 %v3620
        %v4093 = vunpack.c.l.b16 %v3621
        %v4094 = vunpack.c.l.b16 %v3622
        %v4095 = vunpack.c.l.b16 %v3623
        %v4096 = vunpack.c.l.b16 %v3624
        %v4097 = vunpack.c.l.b16 %v3625
        %v4098 = vunpack.c.l.b16 %v3626
        %v4099 = vunpack.c.l.b16 %v3627
        %v4100 = vunpack.c.l.b16 %v3628
        %v4101 = vunpack.c.l.b16 %v3629
        %v4102 = vunpack.c.l.b16 %v3630
        %v4103 = vunpack.c.l.b16 %v3631
        %v4104 = vunpack.c.l.b16 %v3632
        %v4105 = vunpack.c.l.b16 %v3633
        %v4106 = vunpack.c.l.b16 %v3634
        %v4107 = vunpack.c.l.b16 %v3635
        %v4108 = vunpack.c.l.b16 %v3636
        %v4109 = vunpack.c.l.b16 %v3637
        %v4110 = vunpack.c.l.b16 %v3638
        %v4111 = vunpack.c.l.b16 %v3639
        %v4112 = vunpack.c.l.b16 %v3640
        %v4113 = vunpack.c.l.b16 %v3641
        %v4114 = vunpack.c.l.b16 %v3642
        %v4115 = vunpack.c.l.b16 %v3643
        %v4116 = vunpack.c.l.b16 %v3644
        %v4117 = vunpack.c.l.b16 %v3645
        %v4118 = vunpack.c.l.b16 %v3646
        %v4119 = vunpack.c.l.b16 %v3647
        %v4120 = vunpack.c.l.b16 %v3648
        %v4121 = vunpack.c.l.b16 %v3649
        %v4122 = vunpack.c.l.b16 %v3650
        %v4123 = vunpack.c.l.b16 %v3651
        %v4124 = vunpack.c.l.b16 %v3652
        %v4125 = vunpack.c.l.b16 %v3653
        %v4126 = vunpack.c.l.b16 %v3654
        %v4127 = vunpack.c.l.b16 %v3655
        %v4128 = vunpack.c.l.b16 %v3656
        %v4129 = vunpack.c.l.b16 %v3657
        %v4130 = vunpack.c.l.b16 %v3658
        %v4131 = vunpack.c.l.b16 %v3659
        %v4132 = vunpack.c.l.b16 %v3660
        %v4133 = vunpack.c.l.b16 %v3661
        %v4134 = vunpack.c.l.b16 %v3662
        %v4135 = vunpack.c.l.b16 %v3663
        %v4136 = vunpack.c.l.b16 %v3664
        %v4137 = vunpack.c.l.b16 %v3665
        %v4138 = vunpack.c.l.b16 %v3666
        %v4139 = vunpack.c.l.b16 %v3667
        %v4140 = vunpack.c.l.b16 %v3668
        %v4141 = vunpack.c.l.b16 %v3669
        %v4142 = vunpack.c.l.b16 %v3670
        %v4143 = vunpack.c.l.b16 %v3671
        %v4144 = vunpack.c.l.b16 %v3672
        %v4145 = vunpack.c.l.b16 %v3673
        %v4146 = vunpack.c.l.b16 %v3674
        %v4147 = vunpack.c.l.b16 %v3675
        %v4148 = vunpack.c.l.b16 %v3676
        %v4149 = vunpack.c.l.b16 %v3677
        %v4150 = vunpack.c.l.b16 %v3678
        %v4151 = vunpack.c.l.b16 %v3679
        %v4152 = vunpack.c.l.b16 %v3680
        %v4153 = vunpack.c.l.b16 %v3681
        %v4154 = vunpack.c.l.b16 %v3682
        %v4155 = vunpack.c.l.b16 %v3683
        %v4156 = vunpack.c.l.b16 %v3684
        %v4157 = vunpack.c.l.b16 %v3685
        %v4158 = vunpack.c.l.b16 %v3686
        %v4159 = vunpack.c.l.b16 %v3687
        %v4160 = vunpack.c.l.b16 %v3688
        %v4161 = vunpack.c.l.b16 %v3689
        %v4162 = vpack.c.b16 %v4019, %v4018
        %v4163 = vpack.c.b16 %v4021, %v4020
        %v4164 = vpack.c.b16 %v4023, %v4022
        %v4165 = vpack.c.b16 %v4025, %v4024
        %v4166 = vpack.c.b16 %v4027, %v4026
        %v4167 = vpack.c.b16 %v4029, %v4028
        %v4168 = vpack.c.b16 %v4031, %v4030
        %v4169 = vpack.c.b16 %v4033, %v4032
        %v4170 = vpack.c.b16 %v4035, %v4034
        %v4171 = vpack.c.b16 %v4037, %v4036
        %v4172 = vpack.c.b16 %v4039, %v4038
        %v4173 = vpack.c.b16 %v4041, %v4040
        %v4174 = vpack.c.b16 %v4043, %v4042
        %v4175 = vpack.c.b16 %v4045, %v4044
        %v4176 = vpack.c.b16 %v4047, %v4046
        %v4177 = vpack.c.b16 %v4049, %v4048
        %v4178 = vpack.c.b16 %v4051, %v4050
        %v4179 = vpack.c.b16 %v4053, %v4052
        %v4180 = vpack.c.b16 %v4055, %v4054
        %v4181 = vpack.c.b16 %v4057, %v4056
        %v4182 = vpack.c.b16 %v4059, %v4058
        %v4183 = vpack.c.b16 %v4061, %v4060
        %v4184 = vpack.c.b16 %v4063, %v4062
        %v4185 = vpack.c.b16 %v4065, %v4064
        %v4186 = vpack.c.b16 %v4067, %v4066
        %v4187 = vpack.c.b16 %v4069, %v4068
        %v4188 = vpack.c.b16 %v4071, %v4070
        %v4189 = vpack.c.b16 %v4073, %v4072
        %v4190 = vpack.c.b16 %v4075, %v4074
        %v4191 = vpack.c.b16 %v4077, %v4076
        %v4192 = vpack.c.b16 %v4079, %v4078
        %v4193 = vpack.c.b16 %v4081, %v4080
        %v4194 = vpack.c.b16 %v4083, %v4082
        %v4195 = vpack.c.b16 %v4085, %v4084
        %v4196 = vpack.c.b16 %v4087, %v4086
        %v4197 = vpack.c.b16 %v4089, %v4088
        %v4198 = vpack.c.b16 %v4091, %v4090
        %v4199 = vpack.c.b16 %v4093, %v4092
        %v4200 = vpack.c.b16 %v4095, %v4094
        %v4201 = vpack.c.b16 %v4097, %v4096
        %v4202 = vpack.c.b16 %v4099, %v4098
        %v4203 = vpack.c.b16 %v4101, %v4100
        %v4204 = vpack.c.b16 %v4103, %v4102
        %v4205 = vpack.c.b16 %v4105, %v4104
        %v4206 = vpack.c.b16 %v4107, %v4106
        %v4207 = vpack.c.b16 %v4109, %v4108
        %v4208 = vpack.c.b16 %v4111, %v4110
        %v4209 = vpack.c.b16 %v4113, %v4112
        %v4210 = vpack.c.b16 %v4115, %v4114
        %v4211 = vpack.c.b16 %v4117, %v4116
        %v4212 = vpack.c.b16 %v4119, %v4118
        %v4213 = vpack.c.b16 %v4121, %v4120
        %v4214 = vpack.c.b16 %v4123, %v4122
        %v4215 = vpack.c.b16 %v4125, %v4124
        %v4216 = vpack.c.b16 %v4127, %v4126
        %v4217 = vpack.c.b16 %v4129, %v4128
        %v4218 = vpack.c.b16 %v4131, %v4130
        %v4219 = vpack.c.b16 %v4133, %v4132
        %v4220 = vpack.c.b16 %v4135, %v4134
        %v4221 = vpack.c.b16 %v4137, %v4136
        %v4222 = vpack.c.b16 %v4139, %v4138
        %v4223 = vpack.c.b16 %v4141, %v4140
        %v4224 = vpack.c.b16 %v4143, %v4142
        %v4225 = vpack.c.b16 %v4145, %v4144
        %v4226 = vpack.c.b16 %v4147, %v4146
        %v4227 = vpack.c.b16 %v4149, %v4148
        %v4228 = vpack.c.b16 %v4151, %v4150
        %v4229 = vpack.c.b16 %v4153, %v4152
        %v4230 = vpack.c.b16 %v4155, %v4154
        %v4231 = vpack.c.b16 %v4157, %v4156
        %v4232 = vpack.c.b16 %v4159, %v4158
        %v4233 = vpack.c.b16 %v4161, %v4160
        %4306 = vmatprep.subr.bf16.mxu0 0
        %4307 = vmatpush1.bf16.msra.mxu0 %v4169
        %4308 = vmatprep.subr.bf16.mxu0 0
        %4309 = vmatpush1.bf16.msra.mxu0 %v4168
        %4310 = vmatprep.subr.bf16.mxu0 0
        %4311 = vmatpush1.bf16.msra.mxu0 %v4167
        %4312 = vmatprep.subr.bf16.mxu0 0
        %4313 = vmatpush1.bf16.msra.mxu0 %v4166
        %4314 = vmatprep.subr.bf16.mxu0 0
        %4315 = vmatpush1.bf16.msra.mxu0 %v4165
        %4316 = vmatprep.subr.bf16.mxu0 0
        %4317 = vmatpush1.bf16.msra.mxu0 %v4164
        %4318 = vmatprep.subr.bf16.mxu0 0
        %4319 = vmatpush1.bf16.msra.mxu0 %v4163
        %4320 = vmatprep.subr.bf16.mxu0 0
        %4321 = vmatpush1.bf16.msra.mxu0 %v4162
        %4322 = vmatprep.subr.bf16.mxu0 0
        %4323 = vmatpush2.bf16.msra.mxu0 %v4177
        %4324 = vmatprep.subr.bf16.mxu0 0
        %4325 = vmatpush2.bf16.msra.mxu0 %v4176
        %4326 = vmatprep.subr.bf16.mxu0 0
        %4327 = vmatpush2.bf16.msra.mxu0 %v4175
        %4328 = vmatprep.subr.bf16.mxu0 0
        %4329 = vmatpush2.bf16.msra.mxu0 %v4174
        %4330 = vmatprep.subr.bf16.mxu0 0
        %4331 = vmatpush2.bf16.msra.mxu0 %v4173
        %4332 = vmatprep.subr.bf16.mxu0 0
        %4333 = vmatpush2.bf16.msra.mxu0 %v4172
        %4334 = vmatprep.subr.bf16.mxu0 0
        %4335 = vmatpush2.bf16.msra.mxu0 %v4171
        %4336 = vmatprep.subr.bf16.mxu0 0
        %4337 = vmatpush2.bf16.msra.mxu0 %v4170
        %4338 = vmatprep.mubr.bf16.mxu0 %v3803
        %4339 = vmatmul.mubr.bf16.gmra.mxu0 %v3802
        %v4340 = vpop.f32.mrf.mxu0
        %v4341 = vadd.f32 0.0, %v4340
        %v4342 = vpop.f32.mrf.mxu0
        %v4343 = vpop.f32.mrf.mxu0
        %v4344 = vadd.f32 0.0, %v4343
        %v4345 = vpop.f32.mrf.mxu0
        %4346 = vmatprep.mubr.bf16.mxu0 %v3812
        %4347 = vmatmul.mubr.bf16.gmra.mxu0 %v3811
        %v4348 = vpop.f32.mrf.mxu0
        %v4349 = vadd.f32 0.0, %v4348
        %v4350 = vpop.f32.mrf.mxu0
        %v4351 = vpop.f32.mrf.mxu0
        %v4352 = vadd.f32 0.0, %v4351
        %v4353 = vpop.f32.mrf.mxu0
        %4354 = vmatprep.mubr.bf16.mxu0 %v3821
        %4355 = vmatmul.mubr.bf16.gmra.mxu0 %v3820
        %v4356 = vpop.f32.mrf.mxu0
        %v4357 = vadd.f32 0.0, %v4356
        %v4358 = vpop.f32.mrf.mxu0
        %v4359 = vpop.f32.mrf.mxu0
        %v4360 = vadd.f32 0.0, %v4359
        %v4361 = vpop.f32.mrf.mxu0
        %4362 = vmatprep.mubr.bf16.mxu0 %v3830
        %4363 = vmatmul.mubr.bf16.gmra.mxu0 %v3829
        %v4364 = vpop.f32.mrf.mxu0
        %v4365 = vadd.f32 0.0, %v4364
        %v4366 = vpop.f32.mrf.mxu0
        %v4367 = vpop.f32.mrf.mxu0
        %v4368 = vadd.f32 0.0, %v4367
        %v4369 = vpop.f32.mrf.mxu0
        %4370 = vdwg.mxu0
        %4371 = vmatprep.subr.bf16.mxu0 0
        %4372 = vmatpush1.bf16.msra.mxu0 %v4185
        %4373 = vmatprep.subr.bf16.mxu0 0
        %4374 = vmatpush1.bf16.msra.mxu0 %v4184
        %4375 = vmatprep.subr.bf16.mxu0 0
        %4376 = vmatpush1.bf16.msra.mxu0 %v4183
        %4377 = vmatprep.subr.bf16.mxu0 0
        %4378 = vmatpush1.bf16.msra.mxu0 %v4182
        %4379 = vmatprep.subr.bf16.mxu0 0
        %4380 = vmatpush1.bf16.msra.mxu0 %v4181
        %4381 = vmatprep.subr.bf16.mxu0 0
        %4382 = vmatpush1.bf16.msra.mxu0 %v4180
        %4383 = vmatprep.subr.bf16.mxu0 0
        %4384 = vmatpush1.bf16.msra.mxu0 %v4179
        %4385 = vmatprep.subr.bf16.mxu0 0
        %4386 = vmatpush1.bf16.msra.mxu0 %v4178
        %4387 = vmatprep.subr.bf16.mxu0 0
        %4388 = vmatpush2.bf16.msra.mxu0 %v4193
        %4389 = vmatprep.subr.bf16.mxu0 0
        %4390 = vmatpush2.bf16.msra.mxu0 %v4192
        %4391 = vmatprep.subr.bf16.mxu0 0
        %4392 = vmatpush2.bf16.msra.mxu0 %v4191
        %4393 = vmatprep.subr.bf16.mxu0 0
        %4394 = vmatpush2.bf16.msra.mxu0 %v4190
        %4395 = vmatprep.subr.bf16.mxu0 0
        %4396 = vmatpush2.bf16.msra.mxu0 %v4189
        %4397 = vmatprep.subr.bf16.mxu0 0
        %4398 = vmatpush2.bf16.msra.mxu0 %v4188
        %4399 = vmatprep.subr.bf16.mxu0 0
        %4400 = vmatpush2.bf16.msra.mxu0 %v4187
        %4401 = vmatprep.subr.bf16.mxu0 0
        %4402 = vmatpush2.bf16.msra.mxu0 %v4186
        %4403 = vmatprep.mubr.bf16.mxu0 %v3805
        %4404 = vmatmul.mubr.bf16.gmra.mxu0 %v3804
        %v4405 = vpop.f32.mrf.mxu0
        %v4406 = vadd.f32 %v4341, %v4405
        %v4407 = vpop.f32.mrf.mxu0
        %v4408 = vpop.f32.mrf.mxu0
        %v4409 = vadd.f32 %v4344, %v4408
        %v4410 = vpop.f32.mrf.mxu0
        %4411 = vmatprep.mubr.bf16.mxu0 %v3814
        %4412 = vmatmul.mubr.bf16.gmra.mxu0 %v3813
        %v4413 = vpop.f32.mrf.mxu0
        %v4414 = vadd.f32 %v4349, %v4413
        %v4415 = vpop.f32.mrf.mxu0
        %v4416 = vpop.f32.mrf.mxu0
        %v4417 = vadd.f32 %v4352, %v4416
        %v4418 = vpop.f32.mrf.mxu0
        %4419 = vmatprep.mubr.bf16.mxu0 %v3823
        %4420 = vmatmul.mubr.bf16.gmra.mxu0 %v3822
        %v4421 = vpop.f32.mrf.mxu0
        %v4422 = vadd.f32 %v4357, %v4421
        %v4423 = vpop.f32.mrf.mxu0
        %v4424 = vpop.f32.mrf.mxu0
        %v4425 = vadd.f32 %v4360, %v4424
        %v4426 = vpop.f32.mrf.mxu0
        %4427 = vmatprep.mubr.bf16.mxu0 %v3832
        %4428 = vmatmul.mubr.bf16.gmra.mxu0 %v3831
        %v4429 = vpop.f32.mrf.mxu0
        %v4430 = vadd.f32 %v4365, %v4429
        %v4431 = vpop.f32.mrf.mxu0
        %v4432 = vpop.f32.mrf.mxu0
        %v4433 = vadd.f32 %v4368, %v4432
        %v4434 = vpop.f32.mrf.mxu0
        %4435 = vdwg.mxu0
        %4436 = vmatprep.subr.bf16.mxu0 0
        %4437 = vmatpush1.bf16.msra.mxu0 %v4201
        %4438 = vmatprep.subr.bf16.mxu0 0
        %4439 = vmatpush1.bf16.msra.mxu0 %v4200
        %4440 = vmatprep.subr.bf16.mxu0 0
        %4441 = vmatpush1.bf16.msra.mxu0 %v4199
        %4442 = vmatprep.subr.bf16.mxu0 0
        %4443 = vmatpush1.bf16.msra.mxu0 %v4198
        %4444 = vmatprep.subr.bf16.mxu0 0
        %4445 = vmatpush1.bf16.msra.mxu0 %v4197
        %4446 = vmatprep.subr.bf16.mxu0 0
        %4447 = vmatpush1.bf16.msra.mxu0 %v4196
        %4448 = vmatprep.subr.bf16.mxu0 0
        %4449 = vmatpush1.bf16.msra.mxu0 %v4195
        %4450 = vmatprep.subr.bf16.mxu0 0
        %4451 = vmatpush1.bf16.msra.mxu0 %v4194
        %4452 = vmatprep.subr.bf16.mxu0 0
        %4453 = vmatpush2.bf16.msra.mxu0 %v4209
        %4454 = vmatprep.subr.bf16.mxu0 0
        %4455 = vmatpush2.bf16.msra.mxu0 %v4208
        %4456 = vmatprep.subr.bf16.mxu0 0
        %4457 = vmatpush2.bf16.msra.mxu0 %v4207
        %4458 = vmatprep.subr.bf16.mxu0 0
        %4459 = vmatpush2.bf16.msra.mxu0 %v4206
        %4460 = vmatprep.subr.bf16.mxu0 0
        %4461 = vmatpush2.bf16.msra.mxu0 %v4205
        %4462 = vmatprep.subr.bf16.mxu0 0
        %4463 = vmatpush2.bf16.msra.mxu0 %v4204
        %4464 = vmatprep.subr.bf16.mxu0 0
        %4465 = vmatpush2.bf16.msra.mxu0 %v4203
        %4466 = vmatprep.subr.bf16.mxu0 0
        %4467 = vmatpush2.bf16.msra.mxu0 %v4202
        %4468 = vmatprep.mubr.bf16.mxu0 %v3807
        %4469 = vmatmul.mubr.bf16.gmra.mxu0 %v3806
        %v4470 = vpop.f32.mrf.mxu0
        %v4471 = vadd.f32 %v4406, %v4470
        %v4472 = vpop.f32.mrf.mxu0
        %v4473 = vpop.f32.mrf.mxu0
        %v4474 = vadd.f32 %v4409, %v4473
        %v4475 = vpop.f32.mrf.mxu0
        %4476 = vmatprep.mubr.bf16.mxu0 %v3816
        %4477 = vmatmul.mubr.bf16.gmra.mxu0 %v3815
        %v4478 = vpop.f32.mrf.mxu0
        %v4479 = vadd.f32 %v4414, %v4478
        %v4480 = vpop.f32.mrf.mxu0
        %v4481 = vpop.f32.mrf.mxu0
        %v4482 = vadd.f32 %v4417, %v4481
        %v4483 = vpop.f32.mrf.mxu0
        %4484 = vmatprep.mubr.bf16.mxu0 %v3825
        %4485 = vmatmul.mubr.bf16.gmra.mxu0 %v3824
        %v4486 = vpop.f32.mrf.mxu0
        %v4487 = vadd.f32 %v4422, %v4486
        %v4488 = vpop.f32.mrf.mxu0
        %v4489 = vpop.f32.mrf.mxu0
        %v4490 = vadd.f32 %v4425, %v4489
        %v4491 = vpop.f32.mrf.mxu0
        %4492 = vmatprep.mubr.bf16.mxu0 %v3834
        %4493 = vmatmul.mubr.bf16.gmra.mxu0 %v3833
        %v4494 = vpop.f32.mrf.mxu0
        %v4495 = vadd.f32 %v4430, %v4494
        %v4496 = vpop.f32.mrf.mxu0
        %v4497 = vpop.f32.mrf.mxu0
        %v4498 = vadd.f32 %v4433, %v4497
        %v4499 = vpop.f32.mrf.mxu0
        %4500 = vdwg.mxu0
        %4501 = vmatprep.subr.bf16.mxu0 0
        %4502 = vmatpush1.bf16.msra.mxu0 %v4217
        %4503 = vmatprep.subr.bf16.mxu0 0
        %4504 = vmatpush1.bf16.msra.mxu0 %v4216
        %4505 = vmatprep.subr.bf16.mxu0 0
        %4506 = vmatpush1.bf16.msra.mxu0 %v4215
        %4507 = vmatprep.subr.bf16.mxu0 0
        %4508 = vmatpush1.bf16.msra.mxu0 %v4214
        %4509 = vmatprep.subr.bf16.mxu0 0
        %4510 = vmatpush1.bf16.msra.mxu0 %v4213
        %4511 = vmatprep.subr.bf16.mxu0 0
        %4512 = vmatpush1.bf16.msra.mxu0 %v4212
        %4513 = vmatprep.subr.bf16.mxu0 0
        %4514 = vmatpush1.bf16.msra.mxu0 %v4211
        %4515 = vmatprep.subr.bf16.mxu0 0
        %4516 = vmatpush1.bf16.msra.mxu0 %v4210
        %4517 = vmatprep.subr.bf16.mxu0 0
        %4518 = vmatpush2.bf16.msra.mxu0 %v4225
        %4519 = vmatprep.subr.bf16.mxu0 0
        %4520 = vmatpush2.bf16.msra.mxu0 %v4224
        %4521 = vmatprep.subr.bf16.mxu0 0
        %4522 = vmatpush2.bf16.msra.mxu0 %v4223
        %4523 = vmatprep.subr.bf16.mxu0 0
        %4524 = vmatpush2.bf16.msra.mxu0 %v4222
        %4525 = vmatprep.subr.bf16.mxu0 0
        %4526 = vmatpush2.bf16.msra.mxu0 %v4221
        %4527 = vmatprep.subr.bf16.mxu0 0
        %4528 = vmatpush2.bf16.msra.mxu0 %v4220
        %4529 = vmatprep.subr.bf16.mxu0 0
        %4530 = vmatpush2.bf16.msra.mxu0 %v4219
        %4531 = vmatprep.subr.bf16.mxu0 0
        %4532 = vmatpush2.bf16.msra.mxu0 %v4218
        %4533 = vmatprep.mubr.bf16.mxu0 %v3809
        %4534 = vmatmul.mubr.bf16.gmra.mxu0 %v3808
        %v4535 = vpop.f32.mrf.mxu0
        %v4536 = vadd.f32 %v4471, %v4535
        %v4537 = vpop.f32.mrf.mxu0
        %v4538 = vpop.f32.mrf.mxu0
        %v4539 = vadd.f32 %v4474, %v4538
        %v4540 = vpop.f32.mrf.mxu0
        %4541 = vmatprep.mubr.bf16.mxu0 %v3818
        %4542 = vmatmul.mubr.bf16.gmra.mxu0 %v3817
        %v4543 = vpop.f32.mrf.mxu0
        %v4544 = vadd.f32 %v4479, %v4543
        %v4545 = vpop.f32.mrf.mxu0
        %v4546 = vpop.f32.mrf.mxu0
        %v4547 = vadd.f32 %v4482, %v4546
        %v4548 = vpop.f32.mrf.mxu0
        %4549 = vmatprep.mubr.bf16.mxu0 %v3827
        %4550 = vmatmul.mubr.bf16.gmra.mxu0 %v3826
        %v4551 = vpop.f32.mrf.mxu0
        %v4552 = vadd.f32 %v4487, %v4551
        %v4553 = vpop.f32.mrf.mxu0
        %v4554 = vpop.f32.mrf.mxu0
        %v4555 = vadd.f32 %v4490, %v4554
        %v4556 = vpop.f32.mrf.mxu0
        %4557 = vmatprep.mubr.bf16.mxu0 %v3836
        %4558 = vmatmul.mubr.bf16.gmra.mxu0 %v3835
        %v4559 = vpop.f32.mrf.mxu0
        %v4560 = vadd.f32 %v4495, %v4559
        %v4561 = vpop.f32.mrf.mxu0
        %v4562 = vpop.f32.mrf.mxu0
        %v4563 = vadd.f32 %v4498, %v4562
        %v4564 = vpop.f32.mrf.mxu0
        %4565 = vdwg.mxu0
        %4566 = vmatprep.subr.bf16.mxu0 0
        %4567 = vmatpush1.bf16.msra.mxu0 %v4233
        %4568 = vmatprep.subr.bf16.mxu0 0
        %4569 = vmatpush1.bf16.msra.mxu0 %v4232
        %4570 = vmatprep.subr.bf16.mxu0 0
        %4571 = vmatpush1.bf16.msra.mxu0 %v4231
        %4572 = vmatprep.subr.bf16.mxu0 0
        %4573 = vmatpush1.bf16.msra.mxu0 %v4230
        %4574 = vmatprep.subr.bf16.mxu0 0
        %4575 = vmatpush1.bf16.msra.mxu0 %v4229
        %4576 = vmatprep.subr.bf16.mxu0 0
        %4577 = vmatpush1.bf16.msra.mxu0 %v4228
        %4578 = vmatprep.subr.bf16.mxu0 0
        %4579 = vmatpush1.bf16.msra.mxu0 %v4227
        %4580 = vmatprep.subr.bf16.mxu0 0
        %4581 = vmatpush1.bf16.msra.mxu0 %v4226
        %4582 = vmatprep.subr.bf16.mxu0 0
        %4583 = vmatpush2.bf16.msra.mxu0 0
        %4584 = vmatprep.subr.bf16.mxu0 0
        %4585 = vmatpush2.bf16.msra.mxu0 0
        %4586 = vmatprep.subr.bf16.mxu0 0
        %4587 = vmatpush2.bf16.msra.mxu0 0
        %4588 = vmatprep.subr.bf16.mxu0 0
        %4589 = vmatpush2.bf16.msra.mxu0 0
        %4590 = vmatprep.subr.bf16.mxu0 0
        %4591 = vmatpush2.bf16.msra.mxu0 0
        %4592 = vmatprep.subr.bf16.mxu0 0
        %4593 = vmatpush2.bf16.msra.mxu0 0
        %4594 = vmatprep.subr.bf16.mxu0 0
        %4595 = vmatpush2.bf16.msra.mxu0 0
        %4596 = vmatprep.subr.bf16.mxu0 0
        %4597 = vmatpush2.bf16.msra.mxu0 0
        %4598 = vmatprep.mubr.bf16.mxu0 0
        %4599 = vmatmul.mubr.bf16.gmra.mxu0 %v3810
        %v4600 = vpop.f32.mrf.mxu0
        %v4601 = vadd.f32 %v4536, %v4600
        %v4602 = vpop.f32.mrf.mxu0
        %v4603 = vpop.f32.mrf.mxu0
        %v4604 = vadd.f32 %v4539, %v4603
        %v4605 = vpop.f32.mrf.mxu0
        %4606 = vmatprep.mubr.bf16.mxu0 0
        %4607 = vmatmul.mubr.bf16.gmra.mxu0 %v3819
        %v4608 = vpop.f32.mrf.mxu0
        %v4609 = vadd.f32 %v4544, %v4608
        %v4610 = vpop.f32.mrf.mxu0
        %v4611 = vpop.f32.mrf.mxu0
        %v4612 = vadd.f32 %v4547, %v4611
        %v4613 = vpop.f32.mrf.mxu0
        %4614 = vmatprep.mubr.bf16.mxu0 0
        %4615 = vmatmul.mubr.bf16.gmra.mxu0 %v3828
        %v4616 = vpop.f32.mrf.mxu0
        %v4617 = vadd.f32 %v4552, %v4616
        %v4618 = vpop.f32.mrf.mxu0
        %v4619 = vpop.f32.mrf.mxu0
        %v4620 = vadd.f32 %v4555, %v4619
        %v4621 = vpop.f32.mrf.mxu0
        %4622 = vmatprep.mubr.bf16.mxu0 0
        %4623 = vmatmul.mubr.bf16.gmra.mxu0 %v3837
        %v4624 = vpop.f32.mrf.mxu0
        %v4625 = vadd.f32 %v4560, %v4624
        %v4626 = vpop.f32.mrf.mxu0
        %v4627 = vpop.f32.mrf.mxu0
        %v4628 = vadd.f32 %v4563, %v4627
        %v4629 = vpop.f32.mrf.mxu0
        %4630 = vdwg.mxu0
        %v4631 = vld [vmem:[%s5] sm:$0x1]
        %v4633 = vlaneseq
        %v4634 = vshrl.u32 %v4633, 7
        %v4635 = vsub.s32 0, %v4634
        %v4636 = vrot.slane %v4631, %v4635
        %v4638 = vmul.f32 %v4601, %v4636
        %v4639 = vmul.f32 %v4604, %v4636
        %v4640 = vmul.f32 %v4609, %v4636
        %v4641 = vmul.f32 %v4612, %v4636
        %v4642 = vmul.f32 %v4617, %v4636
        %v4643 = vmul.f32 %v4620, %v4636
        %v4644 = vmul.f32 %v4625, %v4636
        %v4645 = vmul.f32 %v4628, %v4636
        %v4646 = vld [vmem:[%s6] sm:$0x1]
        %v4648 = vlaneseq
        %v4649 = vshrl.u32 %v4648, 7
        %v4650 = vsub.s32 0, %v4649
        %v4651 = vrot.slane %v4646, %v4650
        %v4653 = vadd.f32 %v4638, %v4651
        %v4654 = vadd.f32 %v4639, %v4651
        %v4655 = vadd.f32 %v4640, %v4651
        %v4656 = vadd.f32 %v4641, %v4651
        %v4657 = vadd.f32 %v4642, %v4651
        %v4658 = vadd.f32 %v4643, %v4651
        %v4659 = vadd.f32 %v4644, %v4651
        %v4660 = vadd.f32 %v4645, %v4651
        %v4661 = vmax.f32 %v4653, 0.0
        %v4662 = vmax.f32 %v4654, 0.0
        %v4663 = vmax.f32 %v4655, 0.0
        %v4664 = vmax.f32 %v4656, 0.0
        %v4665 = vmax.f32 %v4657, 0.0
        %v4666 = vmax.f32 %v4658, 0.0
        %v4667 = vmax.f32 %v4659, 0.0
        %v4668 = vmax.f32 %v4660, 0.0
        %4669 = vst [vmem:[%s325] sm:$0xff] %v4661
        %4670 = vst [vmem:[%s325 + $0x8] sm:$0xff] %v4662
        %4671 = vst [vmem:[%s325 + $0x10] sm:$0xff] %v4663
        %4672 = vst [vmem:[%s325 + $0x18] sm:$0xff] %v4664
        %4673 = vst [vmem:[%s325 + $0x20] sm:$0xff] %v4665
        %4674 = vst [vmem:[%s325 + $0x28] sm:$0xff] %v4666
        %4675 = vst [vmem:[%s325 + $0x30] sm:$0xff] %v4667
        %4676 = vst [vmem:[%s325 + $0x38] sm:$0xff] %v4668
        %s4677 = sand.u32 %s185, 1
        %s4678 = scalar_lea.sflag [#allocation8], %s4677
        %s4679 = sand.u32 %s185, 1
        %s4680 = smul.addr %s4679, 64
        %s4681 = scalar_lea.vmem [#allocation12], %s4680
        // Predicated region
        $region61: #{tpu_custom_call.1} parent=47 // pred_check
          %p4682 = pneg %p195
        $region62: #{tpu_custom_call.1} parent=47 // pred_check_branch
          %4684 = sbr.rel (%p4682) target = $region64
        $region63: #{tpu_custom_call.1} parent=47 // pred_region
          %s4686 = ssub.s32 1024, 1024
          %4687 = vsyncadd %s4678, %s4686
          %s4688 = smul.addr %s25, 8
          %s4689 = smul.addr %s4688, 128
          %s4690 = scalar_lea.hbm %s7, %s4689
          %s4691 = sshll.u32 %s4681, 4
          %s4692 = int_to_ptr.vmem [resolvable:$true] %s4691
          %4697 = dma.vmem_to_hbm [thread:$0]  %s4692, 1024, %s4690, %s4678, 128, 128, 8
        $region64: #{tpu_custom_call.1} parent=47 // pred_fallthru
          _
      $region48: #{tpu_custom_call.1} parent=5 // pred_fallthru
        _
      %p4698 = scmp.le.s32.totalorder 2, %s20
      // Predicated region
      $region65: #{tpu_custom_call.1} parent=5 // pred_check
        %p4699 = pneg %p4698
      $region66: #{tpu_custom_call.1} parent=5 // pred_check_branch
        %4701 = sbr.rel (%p4699) target = $region68
      $region67: #{tpu_custom_call.1} parent=5 // pred_region
        %s4702 = ssub.s32 %s20, 2
        // Predicated region
        $region69: #{tpu_custom_call.1} parent=67 // pred_check
          %p4703 = pneg %p201
        $region70: #{tpu_custom_call.1} parent=67 // pred_check_branch
          %4705 = sbr.rel (%p4703) target = $region72
        $region71: #{tpu_custom_call.1} parent=67 // pred_region
          %s4706 = sand.u32 %s186, 1
          %s4707 = scalar_lea.sflag [#allocation8], %s4706
          %s4708 = sand.u32 %s186, 1
          %s4709 = smul.addr %s4708, 64
          %s4710 = scalar_lea.vmem [#allocation12], %s4709
          %4711 = dma.done %s4707, 1024
        $region72: #{tpu_custom_call.1} parent=67 // pred_fallthru
          _
      $region68: #{tpu_custom_call.1} parent=5 // pred_fallthru
        _
    $region6: #{tpu_custom_call.1} parent=1 // loop_footer
      %s24 = sadd.s32 1, %s20
    $region7: #{tpu_custom_call.1} parent=1 // loop_footer_branch
      %19 = sbr.rel target = $region3
    $region8: #{tpu_custom_call.1} parent=1 // loop_exit
      _
    %4712 = vsyncpa [#allocation7], 1
    %s4713 = scalar_lea.sflag [#allocation7], 1
    %4714 = vsyncpa %s4713, 1
    %4715 = vsyncpa [#allocation10], 1
    %4716 = vsyncpa [#allocation8], 1
    %s4717 = scalar_lea.sflag [#allocation8], 1
    %4718 = vsyncpa %s4717, 1

</llo_original>
